<compile_context>
chip_gen: v6e
topology: v6e:2x2x1
jax: 0.10.0
libtpu: 0.0.40
codegen_flags: <defaults>
</compile_context>

<pallas_src>
import math

import jax
import jax.numpy as jnp
from jax import lax
from jax.experimental import pallas as pl
from jax.experimental.pallas import tpu as pltpu


# ----------------------------------------------------------------------------
# Padding arithmetic — faithful to Conv3dStaticSamePadding.__init__ (including
# the module's quirk of computing pad_h/pad_w/pad_d from weight dims [-3:] but
# applying them to the last three input dims via nn.ZeroPad2d).
# ----------------------------------------------------------------------------
def _normalize_stride(stride):
    if isinstance(stride, int):
        return (stride,) * 3
    stride = list(stride)
    return tuple(stride) if len(stride) == 3 else (stride[0],) * 3


def _same_pads(image_size, kernel_size, stride):
    ih, iw, id_ = (image_size,) * 3 if isinstance(image_size, int) else tuple(image_size)
    kh, kw, kd = kernel_size
    sh, sw, sd = stride
    oh, ow, od = math.ceil(ih / sh), math.ceil(iw / sw), math.ceil(id_ / sd)
    pad_h = max((oh - 1) * sh + (kh - 1) + 1 - ih, 0)   # dilation == 1
    pad_w = max((ow - 1) * sw + (kw - 1) + 1 - iw, 0)
    pad_d = max((od - 1) * sd + (kd - 1) + 1 - id_, 0)
    # nn.ZeroPad2d((pw0,pw1, ph0,ph1, pd0,pd1)) pads the LAST three dims:
    #   dim -1 <- pad_w, dim -2 <- pad_h, dim -3 <- pad_d  (faithful to module)
    return ((pad_d // 2, pad_d - pad_d // 2),
            (pad_h // 2, pad_h - pad_h // 2),
            (pad_w // 2, pad_w - pad_w // 2))


# ----------------------------------------------------------------------------
# Fused conv kernel: for each (batch, cout-tile, row-tile) grid point, loop
# over the K0*K1*K2 taps; each tap is a contiguous (TM, Cin) slice of the
# flattened phase-split input -> one MXU dot -> f32 accumulator -> +bias.
# ----------------------------------------------------------------------------
def _make_kernel(taps, tm, n_row_tiles):
    def kernel(x_ref, w_ref, b_ref, o_ref):
        # x_ref : (S_ph, V_pad, Cin)  bf16   full phase-split volume of one batch
        # w_ref : (T, Cin, TN)        bf16   per-tap weight slabs (Cout-tile)
        # b_ref : (1, TN)             f32
        # o_ref : (1, TM, TN)         f32
        if n_row_tiles == 1:
            row0 = 0                                      # fully static slices
        else:
            row0 = pl.multiple_of(pl.program_id(2) * tm, tm)
        acc = jnp.zeros(o_ref.shape[1:], jnp.float32)
        for t, (ph, base) in enumerate(taps):             # static, unrolled
            lhs = x_ref[ph, pl.ds(row0 + base, tm), :]    # (TM, Cin) bf16
            acc = acc + jnp.dot(lhs, w_ref[t],
                                preferred_element_type=jnp.float32)
        o_ref[0] = (acc + b_ref[...]).astype(o_ref.dtype)
    return kernel


def conv3d_static_same_padding(x, weight, bias, *, image_size, stride=1,
                               tm=512, tn=128, channels_last_output=False):
    """Forward pass of Conv3dStaticSamePadding (dilation=1, groups=1)."""
    # TODO(synk): dilation != 1 / groups != 1 kwargs of nn.Conv3d are not implemented.
    assert tn % 128 == 0
    stride = _normalize_stride(stride)
    sh, sw, sd = stride
    c_out, c_in, kh, kw, kd = weight.shape
    assert x.shape[1] == c_in
    n = x.shape[0]

    # 1) static SAME padding (module-faithful), bf16 feeds, channels-last.
    (pa0, pb0), (pa1, pb1), (pa2, pb2) = _same_pads(image_size, (kh, kw, kd), stride)
    xb = x.astype(jnp.bfloat16)
    xp = jnp.pad(xb, ((0, 0), (0, 0), (pa0, pb0), (pa1, pb1), (pa2, pb2)))
    _, _, p0, p1, p2 = xp.shape
    o0 = (p0 - kh) // sh + 1
    o1 = (p1 - kw) // sw + 1
    o2 = (p2 - kd) // sd + 1
    xcl = jnp.transpose(xp, (0, 2, 3, 4, 1))              # (N, P0, P1, P2, Cin)

    # 2) stride phase split (bandwidth-neutral reshuffle) so every in-kernel
    #    tap read is a dense unit-stride slice.
    l0, l1, l2 = -(-p0 // sh), -(-p1 // sw), -(-p2 // sd)
    xph = jnp.pad(xcl, ((0, 0), (0, l0 * sh - p0), (0, l1 * sw - p1),
                        (0, l2 * sd - p2), (0, 0)))
    xph = xph.reshape(n, l0, sh, l1, sw, l2, sd, c_in)
    xph = jnp.transpose(xph, (0, 2, 4, 6, 1, 3, 5, 7))    # (N, sh, sw, sd, L0, L1, L2, C)
    s_ph = sh * sw * sd
    v = l0 * l1 * l2
    xph = xph.reshape(n, s_ph, v, c_in)

    # 3) taps: kernel offset (i, j, k) -> (phase row, flat base row offset).
    taps = []
    for i in range(kh):
        for j in range(kw):
            for k in range(kd):
                ph = (i % sh) * (sw * sd) + (j % sw) * sd + (k % sd)
                base = (i // sh) * (l1 * l2) + (j // sw) * l2 + (k // sd)
                taps.append((ph, base))
    max_base = max(b for _, b in taps)

    # Drop phases no tap ever reads (only happens when kernel < stride).
    used = sorted({p for p, _ in taps})
    if len(used) < s_ph:
        remap = {p: q for q, p in enumerate(used)}
        taps = [(remap[p], b) for p, b in taps]
        xph = xph[:, jnp.asarray(used, dtype=jnp.int32), :, :]
        s_ph = len(used)

    # 4) row / cout tiling (lane-dense output, big M tiles).
    m_rows = o0 * l1 * l2                       # includes discardable boundary rows
    tm = max(8, min(tm, ((m_rows + 7) // 8) * 8))
    m_pad = ((m_rows + tm - 1) // tm) * tm
    v_pad = ((max_base + m_pad + 7) // 8) * 8   # keep every tap slice in-bounds
    if v_pad > v:
        xph = jnp.pad(xph, ((0, 0), (0, 0), (0, v_pad - v), (0, 0)))
    xph = xph.reshape(n * s_ph, v_pad, c_in)

    cout_p = ((c_out + tn - 1) // tn) * tn      # pad Cout -> multiple of 128
    n_taps = kh * kw * kd
    w_taps = jnp.transpose(weight, (2, 3, 4, 1, 0)).reshape(n_taps, c_in, c_out)
    w_taps = jnp.pad(w_taps, ((0, 0), (0, 0), (0, cout_p - c_out))).astype(jnp.bfloat16)
    b_mat = jnp.pad(bias.astype(jnp.float32), (0, cout_p - c_out)).reshape(1, cout_p)

    n_m = m_pad // tm
    n_c = cout_p // tn

    # 5) VMEM budget (sized per generation; double-buffered blocks + acc).
    est = (2 * s_ph * v_pad * c_in * 2          # input slab (bf16), 2 buffers
           + 2 * n_taps * c_in * tn * 2         # weight tiles (bf16)
           + 2 * tm * tn * 4                    # output tiles (f32)
           + tm * tn * 4 + tn * 4 + (1 << 20))  # accumulator + bias + slack
    try:
        phys_vmem = pltpu.get_tpu_info().vmem_capacity_bytes
    except Exception:
        phys_vmem = 64 * 2**20
    vmem_limit = int(min(int(phys_vmem * 0.9), max(32 * 2**20, 2 * est)))
    # TODO(synk): for volumes whose phase-split slab exceeds VMEM, switch the x
    # input to memory_space=pl.ANY + manual windowed make_async_copy pipelining.

    out_flat = pl.pallas_call(
        _make_kernel(taps, tm, n_m),
        out_shape=jax.ShapeDtypeStruct((n, m_pad, cout_p), jnp.float32),
        grid=(n, n_c, n_m),
        in_specs=[
            pl.BlockSpec((s_ph, v_pad, c_in), lambda b, jc, m: (b, 0, 0)),
            pl.BlockSpec((n_taps, c_in, tn), lambda b, jc, m: (0, 0, jc)),
            pl.BlockSpec((1, tn), lambda b, jc, m: (0, jc)),
        ],
        out_specs=pl.BlockSpec((1, tm, tn), lambda b, jc, m: (b, m, jc)),
        compiler_params=pltpu.CompilerParams(
            dimension_semantics=("parallel", "parallel", "parallel"),
            vmem_limit_bytes=vmem_limit),
    )(xph, w_taps, b_mat)

    # 6) drop padded Cout columns and boundary rows, restore NDHWC / NCDHW.
    out = out_flat[:, :m_rows, :c_out].reshape(n, o0, l1, l2, c_out)
    out = out[:, :, :o1, :o2, :]                           # (N, O0, O1, O2, Cout)
    if channels_last_output:
        return out
    return jnp.transpose(out, (0, 4, 1, 2, 3))             # NCDHW (module-faithful)


if __name__ == "__main__":
    # Small shapes consistent with the module: N=2, Cin=4, Cout=8, spatial=8,
    # kernel=3, stride=2, image_size=8 (asymmetric SAME pads (0,1) per dim).
    N, C_IN, C_OUT = 2, 4, 8
    S = 8
    K = 3
    STRIDE = 2
    IMAGE_SIZE = S

    key = jax.random.PRNGKey(0)
    kx, kw_, kb = jax.random.split(key, 3)
    x = jax.random.normal(kx, (N, C_IN, S, S, S), dtype=jnp.float32)
    fan_in = C_IN * K * K * K
    weight = jax.random.normal(kw_, (C_OUT, C_IN, K, K, K), dtype=jnp.float32) / math.sqrt(fan_in)
    bias = jax.random.normal(kb, (C_OUT,), dtype=jnp.float32) * 0.1

    out = conv3d_static_same_padding(x, weight, bias, image_size=IMAGE_SIZE, stride=STRIDE)
    out = jax.block_until_ready(out)

    # Pure-JAX reference: same static padding, conv on the same bf16-rounded
    # operands (the kernel feeds the MXU in bf16 with f32 accumulation).
    stride3 = _normalize_stride(STRIDE)
    pads = _same_pads(IMAGE_SIZE, (K, K, K), stride3)
    xq = x.astype(jnp.bfloat16).astype(jnp.float32)
    wq = weight.astype(jnp.bfloat16).astype(jnp.float32)
    xq_pad = jnp.pad(xq, ((0, 0), (0, 0), pads[0], pads[1], pads[2]))
    ref = lax.conv_general_dilated(
        xq_pad, wq, window_strides=stride3, padding="VALID",
        dimension_numbers=("NCDHW", "OIDHW", "NCDHW"),
    ) + bias.reshape(1, -1, 1, 1, 1)

    assert out.shape == ref.shape, (out.shape, ref.shape)
    max_err = float(jnp.max(jnp.abs(out - ref)))
    assert jnp.allclose(out, ref, atol=1e-2, rtol=1e-2), max_err
    print("KERNEL_OK")
</pallas_src>

<mosaic_0001>
module attributes {stable_mosaic.version = 11 : i64} {
  func.func @kernel(%arg0: i32, %arg1: i32, %arg2: i32, %arg3: memref<8x136x4xbf16, #tpu.memory_space<vmem>>, %arg4: memref<27x4x128xbf16, #tpu.memory_space<vmem>>, %arg5: memref<1x128xf32, #tpu.memory_space<vmem>>, %arg6: memref<1x104x128xf32, #tpu.memory_space<vmem>>) attributes {dimension_semantics = [#tpu.dimension_semantics<parallel>, #tpu.dimension_semantics<parallel>, #tpu.dimension_semantics<parallel>], iteration_bounds = array<i64: 2, 1, 1>, scalar_prefetch = 0 : i64, scratch_operands = 0 : i64, tpu.core_type = #tpu.core_type<tc>, window_params = [{transform_indices = @transform_0, window_bounds = array<i64: 8, 136, 4>}, {transform_indices = @transform_1, window_bounds = array<i64: 27, 4, 128>}, {transform_indices = @transform_2, window_bounds = array<i64: 1, 128>}, {transform_indices = @transform_3, window_bounds = array<i64: 1, 104, 128>}]} {
    %cst = arith.constant 0.000000e+00 : f32
    %0 = vector.broadcast %cst : f32 to vector<104x128xf32>
    %c0 = arith.constant 0 : index
    %c0_0 = arith.constant 0 : index
    %c0_1 = arith.constant 0 : index
    %1 = vector.load %arg3[%c0, %c0_0, %c0_1] : memref<8x136x4xbf16, #tpu.memory_space<vmem>>, vector<1x104x4xbf16>
    %2 = vector.shape_cast %1 : vector<1x104x4xbf16> to vector<104x4xbf16>
    %c0_2 = arith.constant 0 : index
    %c0_3 = arith.constant 0 : index
    %c0_4 = arith.constant 0 : index
    %3 = vector.load %arg4[%c0_2, %c0_3, %c0_4] : memref<27x4x128xbf16, #tpu.memory_space<vmem>>, vector<1x4x128xbf16>
    %4 = vector.shape_cast %3 : vector<1x4x128xbf16> to vector<4x128xbf16>
    %cst_5 = arith.constant dense<0.000000e+00> : vector<104x128xf32>
    %5 = tpu.matmul %2, %4, %cst_5 {dimension_numbers = #tpu.dot_dimension_numbers<[1], [0], [0], [1], [0, 0, 1, 1], [], []>} : vector<104x4xbf16>, vector<4x128xbf16>, vector<104x128xf32> -> vector<104x128xf32>
    %6 = arith.addf %0, %5 : vector<104x128xf32>
    %c1 = arith.constant 1 : index
    %c0_6 = arith.constant 0 : index
    %c0_7 = arith.constant 0 : index
    %7 = vector.load %arg3[%c1, %c0_6, %c0_7] : memref<8x136x4xbf16, #tpu.memory_space<vmem>>, vector<1x104x4xbf16>
    %8 = vector.shape_cast %7 : vector<1x104x4xbf16> to vector<104x4xbf16>
    %c1_8 = arith.constant 1 : index
    %c0_9 = arith.constant 0 : index
    %c0_10 = arith.constant 0 : index
    %9 = vector.load %arg4[%c1_8, %c0_9, %c0_10] : memref<27x4x128xbf16, #tpu.memory_space<vmem>>, vector<1x4x128xbf16>
    %10 = vector.shape_cast %9 : vector<1x4x128xbf16> to vector<4x128xbf16>
    %cst_11 = arith.constant dense<0.000000e+00> : vector<104x128xf32>
    %11 = tpu.matmul %8, %10, %cst_11 {dimension_numbers = #tpu.dot_dimension_numbers<[1], [0], [0], [1], [0, 0, 1, 1], [], []>} : vector<104x4xbf16>, vector<4x128xbf16>, vector<104x128xf32> -> vector<104x128xf32>
    %12 = arith.addf %6, %11 : vector<104x128xf32>
    %c0_12 = arith.constant 0 : index
    %c1_13 = arith.constant 1 : index
    %c0_14 = arith.constant 0 : index
    %13 = vector.load %arg3[%c0_12, %c1_13, %c0_14] : memref<8x136x4xbf16, #tpu.memory_space<vmem>>, vector<1x104x4xbf16>
    %14 = vector.shape_cast %13 : vector<1x104x4xbf16> to vector<104x4xbf16>
    %c2 = arith.constant 2 : index
    %c0_15 = arith.constant 0 : index
    %c0_16 = arith.constant 0 : index
    %15 = vector.load %arg4[%c2, %c0_15, %c0_16] : memref<27x4x128xbf16, #tpu.memory_space<vmem>>, vector<1x4x128xbf16>
    %16 = vector.shape_cast %15 : vector<1x4x128xbf16> to vector<4x128xbf16>
    %cst_17 = arith.constant dense<0.000000e+00> : vector<104x128xf32>
    %17 = tpu.matmul %14, %16, %cst_17 {dimension_numbers = #tpu.dot_dimension_numbers<[1], [0], [0], [1], [0, 0, 1, 1], [], []>} : vector<104x4xbf16>, vector<4x128xbf16>, vector<104x128xf32> -> vector<104x128xf32>
    %18 = arith.addf %12, %17 : vector<104x128xf32>
    %c2_18 = arith.constant 2 : index
    %c0_19 = arith.constant 0 : index
    %c0_20 = arith.constant 0 : index
    %19 = vector.load %arg3[%c2_18, %c0_19, %c0_20] : memref<8x136x4xbf16, #tpu.memory_space<vmem>>, vector<1x104x4xbf16>
    %20 = vector.shape_cast %19 : vector<1x104x4xbf16> to vector<104x4xbf16>
    %c3 = arith.constant 3 : index
    %c0_21 = arith.constant 0 : index
    %c0_22 = arith.constant 0 : index
    %21 = vector.load %arg4[%c3, %c0_21, %c0_22] : memref<27x4x128xbf16, #tpu.memory_space<vmem>>, vector<1x4x128xbf16>
    %22 = vector.shape_cast %21 : vector<1x4x128xbf16> to vector<4x128xbf16>
    %cst_23 = arith.constant dense<0.000000e+00> : vector<104x128xf32>
    %23 = tpu.matmul %20, %22, %cst_23 {dimension_numbers = #tpu.dot_dimension_numbers<[1], [0], [0], [1], [0, 0, 1, 1], [], []>} : vector<104x4xbf16>, vector<4x128xbf16>, vector<104x128xf32> -> vector<104x128xf32>
    %24 = arith.addf %18, %23 : vector<104x128xf32>
    %c3_24 = arith.constant 3 : index
    %c0_25 = arith.constant 0 : index
    %c0_26 = arith.constant 0 : index
    %25 = vector.load %arg3[%c3_24, %c0_25, %c0_26] : memref<8x136x4xbf16, #tpu.memory_space<vmem>>, vector<1x104x4xbf16>
    %26 = vector.shape_cast %25 : vector<1x104x4xbf16> to vector<104x4xbf16>
    %c4 = arith.constant 4 : index
    %c0_27 = arith.constant 0 : index
    %c0_28 = arith.constant 0 : index
    %27 = vector.load %arg4[%c4, %c0_27, %c0_28] : memref<27x4x128xbf16, #tpu.memory_space<vmem>>, vector<1x4x128xbf16>
    %28 = vector.shape_cast %27 : vector<1x4x128xbf16> to vector<4x128xbf16>
    %cst_29 = arith.constant dense<0.000000e+00> : vector<104x128xf32>
    %29 = tpu.matmul %26, %28, %cst_29 {dimension_numbers = #tpu.dot_dimension_numbers<[1], [0], [0], [1], [0, 0, 1, 1], [], []>} : vector<104x4xbf16>, vector<4x128xbf16>, vector<104x128xf32> -> vector<104x128xf32>
    %30 = arith.addf %24, %29 : vector<104x128xf32>
    %c2_30 = arith.constant 2 : index
    %c1_31 = arith.constant 1 : index
    %c0_32 = arith.constant 0 : index
    %31 = vector.load %arg3[%c2_30, %c1_31, %c0_32] : memref<8x136x4xbf16, #tpu.memory_space<vmem>>, vector<1x104x4xbf16>
    %32 = vector.shape_cast %31 : vector<1x104x4xbf16> to vector<104x4xbf16>
    %c5 = arith.constant 5 : index
    %c0_33 = arith.constant 0 : index
    %c0_34 = arith.constant 0 : index
    %33 = vector.load %arg4[%c5, %c0_33, %c0_34] : memref<27x4x128xbf16, #tpu.memory_space<vmem>>, vector<1x4x128xbf16>
    %34 = vector.shape_cast %33 : vector<1x4x128xbf16> to vector<4x128xbf16>
    %cst_35 = arith.constant dense<0.000000e+00> : vector<104x128xf32>
    %35 = tpu.matmul %32, %34, %cst_35 {dimension_numbers = #tpu.dot_dimension_numbers<[1], [0], [0], [1], [0, 0, 1, 1], [], []>} : vector<104x4xbf16>, vector<4x128xbf16>, vector<104x128xf32> -> vector<104x128xf32>
    %36 = arith.addf %30, %35 : vector<104x128xf32>
    %c0_36 = arith.constant 0 : index
    %c5_37 = arith.constant 5 : index
    %c0_38 = arith.constant 0 : index
    %37 = vector.load %arg3[%c0_36, %c5_37, %c0_38] : memref<8x136x4xbf16, #tpu.memory_space<vmem>>, vector<1x104x4xbf16>
    %38 = vector.shape_cast %37 : vector<1x104x4xbf16> to vector<104x4xbf16>
    %c6 = arith.constant 6 : index
    %c0_39 = arith.constant 0 : index
    %c0_40 = arith.constant 0 : index
    %39 = vector.load %arg4[%c6, %c0_39, %c0_40] : memref<27x4x128xbf16, #tpu.memory_space<vmem>>, vector<1x4x128xbf16>
    %40 = vector.shape_cast %39 : vector<1x4x128xbf16> to vector<4x128xbf16>
    %cst_41 = arith.constant dense<0.000000e+00> : vector<104x128xf32>
    %41 = tpu.matmul %38, %40, %cst_41 {dimension_numbers = #tpu.dot_dimension_numbers<[1], [0], [0], [1], [0, 0, 1, 1], [], []>} : vector<104x4xbf16>, vector<4x128xbf16>, vector<104x128xf32> -> vector<104x128xf32>
    %42 = arith.addf %36, %41 : vector<104x128xf32>
    %c1_42 = arith.constant 1 : index
    %c5_43 = arith.constant 5 : index
    %c0_44 = arith.constant 0 : index
    %43 = vector.load %arg3[%c1_42, %c5_43, %c0_44] : memref<8x136x4xbf16, #tpu.memory_space<vmem>>, vector<1x104x4xbf16>
    %44 = vector.shape_cast %43 : vector<1x104x4xbf16> to vector<104x4xbf16>
    %c7 = arith.constant 7 : index
    %c0_45 = arith.constant 0 : index
    %c0_46 = arith.constant 0 : index
    %45 = vector.load %arg4[%c7, %c0_45, %c0_46] : memref<27x4x128xbf16, #tpu.memory_space<vmem>>, vector<1x4x128xbf16>
    %46 = vector.shape_cast %45 : vector<1x4x128xbf16> to vector<4x128xbf16>
    %cst_47 = arith.constant dense<0.000000e+00> : vector<104x128xf32>
    %47 = tpu.matmul %44, %46, %cst_47 {dimension_numbers = #tpu.dot_dimension_numbers<[1], [0], [0], [1], [0, 0, 1, 1], [], []>} : vector<104x4xbf16>, vector<4x128xbf16>, vector<104x128xf32> -> vector<104x128xf32>
    %48 = arith.addf %42, %47 : vector<104x128xf32>
    %c0_48 = arith.constant 0 : index
    %c6_49 = arith.constant 6 : index
    %c0_50 = arith.constant 0 : index
    %49 = vector.load %arg3[%c0_48, %c6_49, %c0_50] : memref<8x136x4xbf16, #tpu.memory_space<vmem>>, vector<1x104x4xbf16>
    %50 = vector.shape_cast %49 : vector<1x104x4xbf16> to vector<104x4xbf16>
    %c8 = arith.constant 8 : index
    %c0_51 = arith.constant 0 : index
    %c0_52 = arith.constant 0 : index
    %51 = vector.load %arg4[%c8, %c0_51, %c0_52] : memref<27x4x128xbf16, #tpu.memory_space<vmem>>, vector<1x4x128xbf16>
    %52 = vector.shape_cast %51 : vector<1x4x128xbf16> to vector<4x128xbf16>
    %cst_53 = arith.constant dense<0.000000e+00> : vector<104x128xf32>
    %53 = tpu.matmul %50, %52, %cst_53 {dimension_numbers = #tpu.dot_dimension_numbers<[1], [0], [0], [1], [0, 0, 1, 1], [], []>} : vector<104x4xbf16>, vector<4x128xbf16>, vector<104x128xf32> -> vector<104x128xf32>
    %54 = arith.addf %48, %53 : vector<104x128xf32>
    %c4_54 = arith.constant 4 : index
    %c0_55 = arith.constant 0 : index
    %c0_56 = arith.constant 0 : index
    %55 = vector.load %arg3[%c4_54, %c0_55, %c0_56] : memref<8x136x4xbf16, #tpu.memory_space<vmem>>, vector<1x104x4xbf16>
    %56 = vector.shape_cast %55 : vector<1x104x4xbf16> to vector<104x4xbf16>
    %c9 = arith.constant 9 : index
    %c0_57 = arith.constant 0 : index
    %c0_58 = arith.constant 0 : index
    %57 = vector.load %arg4[%c9, %c0_57, %c0_58] : memref<27x4x128xbf16, #tpu.memory_space<vmem>>, vector<1x4x128xbf16>
    %58 = vector.shape_cast %57 : vector<1x4x128xbf16> to vector<4x128xbf16>
    %cst_59 = arith.constant dense<0.000000e+00> : vector<104x128xf32>
    %59 = tpu.matmul %56, %58, %cst_59 {dimension_numbers = #tpu.dot_dimension_numbers<[1], [0], [0], [1], [0, 0, 1, 1], [], []>} : vector<104x4xbf16>, vector<4x128xbf16>, vector<104x128xf32> -> vector<104x128xf32>
    %60 = arith.addf %54, %59 : vector<104x128xf32>
    %c5_60 = arith.constant 5 : index
    %c0_61 = arith.constant 0 : index
    %c0_62 = arith.constant 0 : index
    %61 = vector.load %arg3[%c5_60, %c0_61, %c0_62] : memref<8x136x4xbf16, #tpu.memory_space<vmem>>, vector<1x104x4xbf16>
    %62 = vector.shape_cast %61 : vector<1x104x4xbf16> to vector<104x4xbf16>
    %c10 = arith.constant 10 : index
    %c0_63 = arith.constant 0 : index
    %c0_64 = arith.constant 0 : index
    %63 = vector.load %arg4[%c10, %c0_63, %c0_64] : memref<27x4x128xbf16, #tpu.memory_space<vmem>>, vector<1x4x128xbf16>
    %64 = vector.shape_cast %63 : vector<1x4x128xbf16> to vector<4x128xbf16>
    %cst_65 = arith.constant dense<0.000000e+00> : vector<104x128xf32>
    %65 = tpu.matmul %62, %64, %cst_65 {dimension_numbers = #tpu.dot_dimension_numbers<[1], [0], [0], [1], [0, 0, 1, 1], [], []>} : vector<104x4xbf16>, vector<4x128xbf16>, vector<104x128xf32> -> vector<104x128xf32>
    %66 = arith.addf %60, %65 : vector<104x128xf32>
    %c4_66 = arith.constant 4 : index
    %c1_67 = arith.constant 1 : index
    %c0_68 = arith.constant 0 : index
    %67 = vector.load %arg3[%c4_66, %c1_67, %c0_68] : memref<8x136x4xbf16, #tpu.memory_space<vmem>>, vector<1x104x4xbf16>
    %68 = vector.shape_cast %67 : vector<1x104x4xbf16> to vector<104x4xbf16>
    %c11 = arith.constant 11 : index
    %c0_69 = arith.constant 0 : index
    %c0_70 = arith.constant 0 : index
    %69 = vector.load %arg4[%c11, %c0_69, %c0_70] : memref<27x4x128xbf16, #tpu.memory_space<vmem>>, vector<1x4x128xbf16>
    %70 = vector.shape_cast %69 : vector<1x4x128xbf16> to vector<4x128xbf16>
    %cst_71 = arith.constant dense<0.000000e+00> : vector<104x128xf32>
    %71 = tpu.matmul %68, %70, %cst_71 {dimension_numbers = #tpu.dot_dimension_numbers<[1], [0], [0], [1], [0, 0, 1, 1], [], []>} : vector<104x4xbf16>, vector<4x128xbf16>, vector<104x128xf32> -> vector<104x128xf32>
    %72 = arith.addf %66, %71 : vector<104x128xf32>
    %c6_72 = arith.constant 6 : index
    %c0_73 = arith.constant 0 : index
    %c0_74 = arith.constant 0 : index
    %73 = vector.load %arg3[%c6_72, %c0_73, %c0_74] : memref<8x136x4xbf16, #tpu.memory_space<vmem>>, vector<1x104x4xbf16>
    %74 = vector.shape_cast %73 : vector<1x104x4xbf16> to vector<104x4xbf16>
    %c12 = arith.constant 12 : index
    %c0_75 = arith.constant 0 : index
    %c0_76 = arith.constant 0 : index
    %75 = vector.load %arg4[%c12, %c0_75, %c0_76] : memref<27x4x128xbf16, #tpu.memory_space<vmem>>, vector<1x4x128xbf16>
    %76 = vector.shape_cast %75 : vector<1x4x128xbf16> to vector<4x128xbf16>
    %cst_77 = arith.constant dense<0.000000e+00> : vector<104x128xf32>
    %77 = tpu.matmul %74, %76, %cst_77 {dimension_numbers = #tpu.dot_dimension_numbers<[1], [0], [0], [1], [0, 0, 1, 1], [], []>} : vector<104x4xbf16>, vector<4x128xbf16>, vector<104x128xf32> -> vector<104x128xf32>
    %78 = arith.addf %72, %77 : vector<104x128xf32>
    %c7_78 = arith.constant 7 : index
    %c0_79 = arith.constant 0 : index
    %c0_80 = arith.constant 0 : index
    %79 = vector.load %arg3[%c7_78, %c0_79, %c0_80] : memref<8x136x4xbf16, #tpu.memory_space<vmem>>, vector<1x104x4xbf16>
    %80 = vector.shape_cast %79 : vector<1x104x4xbf16> to vector<104x4xbf16>
    %c13 = arith.constant 13 : index
    %c0_81 = arith.constant 0 : index
    %c0_82 = arith.constant 0 : index
    %81 = vector.load %arg4[%c13, %c0_81, %c0_82] : memref<27x4x128xbf16, #tpu.memory_space<vmem>>, vector<1x4x128xbf16>
    %82 = vector.shape_cast %81 : vector<1x4x128xbf16> to vector<4x128xbf16>
    %cst_83 = arith.constant dense<0.000000e+00> : vector<104x128xf32>
    %83 = tpu.matmul %80, %82, %cst_83 {dimension_numbers = #tpu.dot_dimension_numbers<[1], [0], [0], [1], [0, 0, 1, 1], [], []>} : vector<104x4xbf16>, vector<4x128xbf16>, vector<104x128xf32> -> vector<104x128xf32>
    %84 = arith.addf %78, %83 : vector<104x128xf32>
    %c6_84 = arith.constant 6 : index
    %c1_85 = arith.constant 1 : index
    %c0_86 = arith.constant 0 : index
    %85 = vector.load %arg3[%c6_84, %c1_85, %c0_86] : memref<8x136x4xbf16, #tpu.memory_space<vmem>>, vector<1x104x4xbf16>
    %86 = vector.shape_cast %85 : vector<1x104x4xbf16> to vector<104x4xbf16>
    %c14 = arith.constant 14 : index
    %c0_87 = arith.constant 0 : index
    %c0_88 = arith.constant 0 : index
    %87 = vector.load %arg4[%c14, %c0_87, %c0_88] : memref<27x4x128xbf16, #tpu.memory_space<vmem>>, vector<1x4x128xbf16>
    %88 = vector.shape_cast %87 : vector<1x4x128xbf16> to vector<4x128xbf16>
    %cst_89 = arith.constant dense<0.000000e+00> : vector<104x128xf32>
    %89 = tpu.matmul %86, %88, %cst_89 {dimension_numbers = #tpu.dot_dimension_numbers<[1], [0], [0], [1], [0, 0, 1, 1], [], []>} : vector<104x4xbf16>, vector<4x128xbf16>, vector<104x128xf32> -> vector<104x128xf32>
    %90 = arith.addf %84, %89 : vector<104x128xf32>
    %c4_90 = arith.constant 4 : index
    %c5_91 = arith.constant 5 : index
    %c0_92 = arith.constant 0 : index
    %91 = vector.load %arg3[%c4_90, %c5_91, %c0_92] : memref<8x136x4xbf16, #tpu.memory_space<vmem>>, vector<1x104x4xbf16>
    %92 = vector.shape_cast %91 : vector<1x104x4xbf16> to vector<104x4xbf16>
    %c15 = arith.constant 15 : index
    %c0_93 = arith.constant 0 : index
    %c0_94 = arith.constant 0 : index
    %93 = vector.load %arg4[%c15, %c0_93, %c0_94] : memref<27x4x128xbf16, #tpu.memory_space<vmem>>, vector<1x4x128xbf16>
    %94 = vector.shape_cast %93 : vector<1x4x128xbf16> to vector<4x128xbf16>
    %cst_95 = arith.constant dense<0.000000e+00> : vector<104x128xf32>
    %95 = tpu.matmul %92, %94, %cst_95 {dimension_numbers = #tpu.dot_dimension_numbers<[1], [0], [0], [1], [0, 0, 1, 1], [], []>} : vector<104x4xbf16>, vector<4x128xbf16>, vector<104x128xf32> -> vector<104x128xf32>
    %96 = arith.addf %90, %95 : vector<104x128xf32>
    %c5_96 = arith.constant 5 : index
    %c5_97 = arith.constant 5 : index
    %c0_98 = arith.constant 0 : index
    %97 = vector.load %arg3[%c5_96, %c5_97, %c0_98] : memref<8x136x4xbf16, #tpu.memory_space<vmem>>, vector<1x104x4xbf16>
    %98 = vector.shape_cast %97 : vector<1x104x4xbf16> to vector<104x4xbf16>
    %c16 = arith.constant 16 : index
    %c0_99 = arith.constant 0 : index
    %c0_100 = arith.constant 0 : index
    %99 = vector.load %arg4[%c16, %c0_99, %c0_100] : memref<27x4x128xbf16, #tpu.memory_space<vmem>>, vector<1x4x128xbf16>
    %100 = vector.shape_cast %99 : vector<1x4x128xbf16> to vector<4x128xbf16>
    %cst_101 = arith.constant dense<0.000000e+00> : vector<104x128xf32>
    %101 = tpu.matmul %98, %100, %cst_101 {dimension_numbers = #tpu.dot_dimension_numbers<[1], [0], [0], [1], [0, 0, 1, 1], [], []>} : vector<104x4xbf16>, vector<4x128xbf16>, vector<104x128xf32> -> vector<104x128xf32>
    %102 = arith.addf %96, %101 : vector<104x128xf32>
    %c4_102 = arith.constant 4 : index
    %c6_103 = arith.constant 6 : index
    %c0_104 = arith.constant 0 : index
    %103 = vector.load %arg3[%c4_102, %c6_103, %c0_104] : memref<8x136x4xbf16, #tpu.memory_space<vmem>>, vector<1x104x4xbf16>
    %104 = vector.shape_cast %103 : vector<1x104x4xbf16> to vector<104x4xbf16>
    %c17 = arith.constant 17 : index
    %c0_105 = arith.constant 0 : index
    %c0_106 = arith.constant 0 : index
    %105 = vector.load %arg4[%c17, %c0_105, %c0_106] : memref<27x4x128xbf16, #tpu.memory_space<vmem>>, vector<1x4x128xbf16>
    %106 = vector.shape_cast %105 : vector<1x4x128xbf16> to vector<4x128xbf16>
    %cst_107 = arith.constant dense<0.000000e+00> : vector<104x128xf32>
    %107 = tpu.matmul %104, %106, %cst_107 {dimension_numbers = #tpu.dot_dimension_numbers<[1], [0], [0], [1], [0, 0, 1, 1], [], []>} : vector<104x4xbf16>, vector<4x128xbf16>, vector<104x128xf32> -> vector<104x128xf32>
    %108 = arith.addf %102, %107 : vector<104x128xf32>
    %c0_108 = arith.constant 0 : index
    %c25 = arith.constant 25 : index
    %c0_109 = arith.constant 0 : index
    %109 = vector.load %arg3[%c0_108, %c25, %c0_109] : memref<8x136x4xbf16, #tpu.memory_space<vmem>>, vector<1x104x4xbf16>
    %110 = vector.shape_cast %109 : vector<1x104x4xbf16> to vector<104x4xbf16>
    %c18 = arith.constant 18 : index
    %c0_110 = arith.constant 0 : index
    %c0_111 = arith.constant 0 : index
    %111 = vector.load %arg4[%c18, %c0_110, %c0_111] : memref<27x4x128xbf16, #tpu.memory_space<vmem>>, vector<1x4x128xbf16>
    %112 = vector.shape_cast %111 : vector<1x4x128xbf16> to vector<4x128xbf16>
    %cst_112 = arith.constant dense<0.000000e+00> : vector<104x128xf32>
    %113 = tpu.matmul %110, %112, %cst_112 {dimension_numbers = #tpu.dot_dimension_numbers<[1], [0], [0], [1], [0, 0, 1, 1], [], []>} : vector<104x4xbf16>, vector<4x128xbf16>, vector<104x128xf32> -> vector<104x128xf32>
    %114 = arith.addf %108, %113 : vector<104x128xf32>
    %c1_113 = arith.constant 1 : index
    %c25_114 = arith.constant 25 : index
    %c0_115 = arith.constant 0 : index
    %115 = vector.load %arg3[%c1_113, %c25_114, %c0_115] : memref<8x136x4xbf16, #tpu.memory_space<vmem>>, vector<1x104x4xbf16>
    %116 = vector.shape_cast %115 : vector<1x104x4xbf16> to vector<104x4xbf16>
    %c19 = arith.constant 19 : index
    %c0_116 = arith.constant 0 : index
    %c0_117 = arith.constant 0 : index
    %117 = vector.load %arg4[%c19, %c0_116, %c0_117] : memref<27x4x128xbf16, #tpu.memory_space<vmem>>, vector<1x4x128xbf16>
    %118 = vector.shape_cast %117 : vector<1x4x128xbf16> to vector<4x128xbf16>
    %cst_118 = arith.constant dense<0.000000e+00> : vector<104x128xf32>
    %119 = tpu.matmul %116, %118, %cst_118 {dimension_numbers = #tpu.dot_dimension_numbers<[1], [0], [0], [1], [0, 0, 1, 1], [], []>} : vector<104x4xbf16>, vector<4x128xbf16>, vector<104x128xf32> -> vector<104x128xf32>
    %120 = arith.addf %114, %119 : vector<104x128xf32>
    %c0_119 = arith.constant 0 : index
    %c26 = arith.constant 26 : index
    %c0_120 = arith.constant 0 : index
    %121 = vector.load %arg3[%c0_119, %c26, %c0_120] : memref<8x136x4xbf16, #tpu.memory_space<vmem>>, vector<1x104x4xbf16>
    %122 = vector.shape_cast %121 : vector<1x104x4xbf16> to vector<104x4xbf16>
    %c20 = arith.constant 20 : index
    %c0_121 = arith.constant 0 : index
    %c0_122 = arith.constant 0 : index
    %123 = vector.load %arg4[%c20, %c0_121, %c0_122] : memref<27x4x128xbf16, #tpu.memory_space<vmem>>, vector<1x4x128xbf16>
    %124 = vector.shape_cast %123 : vector<1x4x128xbf16> to vector<4x128xbf16>
    %cst_123 = arith.constant dense<0.000000e+00> : vector<104x128xf32>
    %125 = tpu.matmul %122, %124, %cst_123 {dimension_numbers = #tpu.dot_dimension_numbers<[1], [0], [0], [1], [0, 0, 1, 1], [], []>} : vector<104x4xbf16>, vector<4x128xbf16>, vector<104x128xf32> -> vector<104x128xf32>
    %126 = arith.addf %120, %125 : vector<104x128xf32>
    %c2_124 = arith.constant 2 : index
    %c25_125 = arith.constant 25 : index
    %c0_126 = arith.constant 0 : index
    %127 = vector.load %arg3[%c2_124, %c25_125, %c0_126] : memref<8x136x4xbf16, #tpu.memory_space<vmem>>, vector<1x104x4xbf16>
    %128 = vector.shape_cast %127 : vector<1x104x4xbf16> to vector<104x4xbf16>
    %c21 = arith.constant 21 : index
    %c0_127 = arith.constant 0 : index
    %c0_128 = arith.constant 0 : index
    %129 = vector.load %arg4[%c21, %c0_127, %c0_128] : memref<27x4x128xbf16, #tpu.memory_space<vmem>>, vector<1x4x128xbf16>
    %130 = vector.shape_cast %129 : vector<1x4x128xbf16> to vector<4x128xbf16>
    %cst_129 = arith.constant dense<0.000000e+00> : vector<104x128xf32>
    %131 = tpu.matmul %128, %130, %cst_129 {dimension_numbers = #tpu.dot_dimension_numbers<[1], [0], [0], [1], [0, 0, 1, 1], [], []>} : vector<104x4xbf16>, vector<4x128xbf16>, vector<104x128xf32> -> vector<104x128xf32>
    %132 = arith.addf %126, %131 : vector<104x128xf32>
    %c3_130 = arith.constant 3 : index
    %c25_131 = arith.constant 25 : index
    %c0_132 = arith.constant 0 : index
    %133 = vector.load %arg3[%c3_130, %c25_131, %c0_132] : memref<8x136x4xbf16, #tpu.memory_space<vmem>>, vector<1x104x4xbf16>
    %134 = vector.shape_cast %133 : vector<1x104x4xbf16> to vector<104x4xbf16>
    %c22 = arith.constant 22 : index
    %c0_133 = arith.constant 0 : index
    %c0_134 = arith.constant 0 : index
    %135 = vector.load %arg4[%c22, %c0_133, %c0_134] : memref<27x4x128xbf16, #tpu.memory_space<vmem>>, vector<1x4x128xbf16>
    %136 = vector.shape_cast %135 : vector<1x4x128xbf16> to vector<4x128xbf16>
    %cst_135 = arith.constant dense<0.000000e+00> : vector<104x128xf32>
    %137 = tpu.matmul %134, %136, %cst_135 {dimension_numbers = #tpu.dot_dimension_numbers<[1], [0], [0], [1], [0, 0, 1, 1], [], []>} : vector<104x4xbf16>, vector<4x128xbf16>, vector<104x128xf32> -> vector<104x128xf32>
    %138 = arith.addf %132, %137 : vector<104x128xf32>
    %c2_136 = arith.constant 2 : index
    %c26_137 = arith.constant 26 : index
    %c0_138 = arith.constant 0 : index
    %139 = vector.load %arg3[%c2_136, %c26_137, %c0_138] : memref<8x136x4xbf16, #tpu.memory_space<vmem>>, vector<1x104x4xbf16>
    %140 = vector.shape_cast %139 : vector<1x104x4xbf16> to vector<104x4xbf16>
    %c23 = arith.constant 23 : index
    %c0_139 = arith.constant 0 : index
    %c0_140 = arith.constant 0 : index
    %141 = vector.load %arg4[%c23, %c0_139, %c0_140] : memref<27x4x128xbf16, #tpu.memory_space<vmem>>, vector<1x4x128xbf16>
    %142 = vector.shape_cast %141 : vector<1x4x128xbf16> to vector<4x128xbf16>
    %cst_141 = arith.constant dense<0.000000e+00> : vector<104x128xf32>
    %143 = tpu.matmul %140, %142, %cst_141 {dimension_numbers = #tpu.dot_dimension_numbers<[1], [0], [0], [1], [0, 0, 1, 1], [], []>} : vector<104x4xbf16>, vector<4x128xbf16>, vector<104x128xf32> -> vector<104x128xf32>
    %144 = arith.addf %138, %143 : vector<104x128xf32>
    %c0_142 = arith.constant 0 : index
    %c30 = arith.constant 30 : index
    %c0_143 = arith.constant 0 : index
    %145 = vector.load %arg3[%c0_142, %c30, %c0_143] : memref<8x136x4xbf16, #tpu.memory_space<vmem>>, vector<1x104x4xbf16>
    %146 = vector.shape_cast %145 : vector<1x104x4xbf16> to vector<104x4xbf16>
    %c24 = arith.constant 24 : index
    %c0_144 = arith.constant 0 : index
    %c0_145 = arith.constant 0 : index
    %147 = vector.load %arg4[%c24, %c0_144, %c0_145] : memref<27x4x128xbf16, #tpu.memory_space<vmem>>, vector<1x4x128xbf16>
    %148 = vector.shape_cast %147 : vector<1x4x128xbf16> to vector<4x128xbf16>
    %cst_146 = arith.constant dense<0.000000e+00> : vector<104x128xf32>
    %149 = tpu.matmul %146, %148, %cst_146 {dimension_numbers = #tpu.dot_dimension_numbers<[1], [0], [0], [1], [0, 0, 1, 1], [], []>} : vector<104x4xbf16>, vector<4x128xbf16>, vector<104x128xf32> -> vector<104x128xf32>
    %150 = arith.addf %144, %149 : vector<104x128xf32>
    %c1_147 = arith.constant 1 : index
    %c30_148 = arith.constant 30 : index
    %c0_149 = arith.constant 0 : index
    %151 = vector.load %arg3[%c1_147, %c30_148, %c0_149] : memref<8x136x4xbf16, #tpu.memory_space<vmem>>, vector<1x104x4xbf16>
    %152 = vector.shape_cast %151 : vector<1x104x4xbf16> to vector<104x4xbf16>
    %c25_150 = arith.constant 25 : index
    %c0_151 = arith.constant 0 : index
    %c0_152 = arith.constant 0 : index
    %153 = vector.load %arg4[%c25_150, %c0_151, %c0_152] : memref<27x4x128xbf16, #tpu.memory_space<vmem>>, vector<1x4x128xbf16>
    %154 = vector.shape_cast %153 : vector<1x4x128xbf16> to vector<4x128xbf16>
    %cst_153 = arith.constant dense<0.000000e+00> : vector<104x128xf32>
    %155 = tpu.matmul %152, %154, %cst_153 {dimension_numbers = #tpu.dot_dimension_numbers<[1], [0], [0], [1], [0, 0, 1, 1], [], []>} : vector<104x4xbf16>, vector<4x128xbf16>, vector<104x128xf32> -> vector<104x128xf32>
    %156 = arith.addf %150, %155 : vector<104x128xf32>
    %c0_154 = arith.constant 0 : index
    %c31 = arith.constant 31 : index
    %c0_155 = arith.constant 0 : index
    %157 = vector.load %arg3[%c0_154, %c31, %c0_155] : memref<8x136x4xbf16, #tpu.memory_space<vmem>>, vector<1x104x4xbf16>
    %158 = vector.shape_cast %157 : vector<1x104x4xbf16> to vector<104x4xbf16>
    %c26_156 = arith.constant 26 : index
    %c0_157 = arith.constant 0 : index
    %c0_158 = arith.constant 0 : index
    %159 = vector.load %arg4[%c26_156, %c0_157, %c0_158] : memref<27x4x128xbf16, #tpu.memory_space<vmem>>, vector<1x4x128xbf16>
    %160 = vector.shape_cast %159 : vector<1x4x128xbf16> to vector<4x128xbf16>
    %cst_159 = arith.constant dense<0.000000e+00> : vector<104x128xf32>
    %161 = tpu.matmul %158, %160, %cst_159 {dimension_numbers = #tpu.dot_dimension_numbers<[1], [0], [0], [1], [0, 0, 1, 1], [], []>} : vector<104x4xbf16>, vector<4x128xbf16>, vector<104x128xf32> -> vector<104x128xf32>
    %162 = arith.addf %156, %161 : vector<104x128xf32>
    %c0_160 = arith.constant 0 : index
    %c0_161 = arith.constant 0 : index
    %163 = vector.load %arg5[%c0_160, %c0_161] : memref<1x128xf32, #tpu.memory_space<vmem>>, vector<1x128xf32>
    %164 = vector.broadcast %163 : vector<1x128xf32> to vector<104x128xf32>
    %165 = arith.addf %162, %164 : vector<104x128xf32>
    %c0_162 = arith.constant 0 : index
    %c0_163 = arith.constant 0 : index
    %c0_164 = arith.constant 0 : index
    %166 = vector.load %arg6[%c0_162, %c0_163, %c0_164] : memref<1x104x128xf32, #tpu.memory_space<vmem>>, vector<1x104x128xf32>
    %167 = vector.shape_cast %166 : vector<1x104x128xf32> to vector<104x128xf32>
    %168 = vector.shape_cast %165 : vector<104x128xf32> to vector<1x104x128xf32>
    tpu.vector_store %arg6[%c0_162, %c0_163, %c0_164], %168 {strides = array<i32>} : memref<1x104x128xf32, #tpu.memory_space<vmem>>, vector<1x104x128xf32>,
    return
  }
  func.func @transform_0(%arg0: i32, %arg1: i32, %arg2: i32) -> (i32, i32, i32) {
    %c0_i32 = arith.constant 0 : i32
    %c0_i32_0 = arith.constant 0 : i32
    %c0_i32_1 = arith.constant 0 : i32
    return %arg0, %c0_i32, %c0_i32_0 : i32, i32, i32
  }
  func.func @transform_1(%arg0: i32, %arg1: i32, %arg2: i32) -> (i32, i32, i32) {
    %c0_i32 = arith.constant 0 : i32
    %c0_i32_0 = arith.constant 0 : i32
    %c0_i32_1 = arith.constant 0 : i32
    return %c0_i32, %c0_i32_0, %arg1 : i32, i32, i32
  }
  func.func @transform_2(%arg0: i32, %arg1: i32, %arg2: i32) -> (i32, i32) {
    %c0_i32 = arith.constant 0 : i32
    %c0_i32_0 = arith.constant 0 : i32
    return %c0_i32, %arg1 : i32, i32
  }
  func.func @transform_3(%arg0: i32, %arg1: i32, %arg2: i32) -> (i32, i32, i32) {
    %c0_i32 = arith.constant 0 : i32
    return %arg0, %arg2, %arg1 : i32, i32, i32
  }
}

</mosaic_0001>

<llo_original>
// kernel: tpu_custom_call.1
$region0: #{tpu_custom_call.1}
  #allocation0 [shape = 'u32[]', space=smem, size = 0x4, offset = 0x4, fixed_abs, tag = 'smem constant byte address 0x4 - core index']
  #allocation1 [shape = 'u32[144,128]{1,0:T(1,128)}', space=vmem, size = 0x12000, scoped, tag = 'internal scratch']
  %s0 = inlined_call_operand.vmem [shape: bf16[16,136,4], index: 0, kind: input, shape index: {}]
  %s1 = inlined_call_operand.vmem [shape: bf16[27,4,128], index: 1, kind: input, shape index: {}]
  %s2 = inlined_call_operand.vmem [shape: f32[1,128], index: 2, kind: input, shape index: {}]
  %s3 = inlined_call_operand.hbm [shape: f32[2,104,128], index: 3, kind: output, shape index: {}]
  %s4 = sld [smem:[#allocation0]]
  $region45: #{tpu_custom_call.1} parent=0
    _
  %s6 = ssub.s32 1, %s4
  %s7 = scalar_select 0, %s6, %s4
  $region1: #{tpu_custom_call.1} parent=0
    #allocation2 [shape = 'u8[106496]{0}', space=vmem, size = 0x1a000, scoped, tag = 'output window, operand 0']
    #allocation3 [shape = 's32[2]{0}', space=sflag, size = 0x8, scoped, tag = 'scoped memory for tpu_custom_call.1']
    %8 = vsyncpa [#allocation3], 0
    %s9 = scalar_lea.sflag [#allocation3], 1
    %10 = vsyncpa %s9, 0
    loop: start=0, step=1, limit=4
    $region2: #{tpu_custom_call.1} parent=1 // loop_pre_header
      _
    $region3: #{tpu_custom_call.1} parent=1 // loop_header
      %s12 = sphi 0, %s16
      %p13 = scmp.ge.s32.totalorder %s12, 4
      %s19 = sphi 0, %s38
      %s20 = sphi 0, %s34
      %s21 = sphi 0, %s30
      %s22 = sphi 0, %s19
      %s23 = sphi 0, %s20
      %s24 = sphi 0, %s21
      %s25 = sphi 0, %s22
      %s26 = sphi 0, %s23
      %s27 = sphi 0, %s24
      %s41 = sphi 0, %s43
      %s44 = sphi 0, %s41
      %s45 = sphi 0, %s44
      %s61 = sphi 0, %s45
      %s67 = sphi 0, %s69
      %s70 = sphi 0, %s67
      %s71 = sphi 0, %s70
      %s87 = sphi 0, %s71
      %s93 = sphi 0, %s95
      %s96 = sphi 0, %s93
      %s97 = sphi 0, %s96
      %s113 = sphi 0, %s97
      %s123 = sphi 0, %s125
      %s126 = sphi 0, %s123
      %s127 = sphi 0, %s126
      %s143 = sphi 0, %s127
    $region4: #{tpu_custom_call.1} parent=1 // loop_header_branch
      %15 = sbr.rel (%p13) target = $region8
    $region5: #{tpu_custom_call.1} parent=1 // loop_body
      %s17 = ssub.s32 %s12, 1
      %s18 = ssub.s32 %s12, 2
      %s28 = sadd.s32 1, %s21
      %p29 = scmp.ge.s32.totalorder %s28, 1
      %s30 = scalar_select %p29, 0, %s28
      %s31 = sadd.s32 1, %s20
      %s32 = scalar_select %p29, %s31, %s20
      %p33 = scmp.ge.s32.totalorder %s32, 1
      %s34 = scalar_select %p33, 0, %s32
      %s35 = sadd.s32 1, %s19
      %s36 = scalar_select %p33, %s35, %s19
      %p37 = scmp.ge.s32.totalorder %s36, 2
      %s38 = scalar_select %p37, 0, %s36
      %s39 = ssub.s32 %s19, %s38
      %p40 = scmp.eq.s32.totalorder %s39, 0
      %s42 = sadd.s32 %s41, 1
      %s43 = scalar_select %p40, %s41, %s42
      %p46 = pneg %p40
      %p47 = scmp.eq.s32.totalorder %s12, 1
      %p48 = por %p46, %p47
      %p49 = scmp.ne.s32.totalorder %s41, %s44
      %p50 = scmp.eq.s32.totalorder %s12, 0
      %p51 = por %p49, %p50
      %p52 = scmp.ne.s32.totalorder %s41, %s44
      %p53 = scmp.eq.s32.totalorder %s17, 1
      %p54 = por %p52, %p53
      %p55 = scmp.ne.s32.totalorder %s44, %s45
      %p56 = scmp.eq.s32.totalorder %s17, 0
      %p57 = por %p55, %p56
      %p58 = scmp.ne.s32.totalorder %s44, %s45
      %p59 = scmp.eq.s32.totalorder %s18, 1
      %p60 = por %p58, %p59
      %p62 = scmp.ne.s32.totalorder %s45, %s61
      %p63 = scmp.eq.s32.totalorder %s18, 0
      %p64 = por %p62, %p63
      %s65 = ssub.s32 %s20, %s34
      %p66 = scmp.eq.s32.totalorder %s65, 0
      %s68 = sadd.s32 %s67, 1
      %s69 = scalar_select %p66, %s67, %s68
      %p72 = pneg %p66
      %p73 = scmp.eq.s32.totalorder %s12, 1
      %p74 = por %p72, %p73
      %p75 = scmp.ne.s32.totalorder %s67, %s70
      %p76 = scmp.eq.s32.totalorder %s12, 0
      %p77 = por %p75, %p76
      %p78 = scmp.ne.s32.totalorder %s67, %s70
      %p79 = scmp.eq.s32.totalorder %s17, 1
      %p80 = por %p78, %p79
      %p81 = scmp.ne.s32.totalorder %s70, %s71
      %p82 = scmp.eq.s32.totalorder %s17, 0
      %p83 = por %p81, %p82
      %p84 = scmp.ne.s32.totalorder %s70, %s71
      %p85 = scmp.eq.s32.totalorder %s18, 1
      %p86 = por %p84, %p85
      %p88 = scmp.ne.s32.totalorder %s71, %s87
      %p89 = scmp.eq.s32.totalorder %s18, 0
      %p90 = por %p88, %p89
      %s91 = ssub.s32 %s20, %s34
      %p92 = scmp.eq.s32.totalorder %s91, 0
      %s94 = sadd.s32 %s93, 1
      %s95 = scalar_select %p92, %s93, %s94
      %p98 = pneg %p92
      %p99 = scmp.eq.s32.totalorder %s12, 1
      %p100 = por %p98, %p99
      %p101 = scmp.ne.s32.totalorder %s93, %s96
      %p102 = scmp.eq.s32.totalorder %s12, 0
      %p103 = por %p101, %p102
      %p104 = scmp.ne.s32.totalorder %s93, %s96
      %p105 = scmp.eq.s32.totalorder %s17, 1
      %p106 = por %p104, %p105
      %p107 = scmp.ne.s32.totalorder %s96, %s97
      %p108 = scmp.eq.s32.totalorder %s17, 0
      %p109 = por %p107, %p108
      %p110 = scmp.ne.s32.totalorder %s96, %s97
      %p111 = scmp.eq.s32.totalorder %s18, 1
      %p112 = por %p110, %p111
      %p114 = scmp.ne.s32.totalorder %s97, %s113
      %p115 = scmp.eq.s32.totalorder %s18, 0
      %p116 = por %p114, %p115
      %s117 = ssub.s32 %s19, %s38
      %s118 = ssub.s32 %s21, %s30
      %s119 = sor.u32 %s117, %s118
      %s120 = ssub.s32 %s20, %s34
      %s121 = sor.u32 %s119, %s120
      %p122 = scmp.eq.s32.totalorder %s121, 0
      %s124 = sadd.s32 %s123, 1
      %s125 = scalar_select %p122, %s123, %s124
      %p128 = pneg %p122
      %p129 = scmp.eq.s32.totalorder %s12, 1
      %p130 = por %p128, %p129
      %p131 = scmp.ne.s32.totalorder %s123, %s126
      %p132 = scmp.eq.s32.totalorder %s12, 0
      %p133 = por %p131, %p132
      %p134 = scmp.ne.s32.totalorder %s123, %s126
      %p135 = scmp.eq.s32.totalorder %s17, 1
      %p136 = por %p134, %p135
      %p137 = scmp.ne.s32.totalorder %s126, %s127
      %p138 = scmp.eq.s32.totalorder %s17, 0
      %p139 = por %p137, %p138
      %p140 = scmp.ne.s32.totalorder %s126, %s127
      %p141 = scmp.eq.s32.totalorder %s18, 1
      %p142 = por %p140, %p141
      %p144 = scmp.ne.s32.totalorder %s127, %s143
      %p145 = scmp.eq.s32.totalorder %s18, 0
      %p146 = por %p144, %p145
      %p147 = scmp.le.s32.totalorder 1, %s12
      %p148 = scmp.lt.s32.totalorder %s12, 3
      %p149 = pnand %p147, %p148
      %p150 = pneg %p149
      // Predicated region
      $region9: #{tpu_custom_call.1} parent=5 // pred_check
        _
      $region10: #{tpu_custom_call.1} parent=5 // pred_check_branch
        %152 = sbr.rel (%p149) target = $region12
      $region11: #{tpu_custom_call.1} parent=5 // pred_region
        %s153 = ssub.s32 %s12, 1
        // Predicated region
        $region13: #{tpu_custom_call.1} parent=11 // pred_check
          %p154 = pneg %p83
        $region14: #{tpu_custom_call.1} parent=11 // pred_check_branch
          %156 = sbr.rel (%p154) target = $region16
        $region15: #{tpu_custom_call.1} parent=11 // pred_region
          %p157 = scmp.lt.s32.totalorder %s23, 0
          %s158 = scalar_select %p157, %s23, 0
          %s159 = smul.addr %s158, 2
          %s160 = scalar_lea.vmem %s1, %s159
        $region16: #{tpu_custom_call.1} parent=11 // pred_fallthru
          _
        // Predicated region
        $region17: #{tpu_custom_call.1} parent=11 // pred_check
          %p161 = pneg %p109
        $region18: #{tpu_custom_call.1} parent=11 // pred_check_branch
          %163 = sbr.rel (%p161) target = $region20
        $region19: #{tpu_custom_call.1} parent=11 // pred_region
          %p164 = scmp.lt.s32.totalorder %s23, 0
          %s165 = scalar_select %p164, %s23, 0
          %s166 = scalar_lea.vmem %s2, %s165
        $region20: #{tpu_custom_call.1} parent=11 // pred_fallthru
          _
      $region12: #{tpu_custom_call.1} parent=5 // pred_fallthru
        _
      %p167 = scmp.lt.s32.totalorder %s12, 2
      // Predicated region
      $region21: #{tpu_custom_call.1} parent=5 // pred_check
        %p168 = pneg %p167
      $region22: #{tpu_custom_call.1} parent=5 // pred_check_branch
        %170 = sbr.rel (%p168) target = $region24
      $region23: #{tpu_custom_call.1} parent=5 // pred_region
        // Predicated region
        $region25: #{tpu_custom_call.1} parent=23 // pred_check
          %p171 = pneg %p51
        $region26: #{tpu_custom_call.1} parent=23 // pred_check_branch
          %173 = sbr.rel (%p171) target = $region28
        $region27: #{tpu_custom_call.1} parent=23 // pred_region
          %s174 = smul.u32 8, %s19
          %p175 = scmp.lt.s32.totalorder %s174, 15
          %s176 = scalar_select %p175, %s174, 15
          %s177 = smul.addr %s176, 17
          %s178 = smul.addr %s177, 4
          %s179 = scalar_lea.vmem %s0, %s178
          %s180 = smul.u32 8, %s19
        $region28: #{tpu_custom_call.1} parent=23 // pred_fallthru
          _
      $region24: #{tpu_custom_call.1} parent=5 // pred_fallthru
        _
      %p181 = scmp.le.s32.totalorder 1, %s12
      %p182 = scmp.lt.s32.totalorder %s12, 3
      %p183 = pnand %p181, %p182
      %p184 = pneg %p183
      // Predicated region
      $region29: #{tpu_custom_call.1} parent=5 // pred_check
        _
      $region30: #{tpu_custom_call.1} parent=5 // pred_check_branch
        %186 = sbr.rel (%p183) target = $region32
      $region31: #{tpu_custom_call.1} parent=5 // pred_region
        %s187 = ssub.s32 %s12, 1
        %s188 = smul.u32 8, %s22
        %p189 = scmp.lt.s32.totalorder %s188, 15
        %s190 = scalar_select %p189, %s188, 15
        %s191 = smul.addr %s190, 17
        %s192 = smul.addr %s191, 4
        %s193 = scalar_lea.vmem %s0, %s192
        %p194 = pneg %p57
        %p195 = pneg %p54
        %p196 = scmp.lt.s32.totalorder %s23, 0
        %s197 = scalar_select %p196, %s23, 0
        %s198 = smul.addr %s197, 2
        %s199 = scalar_lea.vmem %s1, %s198
        %p200 = pneg %p83
        %p201 = pneg %p80
        %p202 = scmp.lt.s32.totalorder %s23, 0
        %s203 = scalar_select %p202, %s23, 0
        %s204 = scalar_lea.vmem %s2, %s203
        %p205 = pneg %p109
        %p206 = pneg %p106
        %p207 = pneg %p139
        %p208 = pneg %p136
        %s209 = sand.u32 %s126, 1
        %s210 = scalar_lea.sflag [#allocation3], %s209
        %s211 = sand.u32 %s126, 1
        %s212 = smul.addr %s211, 104
        %s213 = scalar_lea.vmem [#allocation2], %s212
        %s214 = smul.u32 8, %s22
        %p215 = scmp.lt.s32.totalorder %s214, 15
        %s216 = scalar_select %p215, %s214, 15
        %s217 = smul.addr %s216, 17
        %s218 = smul.addr %s217, 4
        %s219 = scalar_lea.vmem %s0, %s218
        %s220 = smul.u32 8, %s22
        %p221 = scmp.lt.s32.totalorder %s23, 0
        %s222 = scalar_select %p221, %s23, 0
        %s223 = smul.addr %s222, 2
        %s224 = scalar_lea.vmem %s1, %s223
        %p225 = scmp.lt.s32.totalorder %s23, 0
        %s226 = scalar_select %p225, %s23, 0
        %s227 = scalar_lea.vmem %s2, %s226
        %s228 = smul.u32 13, %s24
        %v230 = vld [vmem:[%s219] sm:$0xf]
        %v231 = vld [vmem:[%s219 + $0x4] sm:$0xf]
        %v232 = vld [vmem:[%s219 + $0x8] sm:$0xf]
        %v233 = vld [vmem:[%s219 + $0xc] sm:$0xf]
        %v234 = vld [vmem:[%s219 + $0x10] sm:$0xf]
        %v235 = vld [vmem:[%s219 + $0x14] sm:$0xf]
        %v236 = vld [vmem:[%s219 + $0x18] sm:$0xf]
        %v237 = vld [vmem:[%s219 + $0x1c] sm:$0xf]
        %v238 = vld [vmem:[%s219 + $0x20] sm:$0xf]
        %v239 = vld [vmem:[%s219 + $0x24] sm:$0xf]
        %v240 = vld [vmem:[%s219 + $0x28] sm:$0xf]
        %v241 = vld [vmem:[%s219 + $0x2c] sm:$0xf]
        %v242 = vld [vmem:[%s219 + $0x30] sm:$0xf]
        %v243 = vld [vmem:[%s224] sm:$0x3]
        %s244 = scalar_lea.vmem %s219, 68
        %v245 = vld [vmem:[%s244] sm:$0xf]
        %v246 = vld [vmem:[%s244 + $0x4] sm:$0xf]
        %v247 = vld [vmem:[%s244 + $0x8] sm:$0xf]
        %v248 = vld [vmem:[%s244 + $0xc] sm:$0xf]
        %v249 = vld [vmem:[%s244 + $0x10] sm:$0xf]
        %v250 = vld [vmem:[%s244 + $0x14] sm:$0xf]
        %v251 = vld [vmem:[%s244 + $0x18] sm:$0xf]
        %v252 = vld [vmem:[%s244 + $0x1c] sm:$0xf]
        %v253 = vld [vmem:[%s244 + $0x20] sm:$0xf]
        %v254 = vld [vmem:[%s244 + $0x24] sm:$0xf]
        %v255 = vld [vmem:[%s244 + $0x28] sm:$0xf]
        %v256 = vld [vmem:[%s244 + $0x2c] sm:$0xf]
        %v257 = vld [vmem:[%s244 + $0x30] sm:$0xf]
        %s258 = scalar_lea.vmem %s224, 2
        %v259 = vld [vmem:[%s258] sm:$0x3]
        %v273 = vunpack.c.l.b16 %v245
        %v274 = vunpack.c.l.b16 %v246
        %v275 = vunpack.c.l.b16 %v247
        %v276 = vunpack.c.l.b16 %v248
        %v277 = vunpack.c.l.b16 %v249
        %v278 = vunpack.c.l.b16 %v250
        %v279 = vunpack.c.l.b16 %v251
        %v280 = vunpack.c.l.b16 %v252
        %v281 = vunpack.c.l.b16 %v253
        %v282 = vunpack.c.l.b16 %v254
        %v283 = vunpack.c.l.b16 %v255
        %v284 = vunpack.c.l.b16 %v256
        %v285 = vunpack.c.l.b16 %v257
        %v286 = vpack.c.b16 %v274, %v273
        %v287 = vpack.c.b16 %v276, %v275
        %v288 = vpack.c.b16 %v278, %v277
        %v289 = vpack.c.b16 %v280, %v279
        %v290 = vpack.c.b16 %v282, %v281
        %v291 = vpack.c.b16 %v284, %v283
        %v292 = vpack.c.b16 %v285, %v285
        %vm293 = vcmask 31744
        %v295 = vsel %vm293, %v286, 0
        %v298 = vsel %vm293, %v287, 0
        %v301 = vsel %vm293, %v288, 0
        %v304 = vsel %vm293, %v289, 0
        %v307 = vsel %vm293, %v290, 0
        %v310 = vsel %vm293, %v291, 0
        %v313 = vsel %vm293, %v292, 0
        %vm315 = vcmask 1041408
        %v317 = vsel %vm315, %v259, 0
        %319 = vmatprep.subr.bf16.mxu0 0
        %320 = vmatpush1.bf16.msra.mxu0 0
        %321 = vmatprep.subr.bf16.mxu0 0
        %322 = vmatpush1.bf16.msra.mxu0 0
        %323 = vmatprep.subr.bf16.mxu0 0
        %324 = vmatpush1.bf16.msra.mxu0 0
        %325 = vmatprep.subr.bf16.mxu0 0
        %326 = vmatpush1.bf16.msra.mxu0 0
        %327 = vmatprep.subr.bf16.mxu0 0
        %328 = vmatpush1.bf16.msra.mxu0 0
        %329 = vmatprep.subr.bf16.mxu0 0
        %330 = vmatpush1.bf16.msra.mxu0 0
        %331 = vmatprep.subr.bf16.mxu0 0
        %332 = vmatpush1.bf16.msra.mxu0 0
        %333 = vmatprep.subr.bf16.mxu0 0
        %334 = vmatpush1.bf16.msra.mxu0 %v317
        %335 = vmatprep.subr.bf16.mxu0 0
        %336 = vmatpush2.bf16.msra.mxu0 0
        %337 = vmatprep.subr.bf16.mxu0 0
        %338 = vmatpush2.bf16.msra.mxu0 0
        %339 = vmatprep.subr.bf16.mxu0 0
        %340 = vmatpush2.bf16.msra.mxu0 0
        %341 = vmatprep.subr.bf16.mxu0 0
        %342 = vmatpush2.bf16.msra.mxu0 0
        %343 = vmatprep.subr.bf16.mxu0 0
        %344 = vmatpush2.bf16.msra.mxu0 0
        %345 = vmatprep.subr.bf16.mxu0 0
        %346 = vmatpush2.bf16.msra.mxu0 0
        %347 = vmatprep.subr.bf16.mxu0 0
        %348 = vmatpush2.bf16.msra.mxu0 0
        %349 = vmatprep.subr.bf16.mxu0 0
        %350 = vmatpush2.bf16.msra.mxu0 0
        %351 = vmatprep.mubr.bf16.mxu0 0
        %352 = vmatmul.mubr.bf16.gmra.mxu0 %v295
        %v353 = vpop.f32.mrf.mxu0
        %v354 = vadd.f32 0.0, %v353
        %v355 = vpop.f32.mrf.mxu0
        %v356 = vpop.f32.mrf.mxu0
        %v357 = vadd.f32 0.0, %v356
        %v358 = vpop.f32.mrf.mxu0
        %359 = vmatprep.mubr.bf16.mxu0 0
        %360 = vmatmul.mubr.bf16.gmra.mxu0 %v298
        %v361 = vpop.f32.mrf.mxu0
        %v362 = vadd.f32 0.0, %v361
        %v363 = vpop.f32.mrf.mxu0
        %v364 = vpop.f32.mrf.mxu0
        %v365 = vadd.f32 0.0, %v364
        %v366 = vpop.f32.mrf.mxu0
        %367 = vmatprep.mubr.bf16.mxu0 0
        %368 = vmatmul.mubr.bf16.gmra.mxu0 %v301
        %v369 = vpop.f32.mrf.mxu0
        %v370 = vadd.f32 0.0, %v369
        %v371 = vpop.f32.mrf.mxu0
        %v372 = vpop.f32.mrf.mxu0
        %v373 = vadd.f32 0.0, %v372
        %v374 = vpop.f32.mrf.mxu0
        %375 = vmatprep.mubr.bf16.mxu0 0
        %376 = vmatmul.mubr.bf16.gmra.mxu0 %v304
        %v377 = vpop.f32.mrf.mxu0
        %v378 = vadd.f32 0.0, %v377
        %v379 = vpop.f32.mrf.mxu0
        %v380 = vpop.f32.mrf.mxu0
        %v381 = vadd.f32 0.0, %v380
        %v382 = vpop.f32.mrf.mxu0
        %383 = vmatprep.mubr.bf16.mxu0 0
        %384 = vmatmul.mubr.bf16.gmra.mxu0 %v307
        %v385 = vpop.f32.mrf.mxu0
        %v386 = vadd.f32 0.0, %v385
        %v387 = vpop.f32.mrf.mxu0
        %v388 = vpop.f32.mrf.mxu0
        %v389 = vadd.f32 0.0, %v388
        %v390 = vpop.f32.mrf.mxu0
        %391 = vmatprep.mubr.bf16.mxu0 0
        %392 = vmatmul.mubr.bf16.gmra.mxu0 %v310
        %v393 = vpop.f32.mrf.mxu0
        %v394 = vadd.f32 0.0, %v393
        %v395 = vpop.f32.mrf.mxu0
        %v396 = vpop.f32.mrf.mxu0
        %v397 = vadd.f32 0.0, %v396
        %v398 = vpop.f32.mrf.mxu0
        %399 = vmatprep.mubr.bf16.mxu0 0
        %400 = vmatmul.mubr.bf16.gmra.mxu0 %v313
        %v401 = vpop.f32.mrf.mxu0
        %v402 = vadd.f32 0.0, %v401
        %v403 = vpop.f32.mrf.mxu0
        %v404 = vpop.f32.mrf.mxu0
        %v405 = vpop.f32.mrf.mxu0
        %406 = vdwg.mxu0
        %v420 = vunpack.c.l.b16 %v230
        %v421 = vunpack.c.l.b16 %v231
        %v422 = vunpack.c.l.b16 %v232
        %v423 = vunpack.c.l.b16 %v233
        %v424 = vunpack.c.l.b16 %v234
        %v425 = vunpack.c.l.b16 %v235
        %v426 = vunpack.c.l.b16 %v236
        %v427 = vunpack.c.l.b16 %v237
        %v428 = vunpack.c.l.b16 %v238
        %v429 = vunpack.c.l.b16 %v239
        %v430 = vunpack.c.l.b16 %v240
        %v431 = vunpack.c.l.b16 %v241
        %v432 = vunpack.c.l.b16 %v242
        %v433 = vpack.c.b16 %v421, %v420
        %v434 = vpack.c.b16 %v423, %v422
        %v435 = vpack.c.b16 %v425, %v424
        %v436 = vpack.c.b16 %v427, %v426
        %v437 = vpack.c.b16 %v429, %v428
        %v438 = vpack.c.b16 %v431, %v430
        %v439 = vpack.c.b16 %v432, %v432
        %v441 = vsel %vm293, %v433, 0
        %v444 = vsel %vm293, %v434, 0
        %v447 = vsel %vm293, %v435, 0
        %v450 = vsel %vm293, %v436, 0
        %v453 = vsel %vm293, %v437, 0
        %v456 = vsel %vm293, %v438, 0
        %v459 = vsel %vm293, %v439, 0
        %v462 = vsel %vm315, %v243, 0
        %464 = vmatprep.subr.bf16.mxu0 0
        %465 = vmatpush1.bf16.msra.mxu0 0
        %466 = vmatprep.subr.bf16.mxu0 0
        %467 = vmatpush1.bf16.msra.mxu0 0
        %468 = vmatprep.subr.bf16.mxu0 0
        %469 = vmatpush1.bf16.msra.mxu0 0
        %470 = vmatprep.subr.bf16.mxu0 0
        %471 = vmatpush1.bf16.msra.mxu0 0
        %472 = vmatprep.subr.bf16.mxu0 0
        %473 = vmatpush1.bf16.msra.mxu0 0
        %474 = vmatprep.subr.bf16.mxu0 0
        %475 = vmatpush1.bf16.msra.mxu0 0
        %476 = vmatprep.subr.bf16.mxu0 0
        %477 = vmatpush1.bf16.msra.mxu0 0
        %478 = vmatprep.subr.bf16.mxu0 0
        %479 = vmatpush1.bf16.msra.mxu0 %v462
        %480 = vmatprep.subr.bf16.mxu0 0
        %481 = vmatpush2.bf16.msra.mxu0 0
        %482 = vmatprep.subr.bf16.mxu0 0
        %483 = vmatpush2.bf16.msra.mxu0 0
        %484 = vmatprep.subr.bf16.mxu0 0
        %485 = vmatpush2.bf16.msra.mxu0 0
        %486 = vmatprep.subr.bf16.mxu0 0
        %487 = vmatpush2.bf16.msra.mxu0 0
        %488 = vmatprep.subr.bf16.mxu0 0
        %489 = vmatpush2.bf16.msra.mxu0 0
        %490 = vmatprep.subr.bf16.mxu0 0
        %491 = vmatpush2.bf16.msra.mxu0 0
        %492 = vmatprep.subr.bf16.mxu0 0
        %493 = vmatpush2.bf16.msra.mxu0 0
        %494 = vmatprep.subr.bf16.mxu0 0
        %495 = vmatpush2.bf16.msra.mxu0 0
        %496 = vmatprep.mubr.bf16.mxu0 0
        %497 = vmatmul.mubr.bf16.gmra.mxu0 %v441
        %v498 = vpop.f32.mrf.mxu0
        %v499 = vadd.f32 %v354, %v498
        %v500 = vpop.f32.mrf.mxu0
        %v501 = vpop.f32.mrf.mxu0
        %v502 = vadd.f32 %v357, %v501
        %v503 = vpop.f32.mrf.mxu0
        %504 = vmatprep.mubr.bf16.mxu0 0
        %505 = vmatmul.mubr.bf16.gmra.mxu0 %v444
        %v506 = vpop.f32.mrf.mxu0
        %v507 = vadd.f32 %v362, %v506
        %v508 = vpop.f32.mrf.mxu0
        %v509 = vpop.f32.mrf.mxu0
        %v510 = vadd.f32 %v365, %v509
        %v511 = vpop.f32.mrf.mxu0
        %512 = vmatprep.mubr.bf16.mxu0 0
        %513 = vmatmul.mubr.bf16.gmra.mxu0 %v447
        %v514 = vpop.f32.mrf.mxu0
        %v515 = vadd.f32 %v370, %v514
        %v516 = vpop.f32.mrf.mxu0
        %v517 = vpop.f32.mrf.mxu0
        %v518 = vadd.f32 %v373, %v517
        %v519 = vpop.f32.mrf.mxu0
        %520 = vmatprep.mubr.bf16.mxu0 0
        %521 = vmatmul.mubr.bf16.gmra.mxu0 %v450
        %v522 = vpop.f32.mrf.mxu0
        %v523 = vadd.f32 %v378, %v522
        %v524 = vpop.f32.mrf.mxu0
        %v525 = vpop.f32.mrf.mxu0
        %v526 = vadd.f32 %v381, %v525
        %v527 = vpop.f32.mrf.mxu0
        %528 = vmatprep.mubr.bf16.mxu0 0
        %529 = vmatmul.mubr.bf16.gmra.mxu0 %v453
        %v530 = vpop.f32.mrf.mxu0
        %v531 = vadd.f32 %v386, %v530
        %v532 = vpop.f32.mrf.mxu0
        %v533 = vpop.f32.mrf.mxu0
        %v534 = vadd.f32 %v389, %v533
        %v535 = vpop.f32.mrf.mxu0
        %536 = vmatprep.mubr.bf16.mxu0 0
        %537 = vmatmul.mubr.bf16.gmra.mxu0 %v456
        %v538 = vpop.f32.mrf.mxu0
        %v539 = vadd.f32 %v394, %v538
        %v540 = vpop.f32.mrf.mxu0
        %v541 = vpop.f32.mrf.mxu0
        %v542 = vadd.f32 %v397, %v541
        %v543 = vpop.f32.mrf.mxu0
        %544 = vmatprep.mubr.bf16.mxu0 0
        %545 = vmatmul.mubr.bf16.gmra.mxu0 %v459
        %v546 = vpop.f32.mrf.mxu0
        %v547 = vadd.f32 %v402, %v546
        %v548 = vpop.f32.mrf.mxu0
        %v549 = vpop.f32.mrf.mxu0
        %v550 = vpop.f32.mrf.mxu0
        %551 = vdwg.mxu0
        %v552 = vld [vmem:[%s219] sm:$0xf]
        %v553 = vld [vmem:[%s219 + $0x4] sm:$0xf]
        %v554 = vld [vmem:[%s219 + $0x8] sm:$0xf]
        %v555 = vld [vmem:[%s219 + $0xc] sm:$0xf]
        %v556 = vld [vmem:[%s219 + $0x10] sm:$0xf]
        %v557 = vld [vmem:[%s219 + $0x14] sm:$0xf]
        %v558 = vld [vmem:[%s219 + $0x18] sm:$0xf]
        %v559 = vld [vmem:[%s219 + $0x1c] sm:$0xf]
        %v560 = vld [vmem:[%s219 + $0x20] sm:$0xf]
        %v561 = vld [vmem:[%s219 + $0x24] sm:$0xf]
        %v562 = vld [vmem:[%s219 + $0x28] sm:$0xf]
        %v563 = vld [vmem:[%s219 + $0x2c] sm:$0xf]
        %v564 = vld [vmem:[%s219 + $0x30] sm:$0xf]
        %v565 = vld [vmem:[%s219 + $0x34] sm:$0x1]
        %s566 = scalar_lea.vmem %s224, 4
        %v567 = vld [vmem:[%s566] sm:$0x3]
        %v582 = vunpack.c.l.b16 %v552
        %v583 = vunpack.c.l.b16 %v553
        %v584 = vunpack.c.l.b16 %v554
        %v585 = vunpack.c.l.b16 %v555
        %v586 = vunpack.c.l.b16 %v556
        %v587 = vunpack.c.l.b16 %v557
        %v588 = vunpack.c.l.b16 %v558
        %v589 = vunpack.c.l.b16 %v559
        %v590 = vunpack.c.l.b16 %v560
        %v591 = vunpack.c.l.b16 %v561
        %v592 = vunpack.c.l.b16 %v562
        %v593 = vunpack.c.l.b16 %v563
        %v594 = vunpack.c.l.b16 %v564
        %v595 = vunpack.c.l.b16 %v565
        %v596 = vpack.c.b16 %v583, %v582
        %v597 = vpack.c.b16 %v585, %v584
        %v598 = vpack.c.b16 %v587, %v586
        %v599 = vpack.c.b16 %v589, %v588
        %v600 = vpack.c.b16 %v591, %v590
        %v601 = vpack.c.b16 %v593, %v592
        %v602 = vpack.c.b16 %v595, %v594
        %vm603 = vsmask.f32 7424
        %v605 = vshrl.u32 %v596, 16
        %v607 = vshll.u32 %v596, 16
        %v609 = vrot.slane %v607, 1
        %v610 = vor.u32 %v605, %v609
        %v612 = vshll.u32 %v597, 16
        %v614 = vrot.slane %v612, 1
        %v615 = vsel %vm603, %v610, %v614
        %v616 = vshrl.u32 %v597, 16
        %v618 = vor.u32 %v616, %v614
        %v620 = vshll.u32 %v598, 16
        %v622 = vrot.slane %v620, 1
        %v623 = vsel %vm603, %v618, %v622
        %v624 = vshrl.u32 %v598, 16
        %v626 = vor.u32 %v624, %v622
        %v628 = vshll.u32 %v599, 16
        %v630 = vrot.slane %v628, 1
        %v631 = vsel %vm603, %v626, %v630
        %v632 = vshrl.u32 %v599, 16
        %v634 = vor.u32 %v632, %v630
        %v636 = vshll.u32 %v600, 16
        %v638 = vrot.slane %v636, 1
        %v639 = vsel %vm603, %v634, %v638
        %v640 = vshrl.u32 %v600, 16
        %v642 = vor.u32 %v640, %v638
        %v644 = vshll.u32 %v601, 16
        %v646 = vrot.slane %v644, 1
        %v647 = vsel %vm603, %v642, %v646
        %v648 = vshrl.u32 %v601, 16
        %v650 = vor.u32 %v648, %v646
        %v652 = vshll.u32 %v602, 16
        %v654 = vrot.slane %v652, 1
        %v655 = vsel %vm603, %v650, %v654
        %v656 = vshrl.u32 %v602, 16
        %v658 = vor.u32 %v656, %v654
        %v660 = vsel %vm293, %v615, 0
        %v663 = vsel %vm293, %v623, 0
        %v666 = vsel %vm293, %v631, 0
        %v669 = vsel %vm293, %v639, 0
        %v672 = vsel %vm293, %v647, 0
        %v675 = vsel %vm293, %v655, 0
        %v678 = vsel %vm293, %v658, 0
        %v681 = vsel %vm315, %v567, 0
        %683 = vmatprep.subr.bf16.mxu0 0
        %684 = vmatpush1.bf16.msra.mxu0 0
        %685 = vmatprep.subr.bf16.mxu0 0
        %686 = vmatpush1.bf16.msra.mxu0 0
        %687 = vmatprep.subr.bf16.mxu0 0
        %688 = vmatpush1.bf16.msra.mxu0 0
        %689 = vmatprep.subr.bf16.mxu0 0
        %690 = vmatpush1.bf16.msra.mxu0 0
        %691 = vmatprep.subr.bf16.mxu0 0
        %692 = vmatpush1.bf16.msra.mxu0 0
        %693 = vmatprep.subr.bf16.mxu0 0
        %694 = vmatpush1.bf16.msra.mxu0 0
        %695 = vmatprep.subr.bf16.mxu0 0
        %696 = vmatpush1.bf16.msra.mxu0 0
        %697 = vmatprep.subr.bf16.mxu0 0
        %698 = vmatpush1.bf16.msra.mxu0 %v681
        %699 = vmatprep.subr.bf16.mxu0 0
        %700 = vmatpush2.bf16.msra.mxu0 0
        %701 = vmatprep.subr.bf16.mxu0 0
        %702 = vmatpush2.bf16.msra.mxu0 0
        %703 = vmatprep.subr.bf16.mxu0 0
        %704 = vmatpush2.bf16.msra.mxu0 0
        %705 = vmatprep.subr.bf16.mxu0 0
        %706 = vmatpush2.bf16.msra.mxu0 0
        %707 = vmatprep.subr.bf16.mxu0 0
        %708 = vmatpush2.bf16.msra.mxu0 0
        %709 = vmatprep.subr.bf16.mxu0 0
        %710 = vmatpush2.bf16.msra.mxu0 0
        %711 = vmatprep.subr.bf16.mxu0 0
        %712 = vmatpush2.bf16.msra.mxu0 0
        %713 = vmatprep.subr.bf16.mxu0 0
        %714 = vmatpush2.bf16.msra.mxu0 0
        %715 = vmatprep.mubr.bf16.mxu0 0
        %716 = vmatmul.mubr.bf16.gmra.mxu0 %v660
        %v717 = vpop.f32.mrf.mxu0
        %v718 = vadd.f32 0.0, %v717
        %v719 = vpop.f32.mrf.mxu0
        %v720 = vpop.f32.mrf.mxu0
        %v721 = vadd.f32 0.0, %v720
        %v722 = vpop.f32.mrf.mxu0
        %723 = vmatprep.mubr.bf16.mxu0 0
        %724 = vmatmul.mubr.bf16.gmra.mxu0 %v663
        %v725 = vpop.f32.mrf.mxu0
        %v726 = vadd.f32 0.0, %v725
        %v727 = vpop.f32.mrf.mxu0
        %v728 = vpop.f32.mrf.mxu0
        %v729 = vadd.f32 0.0, %v728
        %v730 = vpop.f32.mrf.mxu0
        %731 = vmatprep.mubr.bf16.mxu0 0
        %732 = vmatmul.mubr.bf16.gmra.mxu0 %v666
        %v733 = vpop.f32.mrf.mxu0
        %v734 = vadd.f32 0.0, %v733
        %v735 = vpop.f32.mrf.mxu0
        %v736 = vpop.f32.mrf.mxu0
        %v737 = vadd.f32 0.0, %v736
        %v738 = vpop.f32.mrf.mxu0
        %739 = vmatprep.mubr.bf16.mxu0 0
        %740 = vmatmul.mubr.bf16.gmra.mxu0 %v669
        %v741 = vpop.f32.mrf.mxu0
        %v742 = vadd.f32 0.0, %v741
        %v743 = vpop.f32.mrf.mxu0
        %v744 = vpop.f32.mrf.mxu0
        %v745 = vadd.f32 0.0, %v744
        %v746 = vpop.f32.mrf.mxu0
        %747 = vmatprep.mubr.bf16.mxu0 0
        %748 = vmatmul.mubr.bf16.gmra.mxu0 %v672
        %v749 = vpop.f32.mrf.mxu0
        %v750 = vadd.f32 0.0, %v749
        %v751 = vpop.f32.mrf.mxu0
        %v752 = vpop.f32.mrf.mxu0
        %v753 = vadd.f32 0.0, %v752
        %v754 = vpop.f32.mrf.mxu0
        %755 = vmatprep.mubr.bf16.mxu0 0
        %756 = vmatmul.mubr.bf16.gmra.mxu0 %v675
        %v757 = vpop.f32.mrf.mxu0
        %v758 = vadd.f32 0.0, %v757
        %v759 = vpop.f32.mrf.mxu0
        %v760 = vpop.f32.mrf.mxu0
        %v761 = vadd.f32 0.0, %v760
        %v762 = vpop.f32.mrf.mxu0
        %763 = vmatprep.mubr.bf16.mxu0 0
        %764 = vmatmul.mubr.bf16.gmra.mxu0 %v678
        %v765 = vpop.f32.mrf.mxu0
        %v766 = vadd.f32 0.0, %v765
        %v767 = vpop.f32.mrf.mxu0
        %v768 = vpop.f32.mrf.mxu0
        %v769 = vpop.f32.mrf.mxu0
        %770 = vdwg.mxu0
        %v771 = vadd.f32 %v499, %v718
        %v772 = vadd.f32 %v502, %v721
        %v773 = vadd.f32 %v507, %v726
        %v774 = vadd.f32 %v510, %v729
        %v775 = vadd.f32 %v515, %v734
        %v776 = vadd.f32 %v518, %v737
        %v777 = vadd.f32 %v523, %v742
        %v778 = vadd.f32 %v526, %v745
        %v779 = vadd.f32 %v531, %v750
        %v780 = vadd.f32 %v534, %v753
        %v781 = vadd.f32 %v539, %v758
        %v782 = vadd.f32 %v542, %v761
        %v783 = vadd.f32 %v547, %v766
        %s784 = scalar_lea.vmem %s219, 136
        %v785 = vld [vmem:[%s784] sm:$0xf]
        %v786 = vld [vmem:[%s784 + $0x4] sm:$0xf]
        %v787 = vld [vmem:[%s784 + $0x8] sm:$0xf]
        %v788 = vld [vmem:[%s784 + $0xc] sm:$0xf]
        %v789 = vld [vmem:[%s784 + $0x10] sm:$0xf]
        %v790 = vld [vmem:[%s784 + $0x14] sm:$0xf]
        %v791 = vld [vmem:[%s784 + $0x18] sm:$0xf]
        %v792 = vld [vmem:[%s784 + $0x1c] sm:$0xf]
        %v793 = vld [vmem:[%s784 + $0x20] sm:$0xf]
        %v794 = vld [vmem:[%s784 + $0x24] sm:$0xf]
        %v795 = vld [vmem:[%s784 + $0x28] sm:$0xf]
        %v796 = vld [vmem:[%s784 + $0x2c] sm:$0xf]
        %v797 = vld [vmem:[%s784 + $0x30] sm:$0xf]
        %s798 = scalar_lea.vmem %s224, 6
        %v799 = vld [vmem:[%s798] sm:$0x3]
        %v813 = vunpack.c.l.b16 %v785
        %v814 = vunpack.c.l.b16 %v786
        %v815 = vunpack.c.l.b16 %v787
        %v816 = vunpack.c.l.b16 %v788
        %v817 = vunpack.c.l.b16 %v789
        %v818 = vunpack.c.l.b16 %v790
        %v819 = vunpack.c.l.b16 %v791
        %v820 = vunpack.c.l.b16 %v792
        %v821 = vunpack.c.l.b16 %v793
        %v822 = vunpack.c.l.b16 %v794
        %v823 = vunpack.c.l.b16 %v795
        %v824 = vunpack.c.l.b16 %v796
        %v825 = vunpack.c.l.b16 %v797
        %v826 = vpack.c.b16 %v814, %v813
        %v827 = vpack.c.b16 %v816, %v815
        %v828 = vpack.c.b16 %v818, %v817
        %v829 = vpack.c.b16 %v820, %v819
        %v830 = vpack.c.b16 %v822, %v821
        %v831 = vpack.c.b16 %v824, %v823
        %v832 = vpack.c.b16 %v825, %v825
        %v834 = vsel %vm293, %v826, 0
        %v837 = vsel %vm293, %v827, 0
        %v840 = vsel %vm293, %v828, 0
        %v843 = vsel %vm293, %v829, 0
        %v846 = vsel %vm293, %v830, 0
        %v849 = vsel %vm293, %v831, 0
        %v852 = vsel %vm293, %v832, 0
        %v855 = vsel %vm315, %v799, 0
        %857 = vmatprep.subr.bf16.mxu0 0
        %858 = vmatpush1.bf16.msra.mxu0 0
        %859 = vmatprep.subr.bf16.mxu0 0
        %860 = vmatpush1.bf16.msra.mxu0 0
        %861 = vmatprep.subr.bf16.mxu0 0
        %862 = vmatpush1.bf16.msra.mxu0 0
        %863 = vmatprep.subr.bf16.mxu0 0
        %864 = vmatpush1.bf16.msra.mxu0 0
        %865 = vmatprep.subr.bf16.mxu0 0
        %866 = vmatpush1.bf16.msra.mxu0 0
        %867 = vmatprep.subr.bf16.mxu0 0
        %868 = vmatpush1.bf16.msra.mxu0 0
        %869 = vmatprep.subr.bf16.mxu0 0
        %870 = vmatpush1.bf16.msra.mxu0 0
        %871 = vmatprep.subr.bf16.mxu0 0
        %872 = vmatpush1.bf16.msra.mxu0 %v855
        %873 = vmatprep.subr.bf16.mxu0 0
        %874 = vmatpush2.bf16.msra.mxu0 0
        %875 = vmatprep.subr.bf16.mxu0 0
        %876 = vmatpush2.bf16.msra.mxu0 0
        %877 = vmatprep.subr.bf16.mxu0 0
        %878 = vmatpush2.bf16.msra.mxu0 0
        %879 = vmatprep.subr.bf16.mxu0 0
        %880 = vmatpush2.bf16.msra.mxu0 0
        %881 = vmatprep.subr.bf16.mxu0 0
        %882 = vmatpush2.bf16.msra.mxu0 0
        %883 = vmatprep.subr.bf16.mxu0 0
        %884 = vmatpush2.bf16.msra.mxu0 0
        %885 = vmatprep.subr.bf16.mxu0 0
        %886 = vmatpush2.bf16.msra.mxu0 0
        %887 = vmatprep.subr.bf16.mxu0 0
        %888 = vmatpush2.bf16.msra.mxu0 0
        %889 = vmatprep.mubr.bf16.mxu0 0
        %890 = vmatmul.mubr.bf16.gmra.mxu0 %v834
        %v891 = vpop.f32.mrf.mxu0
        %v892 = vadd.f32 0.0, %v891
        %v893 = vpop.f32.mrf.mxu0
        %v894 = vpop.f32.mrf.mxu0
        %v895 = vadd.f32 0.0, %v894
        %v896 = vpop.f32.mrf.mxu0
        %897 = vmatprep.mubr.bf16.mxu0 0
        %898 = vmatmul.mubr.bf16.gmra.mxu0 %v837
        %v899 = vpop.f32.mrf.mxu0
        %v900 = vadd.f32 0.0, %v899
        %v901 = vpop.f32.mrf.mxu0
        %v902 = vpop.f32.mrf.mxu0
        %v903 = vadd.f32 0.0, %v902
        %v904 = vpop.f32.mrf.mxu0
        %905 = vmatprep.mubr.bf16.mxu0 0
        %906 = vmatmul.mubr.bf16.gmra.mxu0 %v840
        %v907 = vpop.f32.mrf.mxu0
        %v908 = vadd.f32 0.0, %v907
        %v909 = vpop.f32.mrf.mxu0
        %v910 = vpop.f32.mrf.mxu0
        %v911 = vadd.f32 0.0, %v910
        %v912 = vpop.f32.mrf.mxu0
        %913 = vmatprep.mubr.bf16.mxu0 0
        %914 = vmatmul.mubr.bf16.gmra.mxu0 %v843
        %v915 = vpop.f32.mrf.mxu0
        %v916 = vadd.f32 0.0, %v915
        %v917 = vpop.f32.mrf.mxu0
        %v918 = vpop.f32.mrf.mxu0
        %v919 = vadd.f32 0.0, %v918
        %v920 = vpop.f32.mrf.mxu0
        %921 = vmatprep.mubr.bf16.mxu0 0
        %922 = vmatmul.mubr.bf16.gmra.mxu0 %v846
        %v923 = vpop.f32.mrf.mxu0
        %v924 = vadd.f32 0.0, %v923
        %v925 = vpop.f32.mrf.mxu0
        %v926 = vpop.f32.mrf.mxu0
        %v927 = vadd.f32 0.0, %v926
        %v928 = vpop.f32.mrf.mxu0
        %929 = vmatprep.mubr.bf16.mxu0 0
        %930 = vmatmul.mubr.bf16.gmra.mxu0 %v849
        %v931 = vpop.f32.mrf.mxu0
        %v932 = vadd.f32 0.0, %v931
        %v933 = vpop.f32.mrf.mxu0
        %v934 = vpop.f32.mrf.mxu0
        %v935 = vadd.f32 0.0, %v934
        %v936 = vpop.f32.mrf.mxu0
        %937 = vmatprep.mubr.bf16.mxu0 0
        %938 = vmatmul.mubr.bf16.gmra.mxu0 %v852
        %v939 = vpop.f32.mrf.mxu0
        %v940 = vadd.f32 0.0, %v939
        %v941 = vpop.f32.mrf.mxu0
        %v942 = vpop.f32.mrf.mxu0
        %v943 = vpop.f32.mrf.mxu0
        %944 = vdwg.mxu0
        %v945 = vadd.f32 %v771, %v892
        %v946 = vadd.f32 %v772, %v895
        %v947 = vadd.f32 %v773, %v900
        %v948 = vadd.f32 %v774, %v903
        %v949 = vadd.f32 %v775, %v908
        %v950 = vadd.f32 %v776, %v911
        %v951 = vadd.f32 %v777, %v916
        %v952 = vadd.f32 %v778, %v919
        %v953 = vadd.f32 %v779, %v924
        %v954 = vadd.f32 %v780, %v927
        %v955 = vadd.f32 %v781, %v932
        %v956 = vadd.f32 %v782, %v935
        %v957 = vadd.f32 %v783, %v940
        %s958 = scalar_lea.vmem %s219, 204
        %v959 = vld [vmem:[%s958] sm:$0xf]
        %v960 = vld [vmem:[%s958 + $0x4] sm:$0xf]
        %v961 = vld [vmem:[%s958 + $0x8] sm:$0xf]
        %v962 = vld [vmem:[%s958 + $0xc] sm:$0xf]
        %v963 = vld [vmem:[%s958 + $0x10] sm:$0xf]
        %v964 = vld [vmem:[%s958 + $0x14] sm:$0xf]
        %v965 = vld [vmem:[%s958 + $0x18] sm:$0xf]
        %v966 = vld [vmem:[%s958 + $0x1c] sm:$0xf]
        %v967 = vld [vmem:[%s958 + $0x20] sm:$0xf]
        %v968 = vld [vmem:[%s958 + $0x24] sm:$0xf]
        %v969 = vld [vmem:[%s958 + $0x28] sm:$0xf]
        %v970 = vld [vmem:[%s958 + $0x2c] sm:$0xf]
        %v971 = vld [vmem:[%s958 + $0x30] sm:$0xf]
        %s972 = scalar_lea.vmem %s224, 8
        %v973 = vld [vmem:[%s972] sm:$0x3]
        %v987 = vunpack.c.l.b16 %v959
        %v988 = vunpack.c.l.b16 %v960
        %v989 = vunpack.c.l.b16 %v961
        %v990 = vunpack.c.l.b16 %v962
        %v991 = vunpack.c.l.b16 %v963
        %v992 = vunpack.c.l.b16 %v964
        %v993 = vunpack.c.l.b16 %v965
        %v994 = vunpack.c.l.b16 %v966
        %v995 = vunpack.c.l.b16 %v967
        %v996 = vunpack.c.l.b16 %v968
        %v997 = vunpack.c.l.b16 %v969
        %v998 = vunpack.c.l.b16 %v970
        %v999 = vunpack.c.l.b16 %v971
        %v1000 = vpack.c.b16 %v988, %v987
        %v1001 = vpack.c.b16 %v990, %v989
        %v1002 = vpack.c.b16 %v992, %v991
        %v1003 = vpack.c.b16 %v994, %v993
        %v1004 = vpack.c.b16 %v996, %v995
        %v1005 = vpack.c.b16 %v998, %v997
        %v1006 = vpack.c.b16 %v999, %v999
        %v1008 = vsel %vm293, %v1000, 0
        %v1011 = vsel %vm293, %v1001, 0
        %v1014 = vsel %vm293, %v1002, 0
        %v1017 = vsel %vm293, %v1003, 0
        %v1020 = vsel %vm293, %v1004, 0
        %v1023 = vsel %vm293, %v1005, 0
        %v1026 = vsel %vm293, %v1006, 0
        %v1029 = vsel %vm315, %v973, 0
        %1031 = vmatprep.subr.bf16.mxu0 0
        %1032 = vmatpush1.bf16.msra.mxu0 0
        %1033 = vmatprep.subr.bf16.mxu0 0
        %1034 = vmatpush1.bf16.msra.mxu0 0
        %1035 = vmatprep.subr.bf16.mxu0 0
        %1036 = vmatpush1.bf16.msra.mxu0 0
        %1037 = vmatprep.subr.bf16.mxu0 0
        %1038 = vmatpush1.bf16.msra.mxu0 0
        %1039 = vmatprep.subr.bf16.mxu0 0
        %1040 = vmatpush1.bf16.msra.mxu0 0
        %1041 = vmatprep.subr.bf16.mxu0 0
        %1042 = vmatpush1.bf16.msra.mxu0 0
        %1043 = vmatprep.subr.bf16.mxu0 0
        %1044 = vmatpush1.bf16.msra.mxu0 0
        %1045 = vmatprep.subr.bf16.mxu0 0
        %1046 = vmatpush1.bf16.msra.mxu0 %v1029
        %1047 = vmatprep.subr.bf16.mxu0 0
        %1048 = vmatpush2.bf16.msra.mxu0 0
        %1049 = vmatprep.subr.bf16.mxu0 0
        %1050 = vmatpush2.bf16.msra.mxu0 0
        %1051 = vmatprep.subr.bf16.mxu0 0
        %1052 = vmatpush2.bf16.msra.mxu0 0
        %1053 = vmatprep.subr.bf16.mxu0 0
        %1054 = vmatpush2.bf16.msra.mxu0 0
        %1055 = vmatprep.subr.bf16.mxu0 0
        %1056 = vmatpush2.bf16.msra.mxu0 0
        %1057 = vmatprep.subr.bf16.mxu0 0
        %1058 = vmatpush2.bf16.msra.mxu0 0
        %1059 = vmatprep.subr.bf16.mxu0 0
        %1060 = vmatpush2.bf16.msra.mxu0 0
        %1061 = vmatprep.subr.bf16.mxu0 0
        %1062 = vmatpush2.bf16.msra.mxu0 0
        %1063 = vmatprep.mubr.bf16.mxu0 0
        %1064 = vmatmul.mubr.bf16.gmra.mxu0 %v1008
        %v1065 = vpop.f32.mrf.mxu0
        %v1066 = vadd.f32 0.0, %v1065
        %v1067 = vpop.f32.mrf.mxu0
        %v1068 = vpop.f32.mrf.mxu0
        %v1069 = vadd.f32 0.0, %v1068
        %v1070 = vpop.f32.mrf.mxu0
        %1071 = vmatprep.mubr.bf16.mxu0 0
        %1072 = vmatmul.mubr.bf16.gmra.mxu0 %v1011
        %v1073 = vpop.f32.mrf.mxu0
        %v1074 = vadd.f32 0.0, %v1073
        %v1075 = vpop.f32.mrf.mxu0
        %v1076 = vpop.f32.mrf.mxu0
        %v1077 = vadd.f32 0.0, %v1076
        %v1078 = vpop.f32.mrf.mxu0
        %1079 = vmatprep.mubr.bf16.mxu0 0
        %1080 = vmatmul.mubr.bf16.gmra.mxu0 %v1014
        %v1081 = vpop.f32.mrf.mxu0
        %v1082 = vadd.f32 0.0, %v1081
        %v1083 = vpop.f32.mrf.mxu0
        %v1084 = vpop.f32.mrf.mxu0
        %v1085 = vadd.f32 0.0, %v1084
        %v1086 = vpop.f32.mrf.mxu0
        %1087 = vmatprep.mubr.bf16.mxu0 0
        %1088 = vmatmul.mubr.bf16.gmra.mxu0 %v1017
        %v1089 = vpop.f32.mrf.mxu0
        %v1090 = vadd.f32 0.0, %v1089
        %v1091 = vpop.f32.mrf.mxu0
        %v1092 = vpop.f32.mrf.mxu0
        %v1093 = vadd.f32 0.0, %v1092
        %v1094 = vpop.f32.mrf.mxu0
        %1095 = vmatprep.mubr.bf16.mxu0 0
        %1096 = vmatmul.mubr.bf16.gmra.mxu0 %v1020
        %v1097 = vpop.f32.mrf.mxu0
        %v1098 = vadd.f32 0.0, %v1097
        %v1099 = vpop.f32.mrf.mxu0
        %v1100 = vpop.f32.mrf.mxu0
        %v1101 = vadd.f32 0.0, %v1100
        %v1102 = vpop.f32.mrf.mxu0
        %1103 = vmatprep.mubr.bf16.mxu0 0
        %1104 = vmatmul.mubr.bf16.gmra.mxu0 %v1023
        %v1105 = vpop.f32.mrf.mxu0
        %v1106 = vadd.f32 0.0, %v1105
        %v1107 = vpop.f32.mrf.mxu0
        %v1108 = vpop.f32.mrf.mxu0
        %v1109 = vadd.f32 0.0, %v1108
        %v1110 = vpop.f32.mrf.mxu0
        %1111 = vmatprep.mubr.bf16.mxu0 0
        %1112 = vmatmul.mubr.bf16.gmra.mxu0 %v1026
        %v1113 = vpop.f32.mrf.mxu0
        %v1114 = vadd.f32 0.0, %v1113
        %v1115 = vpop.f32.mrf.mxu0
        %v1116 = vpop.f32.mrf.mxu0
        %v1117 = vpop.f32.mrf.mxu0
        %1118 = vdwg.mxu0
        %v1119 = vadd.f32 %v945, %v1066
        %v1120 = vadd.f32 %v946, %v1069
        %v1121 = vadd.f32 %v947, %v1074
        %v1122 = vadd.f32 %v948, %v1077
        %v1123 = vadd.f32 %v949, %v1082
        %v1124 = vadd.f32 %v950, %v1085
        %v1125 = vadd.f32 %v951, %v1090
        %v1126 = vadd.f32 %v952, %v1093
        %v1127 = vadd.f32 %v953, %v1098
        %v1128 = vadd.f32 %v954, %v1101
        %v1129 = vadd.f32 %v955, %v1106
        %v1130 = vadd.f32 %v956, %v1109
        %v1131 = vadd.f32 %v957, %v1114
        %v1132 = vld [vmem:[%s784] sm:$0xf]
        %v1133 = vld [vmem:[%s784 + $0x4] sm:$0xf]
        %v1134 = vld [vmem:[%s784 + $0x8] sm:$0xf]
        %v1135 = vld [vmem:[%s784 + $0xc] sm:$0xf]
        %v1136 = vld [vmem:[%s784 + $0x10] sm:$0xf]
        %v1137 = vld [vmem:[%s784 + $0x14] sm:$0xf]
        %v1138 = vld [vmem:[%s784 + $0x18] sm:$0xf]
        %v1139 = vld [vmem:[%s784 + $0x1c] sm:$0xf]
        %v1140 = vld [vmem:[%s784 + $0x20] sm:$0xf]
        %v1141 = vld [vmem:[%s784 + $0x24] sm:$0xf]
        %v1142 = vld [vmem:[%s784 + $0x28] sm:$0xf]
        %v1143 = vld [vmem:[%s784 + $0x2c] sm:$0xf]
        %v1144 = vld [vmem:[%s784 + $0x30] sm:$0xf]
        %v1145 = vld [vmem:[%s784 + $0x34] sm:$0x1]
        %s1146 = scalar_lea.vmem %s224, 10
        %v1147 = vld [vmem:[%s1146] sm:$0x3]
        %v1162 = vunpack.c.l.b16 %v1132
        %v1163 = vunpack.c.l.b16 %v1133
        %v1164 = vunpack.c.l.b16 %v1134
        %v1165 = vunpack.c.l.b16 %v1135
        %v1166 = vunpack.c.l.b16 %v1136
        %v1167 = vunpack.c.l.b16 %v1137
        %v1168 = vunpack.c.l.b16 %v1138
        %v1169 = vunpack.c.l.b16 %v1139
        %v1170 = vunpack.c.l.b16 %v1140
        %v1171 = vunpack.c.l.b16 %v1141
        %v1172 = vunpack.c.l.b16 %v1142
        %v1173 = vunpack.c.l.b16 %v1143
        %v1174 = vunpack.c.l.b16 %v1144
        %v1175 = vunpack.c.l.b16 %v1145
        %v1176 = vpack.c.b16 %v1163, %v1162
        %v1177 = vpack.c.b16 %v1165, %v1164
        %v1178 = vpack.c.b16 %v1167, %v1166
        %v1179 = vpack.c.b16 %v1169, %v1168
        %v1180 = vpack.c.b16 %v1171, %v1170
        %v1181 = vpack.c.b16 %v1173, %v1172
        %v1182 = vpack.c.b16 %v1175, %v1174
        %v1184 = vshrl.u32 %v1176, 16
        %v1186 = vshll.u32 %v1176, 16
        %v1188 = vrot.slane %v1186, 1
        %v1189 = vor.u32 %v1184, %v1188
        %v1191 = vshll.u32 %v1177, 16
        %v1193 = vrot.slane %v1191, 1
        %v1194 = vsel %vm603, %v1189, %v1193
        %v1195 = vshrl.u32 %v1177, 16
        %v1197 = vor.u32 %v1195, %v1193
        %v1199 = vshll.u32 %v1178, 16
        %v1201 = vrot.slane %v1199, 1
        %v1202 = vsel %vm603, %v1197, %v1201
        %v1203 = vshrl.u32 %v1178, 16
        %v1205 = vor.u32 %v1203, %v1201
        %v1207 = vshll.u32 %v1179, 16
        %v1209 = vrot.slane %v1207, 1
        %v1210 = vsel %vm603, %v1205, %v1209
        %v1211 = vshrl.u32 %v1179, 16
        %v1213 = vor.u32 %v1211, %v1209
        %v1215 = vshll.u32 %v1180, 16
        %v1217 = vrot.slane %v1215, 1
        %v1218 = vsel %vm603, %v1213, %v1217
        %v1219 = vshrl.u32 %v1180, 16
        %v1221 = vor.u32 %v1219, %v1217
        %v1223 = vshll.u32 %v1181, 16
        %v1225 = vrot.slane %v1223, 1
        %v1226 = vsel %vm603, %v1221, %v1225
        %v1227 = vshrl.u32 %v1181, 16
        %v1229 = vor.u32 %v1227, %v1225
        %v1231 = vshll.u32 %v1182, 16
        %v1233 = vrot.slane %v1231, 1
        %v1234 = vsel %vm603, %v1229, %v1233
        %v1235 = vshrl.u32 %v1182, 16
        %v1237 = vor.u32 %v1235, %v1233
        %v1239 = vsel %vm293, %v1194, 0
        %v1242 = vsel %vm293, %v1202, 0
        %v1245 = vsel %vm293, %v1210, 0
        %v1248 = vsel %vm293, %v1218, 0
        %v1251 = vsel %vm293, %v1226, 0
        %v1254 = vsel %vm293, %v1234, 0
        %v1257 = vsel %vm293, %v1237, 0
        %v1260 = vsel %vm315, %v1147, 0
        %1262 = vmatprep.subr.bf16.mxu0 0
        %1263 = vmatpush1.bf16.msra.mxu0 0
        %1264 = vmatprep.subr.bf16.mxu0 0
        %1265 = vmatpush1.bf16.msra.mxu0 0
        %1266 = vmatprep.subr.bf16.mxu0 0
        %1267 = vmatpush1.bf16.msra.mxu0 0
        %1268 = vmatprep.subr.bf16.mxu0 0
        %1269 = vmatpush1.bf16.msra.mxu0 0
        %1270 = vmatprep.subr.bf16.mxu0 0
        %1271 = vmatpush1.bf16.msra.mxu0 0
        %1272 = vmatprep.subr.bf16.mxu0 0
        %1273 = vmatpush1.bf16.msra.mxu0 0
        %1274 = vmatprep.subr.bf16.mxu0 0
        %1275 = vmatpush1.bf16.msra.mxu0 0
        %1276 = vmatprep.subr.bf16.mxu0 0
        %1277 = vmatpush1.bf16.msra.mxu0 %v1260
        %1278 = vmatprep.subr.bf16.mxu0 0
        %1279 = vmatpush2.bf16.msra.mxu0 0
        %1280 = vmatprep.subr.bf16.mxu0 0
        %1281 = vmatpush2.bf16.msra.mxu0 0
        %1282 = vmatprep.subr.bf16.mxu0 0
        %1283 = vmatpush2.bf16.msra.mxu0 0
        %1284 = vmatprep.subr.bf16.mxu0 0
        %1285 = vmatpush2.bf16.msra.mxu0 0
        %1286 = vmatprep.subr.bf16.mxu0 0
        %1287 = vmatpush2.bf16.msra.mxu0 0
        %1288 = vmatprep.subr.bf16.mxu0 0
        %1289 = vmatpush2.bf16.msra.mxu0 0
        %1290 = vmatprep.subr.bf16.mxu0 0
        %1291 = vmatpush2.bf16.msra.mxu0 0
        %1292 = vmatprep.subr.bf16.mxu0 0
        %1293 = vmatpush2.bf16.msra.mxu0 0
        %1294 = vmatprep.mubr.bf16.mxu0 0
        %1295 = vmatmul.mubr.bf16.gmra.mxu0 %v1239
        %v1296 = vpop.f32.mrf.mxu0
        %v1297 = vadd.f32 0.0, %v1296
        %v1298 = vpop.f32.mrf.mxu0
        %v1299 = vpop.f32.mrf.mxu0
        %v1300 = vadd.f32 0.0, %v1299
        %v1301 = vpop.f32.mrf.mxu0
        %1302 = vmatprep.mubr.bf16.mxu0 0
        %1303 = vmatmul.mubr.bf16.gmra.mxu0 %v1242
        %v1304 = vpop.f32.mrf.mxu0
        %v1305 = vadd.f32 0.0, %v1304
        %v1306 = vpop.f32.mrf.mxu0
        %v1307 = vpop.f32.mrf.mxu0
        %v1308 = vadd.f32 0.0, %v1307
        %v1309 = vpop.f32.mrf.mxu0
        %1310 = vmatprep.mubr.bf16.mxu0 0
        %1311 = vmatmul.mubr.bf16.gmra.mxu0 %v1245
        %v1312 = vpop.f32.mrf.mxu0
        %v1313 = vadd.f32 0.0, %v1312
        %v1314 = vpop.f32.mrf.mxu0
        %v1315 = vpop.f32.mrf.mxu0
        %v1316 = vadd.f32 0.0, %v1315
        %v1317 = vpop.f32.mrf.mxu0
        %1318 = vmatprep.mubr.bf16.mxu0 0
        %1319 = vmatmul.mubr.bf16.gmra.mxu0 %v1248
        %v1320 = vpop.f32.mrf.mxu0
        %v1321 = vadd.f32 0.0, %v1320
        %v1322 = vpop.f32.mrf.mxu0
        %v1323 = vpop.f32.mrf.mxu0
        %v1324 = vadd.f32 0.0, %v1323
        %v1325 = vpop.f32.mrf.mxu0
        %1326 = vmatprep.mubr.bf16.mxu0 0
        %1327 = vmatmul.mubr.bf16.gmra.mxu0 %v1251
        %v1328 = vpop.f32.mrf.mxu0
        %v1329 = vadd.f32 0.0, %v1328
        %v1330 = vpop.f32.mrf.mxu0
        %v1331 = vpop.f32.mrf.mxu0
        %v1332 = vadd.f32 0.0, %v1331
        %v1333 = vpop.f32.mrf.mxu0
        %1334 = vmatprep.mubr.bf16.mxu0 0
        %1335 = vmatmul.mubr.bf16.gmra.mxu0 %v1254
        %v1336 = vpop.f32.mrf.mxu0
        %v1337 = vadd.f32 0.0, %v1336
        %v1338 = vpop.f32.mrf.mxu0
        %v1339 = vpop.f32.mrf.mxu0
        %v1340 = vadd.f32 0.0, %v1339
        %v1341 = vpop.f32.mrf.mxu0
        %1342 = vmatprep.mubr.bf16.mxu0 0
        %1343 = vmatmul.mubr.bf16.gmra.mxu0 %v1257
        %v1344 = vpop.f32.mrf.mxu0
        %v1345 = vadd.f32 0.0, %v1344
        %v1346 = vpop.f32.mrf.mxu0
        %v1347 = vpop.f32.mrf.mxu0
        %v1348 = vpop.f32.mrf.mxu0
        %1349 = vdwg.mxu0
        %v1350 = vadd.f32 %v1119, %v1297
        %v1351 = vadd.f32 %v1120, %v1300
        %v1352 = vadd.f32 %v1121, %v1305
        %v1353 = vadd.f32 %v1122, %v1308
        %v1354 = vadd.f32 %v1123, %v1313
        %v1355 = vadd.f32 %v1124, %v1316
        %v1356 = vadd.f32 %v1125, %v1321
        %v1357 = vadd.f32 %v1126, %v1324
        %v1358 = vadd.f32 %v1127, %v1329
        %v1359 = vadd.f32 %v1128, %v1332
        %v1360 = vadd.f32 %v1129, %v1337
        %v1361 = vadd.f32 %v1130, %v1340
        %v1362 = vadd.f32 %v1131, %v1345
        %v1363 = vld [vmem:[%s219] sm:$0xc]
        %v1364 = vld [vmem:[%s219 + $0x34] sm:$0x7]
        %s1365 = scalar_lea.vmem %s224, 12
        %v1366 = vld [vmem:[%s1365] sm:$0x3]
        %v1369 = vunpack.c.l.b16 %v1363
        %v1370 = vunpack.c.l.b16 %v1364
        %v1371 = vpack.c.b16 %v583, %v1369
        %v1372 = vpack.c.b16 %v1370, %v594
        %vm1373 = vsmask.f32 5376
        %v1375 = vshrl.u32 %v1371, 16
        %v1377 = vrot.slane %v1375, 2
        %v1378 = vshll.u32 %v1371, 16
        %v1380 = vrot.slane %v1378, 3
        %v1381 = vor.u32 %v1377, %v1380
        %v1382 = vrot.slane %v616, 2
        %v1383 = vrot.slane %v612, 3
        %v1384 = vor.u32 %v1382, %v1383
        %v1385 = vsel %vm1373, %v1381, %v1384
        %v1386 = vrot.slane %v624, 2
        %v1387 = vrot.slane %v620, 3
        %v1388 = vor.u32 %v1386, %v1387
        %v1389 = vsel %vm1373, %v1384, %v1388
        %v1390 = vrot.slane %v632, 2
        %v1391 = vrot.slane %v628, 3
        %v1392 = vor.u32 %v1390, %v1391
        %v1393 = vsel %vm1373, %v1388, %v1392
        %v1394 = vrot.slane %v640, 2
        %v1395 = vrot.slane %v636, 3
        %v1396 = vor.u32 %v1394, %v1395
        %v1397 = vsel %vm1373, %v1392, %v1396
        %v1398 = vrot.slane %v648, 2
        %v1399 = vrot.slane %v644, 3
        %v1400 = vor.u32 %v1398, %v1399
        %v1401 = vsel %vm1373, %v1396, %v1400
        %v1403 = vshrl.u32 %v1372, 16
        %v1405 = vrot.slane %v1403, 2
        %v1406 = vshll.u32 %v1372, 16
        %v1408 = vrot.slane %v1406, 3
        %v1409 = vor.u32 %v1405, %v1408
        %v1410 = vsel %vm1373, %v1400, %v1409
        %v1412 = vsel %vm293, %v1385, 0
        %v1415 = vsel %vm293, %v1389, 0
        %v1418 = vsel %vm293, %v1393, 0
        %v1421 = vsel %vm293, %v1397, 0
        %v1424 = vsel %vm293, %v1401, 0
        %v1427 = vsel %vm293, %v1410, 0
        %v1430 = vsel %vm293, %v1409, 0
        %v1433 = vsel %vm315, %v1366, 0
        %1435 = vmatprep.subr.bf16.mxu0 0
        %1436 = vmatpush1.bf16.msra.mxu0 0
        %1437 = vmatprep.subr.bf16.mxu0 0
        %1438 = vmatpush1.bf16.msra.mxu0 0
        %1439 = vmatprep.subr.bf16.mxu0 0
        %1440 = vmatpush1.bf16.msra.mxu0 0
        %1441 = vmatprep.subr.bf16.mxu0 0
        %1442 = vmatpush1.bf16.msra.mxu0 0
        %1443 = vmatprep.subr.bf16.mxu0 0
        %1444 = vmatpush1.bf16.msra.mxu0 0
        %1445 = vmatprep.subr.bf16.mxu0 0
        %1446 = vmatpush1.bf16.msra.mxu0 0
        %1447 = vmatprep.subr.bf16.mxu0 0
        %1448 = vmatpush1.bf16.msra.mxu0 0
        %1449 = vmatprep.subr.bf16.mxu0 0
        %1450 = vmatpush1.bf16.msra.mxu0 %v1433
        %1451 = vmatprep.subr.bf16.mxu0 0
        %1452 = vmatpush2.bf16.msra.mxu0 0
        %1453 = vmatprep.subr.bf16.mxu0 0
        %1454 = vmatpush2.bf16.msra.mxu0 0
        %1455 = vmatprep.subr.bf16.mxu0 0
        %1456 = vmatpush2.bf16.msra.mxu0 0
        %1457 = vmatprep.subr.bf16.mxu0 0
        %1458 = vmatpush2.bf16.msra.mxu0 0
        %1459 = vmatprep.subr.bf16.mxu0 0
        %1460 = vmatpush2.bf16.msra.mxu0 0
        %1461 = vmatprep.subr.bf16.mxu0 0
        %1462 = vmatpush2.bf16.msra.mxu0 0
        %1463 = vmatprep.subr.bf16.mxu0 0
        %1464 = vmatpush2.bf16.msra.mxu0 0
        %1465 = vmatprep.subr.bf16.mxu0 0
        %1466 = vmatpush2.bf16.msra.mxu0 0
        %1467 = vmatprep.mubr.bf16.mxu0 0
        %1468 = vmatmul.mubr.bf16.gmra.mxu0 %v1412
        %v1469 = vpop.f32.mrf.mxu0
        %v1470 = vadd.f32 0.0, %v1469
        %v1471 = vpop.f32.mrf.mxu0
        %v1472 = vpop.f32.mrf.mxu0
        %v1473 = vadd.f32 0.0, %v1472
        %v1474 = vpop.f32.mrf.mxu0
        %1475 = vmatprep.mubr.bf16.mxu0 0
        %1476 = vmatmul.mubr.bf16.gmra.mxu0 %v1415
        %v1477 = vpop.f32.mrf.mxu0
        %v1478 = vadd.f32 0.0, %v1477
        %v1479 = vpop.f32.mrf.mxu0
        %v1480 = vpop.f32.mrf.mxu0
        %v1481 = vadd.f32 0.0, %v1480
        %v1482 = vpop.f32.mrf.mxu0
        %1483 = vmatprep.mubr.bf16.mxu0 0
        %1484 = vmatmul.mubr.bf16.gmra.mxu0 %v1418
        %v1485 = vpop.f32.mrf.mxu0
        %v1486 = vadd.f32 0.0, %v1485
        %v1487 = vpop.f32.mrf.mxu0
        %v1488 = vpop.f32.mrf.mxu0
        %v1489 = vadd.f32 0.0, %v1488
        %v1490 = vpop.f32.mrf.mxu0
        %1491 = vmatprep.mubr.bf16.mxu0 0
        %1492 = vmatmul.mubr.bf16.gmra.mxu0 %v1421
        %v1493 = vpop.f32.mrf.mxu0
        %v1494 = vadd.f32 0.0, %v1493
        %v1495 = vpop.f32.mrf.mxu0
        %v1496 = vpop.f32.mrf.mxu0
        %v1497 = vadd.f32 0.0, %v1496
        %v1498 = vpop.f32.mrf.mxu0
        %1499 = vmatprep.mubr.bf16.mxu0 0
        %1500 = vmatmul.mubr.bf16.gmra.mxu0 %v1424
        %v1501 = vpop.f32.mrf.mxu0
        %v1502 = vadd.f32 0.0, %v1501
        %v1503 = vpop.f32.mrf.mxu0
        %v1504 = vpop.f32.mrf.mxu0
        %v1505 = vadd.f32 0.0, %v1504
        %v1506 = vpop.f32.mrf.mxu0
        %1507 = vmatprep.mubr.bf16.mxu0 0
        %1508 = vmatmul.mubr.bf16.gmra.mxu0 %v1427
        %v1509 = vpop.f32.mrf.mxu0
        %v1510 = vadd.f32 0.0, %v1509
        %v1511 = vpop.f32.mrf.mxu0
        %v1512 = vpop.f32.mrf.mxu0
        %v1513 = vadd.f32 0.0, %v1512
        %v1514 = vpop.f32.mrf.mxu0
        %1515 = vmatprep.mubr.bf16.mxu0 0
        %1516 = vmatmul.mubr.bf16.gmra.mxu0 %v1430
        %v1517 = vpop.f32.mrf.mxu0
        %v1518 = vadd.f32 0.0, %v1517
        %v1519 = vpop.f32.mrf.mxu0
        %v1520 = vpop.f32.mrf.mxu0
        %v1521 = vpop.f32.mrf.mxu0
        %1522 = vdwg.mxu0
        %v1523 = vadd.f32 %v1350, %v1470
        %v1524 = vadd.f32 %v1351, %v1473
        %v1525 = vadd.f32 %v1352, %v1478
        %v1526 = vadd.f32 %v1353, %v1481
        %v1527 = vadd.f32 %v1354, %v1486
        %v1528 = vadd.f32 %v1355, %v1489
        %v1529 = vadd.f32 %v1356, %v1494
        %v1530 = vadd.f32 %v1357, %v1497
        %v1531 = vadd.f32 %v1358, %v1502
        %v1532 = vadd.f32 %v1359, %v1505
        %v1533 = vadd.f32 %v1360, %v1510
        %v1534 = vadd.f32 %v1361, %v1513
        %v1535 = vadd.f32 %v1362, %v1518
        %v1536 = vld [vmem:[%s244] sm:$0xc]
        %v1537 = vld [vmem:[%s244 + $0x4] sm:$0xf]
        %v1538 = vld [vmem:[%s244 + $0x8] sm:$0xf]
        %v1539 = vld [vmem:[%s244 + $0xc] sm:$0xf]
        %v1540 = vld [vmem:[%s244 + $0x10] sm:$0xf]
        %v1541 = vld [vmem:[%s244 + $0x14] sm:$0xf]
        %v1542 = vld [vmem:[%s244 + $0x18] sm:$0xf]
        %v1543 = vld [vmem:[%s244 + $0x1c] sm:$0xf]
        %v1544 = vld [vmem:[%s244 + $0x20] sm:$0xf]
        %v1545 = vld [vmem:[%s244 + $0x24] sm:$0xf]
        %v1546 = vld [vmem:[%s244 + $0x28] sm:$0xf]
        %v1547 = vld [vmem:[%s244 + $0x2c] sm:$0xf]
        %v1548 = vld [vmem:[%s244 + $0x30] sm:$0xf]
        %v1549 = vld [vmem:[%s244 + $0x34] sm:$0x7]
        %s1550 = scalar_lea.vmem %s224, 14
        %v1551 = vld [vmem:[%s1550] sm:$0x3]
        %v1566 = vunpack.c.l.b16 %v1536
        %v1567 = vunpack.c.l.b16 %v1537
        %v1568 = vunpack.c.l.b16 %v1538
        %v1569 = vunpack.c.l.b16 %v1539
        %v1570 = vunpack.c.l.b16 %v1540
        %v1571 = vunpack.c.l.b16 %v1541
        %v1572 = vunpack.c.l.b16 %v1542
        %v1573 = vunpack.c.l.b16 %v1543
        %v1574 = vunpack.c.l.b16 %v1544
        %v1575 = vunpack.c.l.b16 %v1545
        %v1576 = vunpack.c.l.b16 %v1546
        %v1577 = vunpack.c.l.b16 %v1547
        %v1578 = vunpack.c.l.b16 %v1548
        %v1579 = vunpack.c.l.b16 %v1549
        %v1580 = vpack.c.b16 %v1567, %v1566
        %v1581 = vpack.c.b16 %v1569, %v1568
        %v1582 = vpack.c.b16 %v1571, %v1570
        %v1583 = vpack.c.b16 %v1573, %v1572
        %v1584 = vpack.c.b16 %v1575, %v1574
        %v1585 = vpack.c.b16 %v1577, %v1576
        %v1586 = vpack.c.b16 %v1579, %v1578
        %v1588 = vshrl.u32 %v1580, 16
        %v1590 = vrot.slane %v1588, 2
        %v1591 = vshll.u32 %v1580, 16
        %v1593 = vrot.slane %v1591, 3
        %v1594 = vor.u32 %v1590, %v1593
        %v1596 = vshrl.u32 %v1581, 16
        %v1598 = vrot.slane %v1596, 2
        %v1599 = vshll.u32 %v1581, 16
        %v1601 = vrot.slane %v1599, 3
        %v1602 = vor.u32 %v1598, %v1601
        %v1603 = vsel %vm1373, %v1594, %v1602
        %v1605 = vshrl.u32 %v1582, 16
        %v1607 = vrot.slane %v1605, 2
        %v1608 = vshll.u32 %v1582, 16
        %v1610 = vrot.slane %v1608, 3
        %v1611 = vor.u32 %v1607, %v1610
        %v1612 = vsel %vm1373, %v1602, %v1611
        %v1614 = vshrl.u32 %v1583, 16
        %v1616 = vrot.slane %v1614, 2
        %v1617 = vshll.u32 %v1583, 16
        %v1619 = vrot.slane %v1617, 3
        %v1620 = vor.u32 %v1616, %v1619
        %v1621 = vsel %vm1373, %v1611, %v1620
        %v1623 = vshrl.u32 %v1584, 16
        %v1625 = vrot.slane %v1623, 2
        %v1626 = vshll.u32 %v1584, 16
        %v1628 = vrot.slane %v1626, 3
        %v1629 = vor.u32 %v1625, %v1628
        %v1630 = vsel %vm1373, %v1620, %v1629
        %v1632 = vshrl.u32 %v1585, 16
        %v1634 = vrot.slane %v1632, 2
        %v1635 = vshll.u32 %v1585, 16
        %v1637 = vrot.slane %v1635, 3
        %v1638 = vor.u32 %v1634, %v1637
        %v1639 = vsel %vm1373, %v1629, %v1638
        %v1641 = vshrl.u32 %v1586, 16
        %v1643 = vrot.slane %v1641, 2
        %v1644 = vshll.u32 %v1586, 16
        %v1646 = vrot.slane %v1644, 3
        %v1647 = vor.u32 %v1643, %v1646
        %v1648 = vsel %vm1373, %v1638, %v1647
        %v1650 = vsel %vm293, %v1603, 0
        %v1653 = vsel %vm293, %v1612, 0
        %v1656 = vsel %vm293, %v1621, 0
        %v1659 = vsel %vm293, %v1630, 0
        %v1662 = vsel %vm293, %v1639, 0
        %v1665 = vsel %vm293, %v1648, 0
        %v1668 = vsel %vm293, %v1647, 0
        %v1671 = vsel %vm315, %v1551, 0
        %1673 = vmatprep.subr.bf16.mxu0 0
        %1674 = vmatpush1.bf16.msra.mxu0 0
        %1675 = vmatprep.subr.bf16.mxu0 0
        %1676 = vmatpush1.bf16.msra.mxu0 0
        %1677 = vmatprep.subr.bf16.mxu0 0
        %1678 = vmatpush1.bf16.msra.mxu0 0
        %1679 = vmatprep.subr.bf16.mxu0 0
        %1680 = vmatpush1.bf16.msra.mxu0 0
        %1681 = vmatprep.subr.bf16.mxu0 0
        %1682 = vmatpush1.bf16.msra.mxu0 0
        %1683 = vmatprep.subr.bf16.mxu0 0
        %1684 = vmatpush1.bf16.msra.mxu0 0
        %1685 = vmatprep.subr.bf16.mxu0 0
        %1686 = vmatpush1.bf16.msra.mxu0 0
        %1687 = vmatprep.subr.bf16.mxu0 0
        %1688 = vmatpush1.bf16.msra.mxu0 %v1671
        %1689 = vmatprep.subr.bf16.mxu0 0
        %1690 = vmatpush2.bf16.msra.mxu0 0
        %1691 = vmatprep.subr.bf16.mxu0 0
        %1692 = vmatpush2.bf16.msra.mxu0 0
        %1693 = vmatprep.subr.bf16.mxu0 0
        %1694 = vmatpush2.bf16.msra.mxu0 0
        %1695 = vmatprep.subr.bf16.mxu0 0
        %1696 = vmatpush2.bf16.msra.mxu0 0
        %1697 = vmatprep.subr.bf16.mxu0 0
        %1698 = vmatpush2.bf16.msra.mxu0 0
        %1699 = vmatprep.subr.bf16.mxu0 0
        %1700 = vmatpush2.bf16.msra.mxu0 0
        %1701 = vmatprep.subr.bf16.mxu0 0
        %1702 = vmatpush2.bf16.msra.mxu0 0
        %1703 = vmatprep.subr.bf16.mxu0 0
        %1704 = vmatpush2.bf16.msra.mxu0 0
        %1705 = vmatprep.mubr.bf16.mxu0 0
        %1706 = vmatmul.mubr.bf16.gmra.mxu0 %v1650
        %v1707 = vpop.f32.mrf.mxu0
        %v1708 = vadd.f32 0.0, %v1707
        %v1709 = vpop.f32.mrf.mxu0
        %v1710 = vpop.f32.mrf.mxu0
        %v1711 = vadd.f32 0.0, %v1710
        %v1712 = vpop.f32.mrf.mxu0
        %1713 = vmatprep.mubr.bf16.mxu0 0
        %1714 = vmatmul.mubr.bf16.gmra.mxu0 %v1653
        %v1715 = vpop.f32.mrf.mxu0
        %v1716 = vadd.f32 0.0, %v1715
        %v1717 = vpop.f32.mrf.mxu0
        %v1718 = vpop.f32.mrf.mxu0
        %v1719 = vadd.f32 0.0, %v1718
        %v1720 = vpop.f32.mrf.mxu0
        %1721 = vmatprep.mubr.bf16.mxu0 0
        %1722 = vmatmul.mubr.bf16.gmra.mxu0 %v1656
        %v1723 = vpop.f32.mrf.mxu0
        %v1724 = vadd.f32 0.0, %v1723
        %v1725 = vpop.f32.mrf.mxu0
        %v1726 = vpop.f32.mrf.mxu0
        %v1727 = vadd.f32 0.0, %v1726
        %v1728 = vpop.f32.mrf.mxu0
        %1729 = vmatprep.mubr.bf16.mxu0 0
        %1730 = vmatmul.mubr.bf16.gmra.mxu0 %v1659
        %v1731 = vpop.f32.mrf.mxu0
        %v1732 = vadd.f32 0.0, %v1731
        %v1733 = vpop.f32.mrf.mxu0
        %v1734 = vpop.f32.mrf.mxu0
        %v1735 = vadd.f32 0.0, %v1734
        %v1736 = vpop.f32.mrf.mxu0
        %1737 = vmatprep.mubr.bf16.mxu0 0
        %1738 = vmatmul.mubr.bf16.gmra.mxu0 %v1662
        %v1739 = vpop.f32.mrf.mxu0
        %v1740 = vadd.f32 0.0, %v1739
        %v1741 = vpop.f32.mrf.mxu0
        %v1742 = vpop.f32.mrf.mxu0
        %v1743 = vadd.f32 0.0, %v1742
        %v1744 = vpop.f32.mrf.mxu0
        %1745 = vmatprep.mubr.bf16.mxu0 0
        %1746 = vmatmul.mubr.bf16.gmra.mxu0 %v1665
        %v1747 = vpop.f32.mrf.mxu0
        %v1748 = vadd.f32 0.0, %v1747
        %v1749 = vpop.f32.mrf.mxu0
        %v1750 = vpop.f32.mrf.mxu0
        %v1751 = vadd.f32 0.0, %v1750
        %v1752 = vpop.f32.mrf.mxu0
        %1753 = vmatprep.mubr.bf16.mxu0 0
        %1754 = vmatmul.mubr.bf16.gmra.mxu0 %v1668
        %v1755 = vpop.f32.mrf.mxu0
        %v1756 = vadd.f32 0.0, %v1755
        %v1757 = vpop.f32.mrf.mxu0
        %v1758 = vpop.f32.mrf.mxu0
        %v1759 = vpop.f32.mrf.mxu0
        %1760 = vdwg.mxu0
        %v1761 = vadd.f32 %v1523, %v1708
        %v1762 = vadd.f32 %v1524, %v1711
        %v1763 = vadd.f32 %v1525, %v1716
        %v1764 = vadd.f32 %v1526, %v1719
        %v1765 = vadd.f32 %v1527, %v1724
        %v1766 = vadd.f32 %v1528, %v1727
        %v1767 = vadd.f32 %v1529, %v1732
        %v1768 = vadd.f32 %v1530, %v1735
        %v1769 = vadd.f32 %v1531, %v1740
        %v1770 = vadd.f32 %v1532, %v1743
        %v1771 = vadd.f32 %v1533, %v1748
        %v1772 = vadd.f32 %v1534, %v1751
        %v1773 = vadd.f32 %v1535, %v1756
        %v1774 = vld [vmem:[%s219] sm:$0x8]
        %s1775 = scalar_lea.vmem %s224, 16
        %v1776 = vld [vmem:[%s1775] sm:$0x3]
        %v1778 = vunpack.c.l.b16 %v1774
        %v1779 = vpack.c.b16 %v583, %v1778
        %vm1780 = vcmask 1044480
        %v1781 = vrot.slane %v1779, 3
        %v1782 = vrot.slane %v597, 3
        %v1783 = vsel %vm1780, %v1781, %v1782
        %v1784 = vrot.slane %v598, 3
        %v1785 = vsel %vm1780, %v1782, %v1784
        %v1786 = vrot.slane %v599, 3
        %v1787 = vsel %vm1780, %v1784, %v1786
        %v1788 = vrot.slane %v600, 3
        %v1789 = vsel %vm1780, %v1786, %v1788
        %v1790 = vrot.slane %v601, 3
        %v1791 = vsel %vm1780, %v1788, %v1790
        %v1792 = vrot.slane %v1372, 3
        %v1793 = vsel %vm1780, %v1790, %v1792
        %v1795 = vsel %vm293, %v1783, 0
        %v1798 = vsel %vm293, %v1785, 0
        %v1801 = vsel %vm293, %v1787, 0
        %v1804 = vsel %vm293, %v1789, 0
        %v1807 = vsel %vm293, %v1791, 0
        %v1810 = vsel %vm293, %v1793, 0
        %v1813 = vsel %vm293, %v1792, 0
        %v1816 = vsel %vm315, %v1776, 0
        %1818 = vmatprep.subr.bf16.mxu0 0
        %1819 = vmatpush1.bf16.msra.mxu0 0
        %1820 = vmatprep.subr.bf16.mxu0 0
        %1821 = vmatpush1.bf16.msra.mxu0 0
        %1822 = vmatprep.subr.bf16.mxu0 0
        %1823 = vmatpush1.bf16.msra.mxu0 0
        %1824 = vmatprep.subr.bf16.mxu0 0
        %1825 = vmatpush1.bf16.msra.mxu0 0
        %1826 = vmatprep.subr.bf16.mxu0 0
        %1827 = vmatpush1.bf16.msra.mxu0 0
        %1828 = vmatprep.subr.bf16.mxu0 0
        %1829 = vmatpush1.bf16.msra.mxu0 0
        %1830 = vmatprep.subr.bf16.mxu0 0
        %1831 = vmatpush1.bf16.msra.mxu0 0
        %1832 = vmatprep.subr.bf16.mxu0 0
        %1833 = vmatpush1.bf16.msra.mxu0 %v1816
        %1834 = vmatprep.subr.bf16.mxu0 0
        %1835 = vmatpush2.bf16.msra.mxu0 0
        %1836 = vmatprep.subr.bf16.mxu0 0
        %1837 = vmatpush2.bf16.msra.mxu0 0
        %1838 = vmatprep.subr.bf16.mxu0 0
        %1839 = vmatpush2.bf16.msra.mxu0 0
        %1840 = vmatprep.subr.bf16.mxu0 0
        %1841 = vmatpush2.bf16.msra.mxu0 0
        %1842 = vmatprep.subr.bf16.mxu0 0
        %1843 = vmatpush2.bf16.msra.mxu0 0
        %1844 = vmatprep.subr.bf16.mxu0 0
        %1845 = vmatpush2.bf16.msra.mxu0 0
        %1846 = vmatprep.subr.bf16.mxu0 0
        %1847 = vmatpush2.bf16.msra.mxu0 0
        %1848 = vmatprep.subr.bf16.mxu0 0
        %1849 = vmatpush2.bf16.msra.mxu0 0
        %1850 = vmatprep.mubr.bf16.mxu0 0
        %1851 = vmatmul.mubr.bf16.gmra.mxu0 %v1795
        %v1852 = vpop.f32.mrf.mxu0
        %v1853 = vadd.f32 0.0, %v1852
        %v1854 = vpop.f32.mrf.mxu0
        %v1855 = vpop.f32.mrf.mxu0
        %v1856 = vadd.f32 0.0, %v1855
        %v1857 = vpop.f32.mrf.mxu0
        %1858 = vmatprep.mubr.bf16.mxu0 0
        %1859 = vmatmul.mubr.bf16.gmra.mxu0 %v1798
        %v1860 = vpop.f32.mrf.mxu0
        %v1861 = vadd.f32 0.0, %v1860
        %v1862 = vpop.f32.mrf.mxu0
        %v1863 = vpop.f32.mrf.mxu0
        %v1864 = vadd.f32 0.0, %v1863
        %v1865 = vpop.f32.mrf.mxu0
        %1866 = vmatprep.mubr.bf16.mxu0 0
        %1867 = vmatmul.mubr.bf16.gmra.mxu0 %v1801
        %v1868 = vpop.f32.mrf.mxu0
        %v1869 = vadd.f32 0.0, %v1868
        %v1870 = vpop.f32.mrf.mxu0
        %v1871 = vpop.f32.mrf.mxu0
        %v1872 = vadd.f32 0.0, %v1871
        %v1873 = vpop.f32.mrf.mxu0
        %1874 = vmatprep.mubr.bf16.mxu0 0
        %1875 = vmatmul.mubr.bf16.gmra.mxu0 %v1804
        %v1876 = vpop.f32.mrf.mxu0
        %v1877 = vadd.f32 0.0, %v1876
        %v1878 = vpop.f32.mrf.mxu0
        %v1879 = vpop.f32.mrf.mxu0
        %v1880 = vadd.f32 0.0, %v1879
        %v1881 = vpop.f32.mrf.mxu0
        %1882 = vmatprep.mubr.bf16.mxu0 0
        %1883 = vmatmul.mubr.bf16.gmra.mxu0 %v1807
        %v1884 = vpop.f32.mrf.mxu0
        %v1885 = vadd.f32 0.0, %v1884
        %v1886 = vpop.f32.mrf.mxu0
        %v1887 = vpop.f32.mrf.mxu0
        %v1888 = vadd.f32 0.0, %v1887
        %v1889 = vpop.f32.mrf.mxu0
        %1890 = vmatprep.mubr.bf16.mxu0 0
        %1891 = vmatmul.mubr.bf16.gmra.mxu0 %v1810
        %v1892 = vpop.f32.mrf.mxu0
        %v1893 = vadd.f32 0.0, %v1892
        %v1894 = vpop.f32.mrf.mxu0
        %v1895 = vpop.f32.mrf.mxu0
        %v1896 = vadd.f32 0.0, %v1895
        %v1897 = vpop.f32.mrf.mxu0
        %1898 = vmatprep.mubr.bf16.mxu0 0
        %1899 = vmatmul.mubr.bf16.gmra.mxu0 %v1813
        %v1900 = vpop.f32.mrf.mxu0
        %v1901 = vadd.f32 0.0, %v1900
        %v1902 = vpop.f32.mrf.mxu0
        %v1903 = vpop.f32.mrf.mxu0
        %v1904 = vpop.f32.mrf.mxu0
        %1905 = vdwg.mxu0
        %v1906 = vadd.f32 %v1761, %v1853
        %v1907 = vadd.f32 %v1762, %v1856
        %v1908 = vadd.f32 %v1763, %v1861
        %v1909 = vadd.f32 %v1764, %v1864
        %v1910 = vadd.f32 %v1765, %v1869
        %v1911 = vadd.f32 %v1766, %v1872
        %v1912 = vadd.f32 %v1767, %v1877
        %v1913 = vadd.f32 %v1768, %v1880
        %v1914 = vadd.f32 %v1769, %v1885
        %v1915 = vadd.f32 %v1770, %v1888
        %v1916 = vadd.f32 %v1771, %v1893
        %v1917 = vadd.f32 %v1772, %v1896
        %v1918 = vadd.f32 %v1773, %v1901
        %s1919 = scalar_lea.vmem %s219, 272
        %v1920 = vld [vmem:[%s1919] sm:$0xf]
        %v1921 = vld [vmem:[%s1919 + $0x4] sm:$0xf]
        %v1922 = vld [vmem:[%s1919 + $0x8] sm:$0xf]
        %v1923 = vld [vmem:[%s1919 + $0xc] sm:$0xf]
        %v1924 = vld [vmem:[%s1919 + $0x10] sm:$0xf]
        %v1925 = vld [vmem:[%s1919 + $0x14] sm:$0xf]
        %v1926 = vld [vmem:[%s1919 + $0x18] sm:$0xf]
        %v1927 = vld [vmem:[%s1919 + $0x1c] sm:$0xf]
        %v1928 = vld [vmem:[%s1919 + $0x20] sm:$0xf]
        %v1929 = vld [vmem:[%s1919 + $0x24] sm:$0xf]
        %v1930 = vld [vmem:[%s1919 + $0x28] sm:$0xf]
        %v1931 = vld [vmem:[%s1919 + $0x2c] sm:$0xf]
        %v1932 = vld [vmem:[%s1919 + $0x30] sm:$0xf]
        %s1933 = scalar_lea.vmem %s224, 18
        %v1934 = vld [vmem:[%s1933] sm:$0x3]
        %v1948 = vunpack.c.l.b16 %v1920
        %v1949 = vunpack.c.l.b16 %v1921
        %v1950 = vunpack.c.l.b16 %v1922
        %v1951 = vunpack.c.l.b16 %v1923
        %v1952 = vunpack.c.l.b16 %v1924
        %v1953 = vunpack.c.l.b16 %v1925
        %v1954 = vunpack.c.l.b16 %v1926
        %v1955 = vunpack.c.l.b16 %v1927
        %v1956 = vunpack.c.l.b16 %v1928
        %v1957 = vunpack.c.l.b16 %v1929
        %v1958 = vunpack.c.l.b16 %v1930
        %v1959 = vunpack.c.l.b16 %v1931
        %v1960 = vunpack.c.l.b16 %v1932
        %v1961 = vpack.c.b16 %v1949, %v1948
        %v1962 = vpack.c.b16 %v1951, %v1950
        %v1963 = vpack.c.b16 %v1953, %v1952
        %v1964 = vpack.c.b16 %v1955, %v1954
        %v1965 = vpack.c.b16 %v1957, %v1956
        %v1966 = vpack.c.b16 %v1959, %v1958
        %v1967 = vpack.c.b16 %v1960, %v1960
        %v1969 = vsel %vm293, %v1961, 0
        %v1972 = vsel %vm293, %v1962, 0
        %v1975 = vsel %vm293, %v1963, 0
        %v1978 = vsel %vm293, %v1964, 0
        %v1981 = vsel %vm293, %v1965, 0
        %v1984 = vsel %vm293, %v1966, 0
        %v1987 = vsel %vm293, %v1967, 0
        %v1990 = vsel %vm315, %v1934, 0
        %1992 = vmatprep.subr.bf16.mxu0 0
        %1993 = vmatpush1.bf16.msra.mxu0 0
        %1994 = vmatprep.subr.bf16.mxu0 0
        %1995 = vmatpush1.bf16.msra.mxu0 0
        %1996 = vmatprep.subr.bf16.mxu0 0
        %1997 = vmatpush1.bf16.msra.mxu0 0
        %1998 = vmatprep.subr.bf16.mxu0 0
        %1999 = vmatpush1.bf16.msra.mxu0 0
        %2000 = vmatprep.subr.bf16.mxu0 0
        %2001 = vmatpush1.bf16.msra.mxu0 0
        %2002 = vmatprep.subr.bf16.mxu0 0
        %2003 = vmatpush1.bf16.msra.mxu0 0
        %2004 = vmatprep.subr.bf16.mxu0 0
        %2005 = vmatpush1.bf16.msra.mxu0 0
        %2006 = vmatprep.subr.bf16.mxu0 0
        %2007 = vmatpush1.bf16.msra.mxu0 %v1990
        %2008 = vmatprep.subr.bf16.mxu0 0
        %2009 = vmatpush2.bf16.msra.mxu0 0
        %2010 = vmatprep.subr.bf16.mxu0 0
        %2011 = vmatpush2.bf16.msra.mxu0 0
        %2012 = vmatprep.subr.bf16.mxu0 0
        %2013 = vmatpush2.bf16.msra.mxu0 0
        %2014 = vmatprep.subr.bf16.mxu0 0
        %2015 = vmatpush2.bf16.msra.mxu0 0
        %2016 = vmatprep.subr.bf16.mxu0 0
        %2017 = vmatpush2.bf16.msra.mxu0 0
        %2018 = vmatprep.subr.bf16.mxu0 0
        %2019 = vmatpush2.bf16.msra.mxu0 0
        %2020 = vmatprep.subr.bf16.mxu0 0
        %2021 = vmatpush2.bf16.msra.mxu0 0
        %2022 = vmatprep.subr.bf16.mxu0 0
        %2023 = vmatpush2.bf16.msra.mxu0 0
        %2024 = vmatprep.mubr.bf16.mxu0 0
        %2025 = vmatmul.mubr.bf16.gmra.mxu0 %v1969
        %v2026 = vpop.f32.mrf.mxu0
        %v2027 = vadd.f32 0.0, %v2026
        %v2028 = vpop.f32.mrf.mxu0
        %v2029 = vpop.f32.mrf.mxu0
        %v2030 = vadd.f32 0.0, %v2029
        %v2031 = vpop.f32.mrf.mxu0
        %2032 = vmatprep.mubr.bf16.mxu0 0
        %2033 = vmatmul.mubr.bf16.gmra.mxu0 %v1972
        %v2034 = vpop.f32.mrf.mxu0
        %v2035 = vadd.f32 0.0, %v2034
        %v2036 = vpop.f32.mrf.mxu0
        %v2037 = vpop.f32.mrf.mxu0
        %v2038 = vadd.f32 0.0, %v2037
        %v2039 = vpop.f32.mrf.mxu0
        %2040 = vmatprep.mubr.bf16.mxu0 0
        %2041 = vmatmul.mubr.bf16.gmra.mxu0 %v1975
        %v2042 = vpop.f32.mrf.mxu0
        %v2043 = vadd.f32 0.0, %v2042
        %v2044 = vpop.f32.mrf.mxu0
        %v2045 = vpop.f32.mrf.mxu0
        %v2046 = vadd.f32 0.0, %v2045
        %v2047 = vpop.f32.mrf.mxu0
        %2048 = vmatprep.mubr.bf16.mxu0 0
        %2049 = vmatmul.mubr.bf16.gmra.mxu0 %v1978
        %v2050 = vpop.f32.mrf.mxu0
        %v2051 = vadd.f32 0.0, %v2050
        %v2052 = vpop.f32.mrf.mxu0
        %v2053 = vpop.f32.mrf.mxu0
        %v2054 = vadd.f32 0.0, %v2053
        %v2055 = vpop.f32.mrf.mxu0
        %2056 = vmatprep.mubr.bf16.mxu0 0
        %2057 = vmatmul.mubr.bf16.gmra.mxu0 %v1981
        %v2058 = vpop.f32.mrf.mxu0
        %v2059 = vadd.f32 0.0, %v2058
        %v2060 = vpop.f32.mrf.mxu0
        %v2061 = vpop.f32.mrf.mxu0
        %v2062 = vadd.f32 0.0, %v2061
        %v2063 = vpop.f32.mrf.mxu0
        %2064 = vmatprep.mubr.bf16.mxu0 0
        %2065 = vmatmul.mubr.bf16.gmra.mxu0 %v1984
        %v2066 = vpop.f32.mrf.mxu0
        %v2067 = vadd.f32 0.0, %v2066
        %v2068 = vpop.f32.mrf.mxu0
        %v2069 = vpop.f32.mrf.mxu0
        %v2070 = vadd.f32 0.0, %v2069
        %v2071 = vpop.f32.mrf.mxu0
        %2072 = vmatprep.mubr.bf16.mxu0 0
        %2073 = vmatmul.mubr.bf16.gmra.mxu0 %v1987
        %v2074 = vpop.f32.mrf.mxu0
        %v2075 = vadd.f32 0.0, %v2074
        %v2076 = vpop.f32.mrf.mxu0
        %v2077 = vpop.f32.mrf.mxu0
        %v2078 = vpop.f32.mrf.mxu0
        %2079 = vdwg.mxu0
        %v2080 = vadd.f32 %v1906, %v2027
        %v2081 = vadd.f32 %v1907, %v2030
        %v2082 = vadd.f32 %v1908, %v2035
        %v2083 = vadd.f32 %v1909, %v2038
        %v2084 = vadd.f32 %v1910, %v2043
        %v2085 = vadd.f32 %v1911, %v2046
        %v2086 = vadd.f32 %v1912, %v2051
        %v2087 = vadd.f32 %v1913, %v2054
        %v2088 = vadd.f32 %v1914, %v2059
        %v2089 = vadd.f32 %v1915, %v2062
        %v2090 = vadd.f32 %v1916, %v2067
        %v2091 = vadd.f32 %v1917, %v2070
        %v2092 = vadd.f32 %v1918, %v2075
        %s2093 = scalar_lea.vmem %s219, 340
        %v2094 = vld [vmem:[%s2093] sm:$0xf]
        %v2095 = vld [vmem:[%s2093 + $0x4] sm:$0xf]
        %v2096 = vld [vmem:[%s2093 + $0x8] sm:$0xf]
        %v2097 = vld [vmem:[%s2093 + $0xc] sm:$0xf]
        %v2098 = vld [vmem:[%s2093 + $0x10] sm:$0xf]
        %v2099 = vld [vmem:[%s2093 + $0x14] sm:$0xf]
        %v2100 = vld [vmem:[%s2093 + $0x18] sm:$0xf]
        %v2101 = vld [vmem:[%s2093 + $0x1c] sm:$0xf]
        %v2102 = vld [vmem:[%s2093 + $0x20] sm:$0xf]
        %v2103 = vld [vmem:[%s2093 + $0x24] sm:$0xf]
        %v2104 = vld [vmem:[%s2093 + $0x28] sm:$0xf]
        %v2105 = vld [vmem:[%s2093 + $0x2c] sm:$0xf]
        %v2106 = vld [vmem:[%s2093 + $0x30] sm:$0xf]
        %s2107 = scalar_lea.vmem %s224, 20
        %v2108 = vld [vmem:[%s2107] sm:$0x3]
        %v2122 = vunpack.c.l.b16 %v2094
        %v2123 = vunpack.c.l.b16 %v2095
        %v2124 = vunpack.c.l.b16 %v2096
        %v2125 = vunpack.c.l.b16 %v2097
        %v2126 = vunpack.c.l.b16 %v2098
        %v2127 = vunpack.c.l.b16 %v2099
        %v2128 = vunpack.c.l.b16 %v2100
        %v2129 = vunpack.c.l.b16 %v2101
        %v2130 = vunpack.c.l.b16 %v2102
        %v2131 = vunpack.c.l.b16 %v2103
        %v2132 = vunpack.c.l.b16 %v2104
        %v2133 = vunpack.c.l.b16 %v2105
        %v2134 = vunpack.c.l.b16 %v2106
        %v2135 = vpack.c.b16 %v2123, %v2122
        %v2136 = vpack.c.b16 %v2125, %v2124
        %v2137 = vpack.c.b16 %v2127, %v2126
        %v2138 = vpack.c.b16 %v2129, %v2128
        %v2139 = vpack.c.b16 %v2131, %v2130
        %v2140 = vpack.c.b16 %v2133, %v2132
        %v2141 = vpack.c.b16 %v2134, %v2134
        %v2143 = vsel %vm293, %v2135, 0
        %v2146 = vsel %vm293, %v2136, 0
        %v2149 = vsel %vm293, %v2137, 0
        %v2152 = vsel %vm293, %v2138, 0
        %v2155 = vsel %vm293, %v2139, 0
        %v2158 = vsel %vm293, %v2140, 0
        %v2161 = vsel %vm293, %v2141, 0
        %v2164 = vsel %vm315, %v2108, 0
        %2166 = vmatprep.subr.bf16.mxu0 0
        %2167 = vmatpush1.bf16.msra.mxu0 0
        %2168 = vmatprep.subr.bf16.mxu0 0
        %2169 = vmatpush1.bf16.msra.mxu0 0
        %2170 = vmatprep.subr.bf16.mxu0 0
        %2171 = vmatpush1.bf16.msra.mxu0 0
        %2172 = vmatprep.subr.bf16.mxu0 0
        %2173 = vmatpush1.bf16.msra.mxu0 0
        %2174 = vmatprep.subr.bf16.mxu0 0
        %2175 = vmatpush1.bf16.msra.mxu0 0
        %2176 = vmatprep.subr.bf16.mxu0 0
        %2177 = vmatpush1.bf16.msra.mxu0 0
        %2178 = vmatprep.subr.bf16.mxu0 0
        %2179 = vmatpush1.bf16.msra.mxu0 0
        %2180 = vmatprep.subr.bf16.mxu0 0
        %2181 = vmatpush1.bf16.msra.mxu0 %v2164
        %2182 = vmatprep.subr.bf16.mxu0 0
        %2183 = vmatpush2.bf16.msra.mxu0 0
        %2184 = vmatprep.subr.bf16.mxu0 0
        %2185 = vmatpush2.bf16.msra.mxu0 0
        %2186 = vmatprep.subr.bf16.mxu0 0
        %2187 = vmatpush2.bf16.msra.mxu0 0
        %2188 = vmatprep.subr.bf16.mxu0 0
        %2189 = vmatpush2.bf16.msra.mxu0 0
        %2190 = vmatprep.subr.bf16.mxu0 0
        %2191 = vmatpush2.bf16.msra.mxu0 0
        %2192 = vmatprep.subr.bf16.mxu0 0
        %2193 = vmatpush2.bf16.msra.mxu0 0
        %2194 = vmatprep.subr.bf16.mxu0 0
        %2195 = vmatpush2.bf16.msra.mxu0 0
        %2196 = vmatprep.subr.bf16.mxu0 0
        %2197 = vmatpush2.bf16.msra.mxu0 0
        %2198 = vmatprep.mubr.bf16.mxu0 0
        %2199 = vmatmul.mubr.bf16.gmra.mxu0 %v2143
        %v2200 = vpop.f32.mrf.mxu0
        %v2201 = vadd.f32 0.0, %v2200
        %v2202 = vpop.f32.mrf.mxu0
        %v2203 = vpop.f32.mrf.mxu0
        %v2204 = vadd.f32 0.0, %v2203
        %v2205 = vpop.f32.mrf.mxu0
        %2206 = vmatprep.mubr.bf16.mxu0 0
        %2207 = vmatmul.mubr.bf16.gmra.mxu0 %v2146
        %v2208 = vpop.f32.mrf.mxu0
        %v2209 = vadd.f32 0.0, %v2208
        %v2210 = vpop.f32.mrf.mxu0
        %v2211 = vpop.f32.mrf.mxu0
        %v2212 = vadd.f32 0.0, %v2211
        %v2213 = vpop.f32.mrf.mxu0
        %2214 = vmatprep.mubr.bf16.mxu0 0
        %2215 = vmatmul.mubr.bf16.gmra.mxu0 %v2149
        %v2216 = vpop.f32.mrf.mxu0
        %v2217 = vadd.f32 0.0, %v2216
        %v2218 = vpop.f32.mrf.mxu0
        %v2219 = vpop.f32.mrf.mxu0
        %v2220 = vadd.f32 0.0, %v2219
        %v2221 = vpop.f32.mrf.mxu0
        %2222 = vmatprep.mubr.bf16.mxu0 0
        %2223 = vmatmul.mubr.bf16.gmra.mxu0 %v2152
        %v2224 = vpop.f32.mrf.mxu0
        %v2225 = vadd.f32 0.0, %v2224
        %v2226 = vpop.f32.mrf.mxu0
        %v2227 = vpop.f32.mrf.mxu0
        %v2228 = vadd.f32 0.0, %v2227
        %v2229 = vpop.f32.mrf.mxu0
        %2230 = vmatprep.mubr.bf16.mxu0 0
        %2231 = vmatmul.mubr.bf16.gmra.mxu0 %v2155
        %v2232 = vpop.f32.mrf.mxu0
        %v2233 = vadd.f32 0.0, %v2232
        %v2234 = vpop.f32.mrf.mxu0
        %v2235 = vpop.f32.mrf.mxu0
        %v2236 = vadd.f32 0.0, %v2235
        %v2237 = vpop.f32.mrf.mxu0
        %2238 = vmatprep.mubr.bf16.mxu0 0
        %2239 = vmatmul.mubr.bf16.gmra.mxu0 %v2158
        %v2240 = vpop.f32.mrf.mxu0
        %v2241 = vadd.f32 0.0, %v2240
        %v2242 = vpop.f32.mrf.mxu0
        %v2243 = vpop.f32.mrf.mxu0
        %v2244 = vadd.f32 0.0, %v2243
        %v2245 = vpop.f32.mrf.mxu0
        %2246 = vmatprep.mubr.bf16.mxu0 0
        %2247 = vmatmul.mubr.bf16.gmra.mxu0 %v2161
        %v2248 = vpop.f32.mrf.mxu0
        %v2249 = vadd.f32 0.0, %v2248
        %v2250 = vpop.f32.mrf.mxu0
        %v2251 = vpop.f32.mrf.mxu0
        %v2252 = vpop.f32.mrf.mxu0
        %2253 = vdwg.mxu0
        %v2254 = vadd.f32 %v2080, %v2201
        %v2255 = vadd.f32 %v2081, %v2204
        %v2256 = vadd.f32 %v2082, %v2209
        %v2257 = vadd.f32 %v2083, %v2212
        %v2258 = vadd.f32 %v2084, %v2217
        %v2259 = vadd.f32 %v2085, %v2220
        %v2260 = vadd.f32 %v2086, %v2225
        %v2261 = vadd.f32 %v2087, %v2228
        %v2262 = vadd.f32 %v2088, %v2233
        %v2263 = vadd.f32 %v2089, %v2236
        %v2264 = vadd.f32 %v2090, %v2241
        %v2265 = vadd.f32 %v2091, %v2244
        %v2266 = vadd.f32 %v2092, %v2249
        %v2267 = vld [vmem:[%s1919] sm:$0xf]
        %v2268 = vld [vmem:[%s1919 + $0x4] sm:$0xf]
        %v2269 = vld [vmem:[%s1919 + $0x8] sm:$0xf]
        %v2270 = vld [vmem:[%s1919 + $0xc] sm:$0xf]
        %v2271 = vld [vmem:[%s1919 + $0x10] sm:$0xf]
        %v2272 = vld [vmem:[%s1919 + $0x14] sm:$0xf]
        %v2273 = vld [vmem:[%s1919 + $0x18] sm:$0xf]
        %v2274 = vld [vmem:[%s1919 + $0x1c] sm:$0xf]
        %v2275 = vld [vmem:[%s1919 + $0x20] sm:$0xf]
        %v2276 = vld [vmem:[%s1919 + $0x24] sm:$0xf]
        %v2277 = vld [vmem:[%s1919 + $0x28] sm:$0xf]
        %v2278 = vld [vmem:[%s1919 + $0x2c] sm:$0xf]
        %v2279 = vld [vmem:[%s1919 + $0x30] sm:$0xf]
        %v2280 = vld [vmem:[%s1919 + $0x34] sm:$0x1]
        %s2281 = scalar_lea.vmem %s224, 22
        %v2282 = vld [vmem:[%s2281] sm:$0x3]
        %v2297 = vunpack.c.l.b16 %v2267
        %v2298 = vunpack.c.l.b16 %v2268
        %v2299 = vunpack.c.l.b16 %v2269
        %v2300 = vunpack.c.l.b16 %v2270
        %v2301 = vunpack.c.l.b16 %v2271
        %v2302 = vunpack.c.l.b16 %v2272
        %v2303 = vunpack.c.l.b16 %v2273
        %v2304 = vunpack.c.l.b16 %v2274
        %v2305 = vunpack.c.l.b16 %v2275
        %v2306 = vunpack.c.l.b16 %v2276
        %v2307 = vunpack.c.l.b16 %v2277
        %v2308 = vunpack.c.l.b16 %v2278
        %v2309 = vunpack.c.l.b16 %v2279
        %v2310 = vunpack.c.l.b16 %v2280
        %v2311 = vpack.c.b16 %v2298, %v2297
        %v2312 = vpack.c.b16 %v2300, %v2299
        %v2313 = vpack.c.b16 %v2302, %v2301
        %v2314 = vpack.c.b16 %v2304, %v2303
        %v2315 = vpack.c.b16 %v2306, %v2305
        %v2316 = vpack.c.b16 %v2308, %v2307
        %v2317 = vpack.c.b16 %v2310, %v2309
        %v2319 = vshrl.u32 %v2311, 16
        %v2321 = vshll.u32 %v2311, 16
        %v2323 = vrot.slane %v2321, 1
        %v2324 = vor.u32 %v2319, %v2323
        %v2326 = vshll.u32 %v2312, 16
        %v2328 = vrot.slane %v2326, 1
        %v2329 = vsel %vm603, %v2324, %v2328
        %v2330 = vshrl.u32 %v2312, 16
        %v2332 = vor.u32 %v2330, %v2328
        %v2334 = vshll.u32 %v2313, 16
        %v2336 = vrot.slane %v2334, 1
        %v2337 = vsel %vm603, %v2332, %v2336
        %v2338 = vshrl.u32 %v2313, 16
        %v2340 = vor.u32 %v2338, %v2336
        %v2342 = vshll.u32 %v2314, 16
        %v2344 = vrot.slane %v2342, 1
        %v2345 = vsel %vm603, %v2340, %v2344
        %v2346 = vshrl.u32 %v2314, 16
        %v2348 = vor.u32 %v2346, %v2344
        %v2350 = vshll.u32 %v2315, 16
        %v2352 = vrot.slane %v2350, 1
        %v2353 = vsel %vm603, %v2348, %v2352
        %v2354 = vshrl.u32 %v2315, 16
        %v2356 = vor.u32 %v2354, %v2352
        %v2358 = vshll.u32 %v2316, 16
        %v2360 = vrot.slane %v2358, 1
        %v2361 = vsel %vm603, %v2356, %v2360
        %v2362 = vshrl.u32 %v2316, 16
        %v2364 = vor.u32 %v2362, %v2360
        %v2366 = vshll.u32 %v2317, 16
        %v2368 = vrot.slane %v2366, 1
        %v2369 = vsel %vm603, %v2364, %v2368
        %v2370 = vshrl.u32 %v2317, 16
        %v2372 = vor.u32 %v2370, %v2368
        %v2374 = vsel %vm293, %v2329, 0
        %v2377 = vsel %vm293, %v2337, 0
        %v2380 = vsel %vm293, %v2345, 0
        %v2383 = vsel %vm293, %v2353, 0
        %v2386 = vsel %vm293, %v2361, 0
        %v2389 = vsel %vm293, %v2369, 0
        %v2392 = vsel %vm293, %v2372, 0
        %v2395 = vsel %vm315, %v2282, 0
        %2397 = vmatprep.subr.bf16.mxu0 0
        %2398 = vmatpush1.bf16.msra.mxu0 0
        %2399 = vmatprep.subr.bf16.mxu0 0
        %2400 = vmatpush1.bf16.msra.mxu0 0
        %2401 = vmatprep.subr.bf16.mxu0 0
        %2402 = vmatpush1.bf16.msra.mxu0 0
        %2403 = vmatprep.subr.bf16.mxu0 0
        %2404 = vmatpush1.bf16.msra.mxu0 0
        %2405 = vmatprep.subr.bf16.mxu0 0
        %2406 = vmatpush1.bf16.msra.mxu0 0
        %2407 = vmatprep.subr.bf16.mxu0 0
        %2408 = vmatpush1.bf16.msra.mxu0 0
        %2409 = vmatprep.subr.bf16.mxu0 0
        %2410 = vmatpush1.bf16.msra.mxu0 0
        %2411 = vmatprep.subr.bf16.mxu0 0
        %2412 = vmatpush1.bf16.msra.mxu0 %v2395
        %2413 = vmatprep.subr.bf16.mxu0 0
        %2414 = vmatpush2.bf16.msra.mxu0 0
        %2415 = vmatprep.subr.bf16.mxu0 0
        %2416 = vmatpush2.bf16.msra.mxu0 0
        %2417 = vmatprep.subr.bf16.mxu0 0
        %2418 = vmatpush2.bf16.msra.mxu0 0
        %2419 = vmatprep.subr.bf16.mxu0 0
        %2420 = vmatpush2.bf16.msra.mxu0 0
        %2421 = vmatprep.subr.bf16.mxu0 0
        %2422 = vmatpush2.bf16.msra.mxu0 0
        %2423 = vmatprep.subr.bf16.mxu0 0
        %2424 = vmatpush2.bf16.msra.mxu0 0
        %2425 = vmatprep.subr.bf16.mxu0 0
        %2426 = vmatpush2.bf16.msra.mxu0 0
        %2427 = vmatprep.subr.bf16.mxu0 0
        %2428 = vmatpush2.bf16.msra.mxu0 0
        %2429 = vmatprep.mubr.bf16.mxu0 0
        %2430 = vmatmul.mubr.bf16.gmra.mxu0 %v2374
        %v2431 = vpop.f32.mrf.mxu0
        %v2432 = vadd.f32 0.0, %v2431
        %v2433 = vpop.f32.mrf.mxu0
        %v2434 = vpop.f32.mrf.mxu0
        %v2435 = vadd.f32 0.0, %v2434
        %v2436 = vpop.f32.mrf.mxu0
        %2437 = vmatprep.mubr.bf16.mxu0 0
        %2438 = vmatmul.mubr.bf16.gmra.mxu0 %v2377
        %v2439 = vpop.f32.mrf.mxu0
        %v2440 = vadd.f32 0.0, %v2439
        %v2441 = vpop.f32.mrf.mxu0
        %v2442 = vpop.f32.mrf.mxu0
        %v2443 = vadd.f32 0.0, %v2442
        %v2444 = vpop.f32.mrf.mxu0
        %2445 = vmatprep.mubr.bf16.mxu0 0
        %2446 = vmatmul.mubr.bf16.gmra.mxu0 %v2380
        %v2447 = vpop.f32.mrf.mxu0
        %v2448 = vadd.f32 0.0, %v2447
        %v2449 = vpop.f32.mrf.mxu0
        %v2450 = vpop.f32.mrf.mxu0
        %v2451 = vadd.f32 0.0, %v2450
        %v2452 = vpop.f32.mrf.mxu0
        %2453 = vmatprep.mubr.bf16.mxu0 0
        %2454 = vmatmul.mubr.bf16.gmra.mxu0 %v2383
        %v2455 = vpop.f32.mrf.mxu0
        %v2456 = vadd.f32 0.0, %v2455
        %v2457 = vpop.f32.mrf.mxu0
        %v2458 = vpop.f32.mrf.mxu0
        %v2459 = vadd.f32 0.0, %v2458
        %v2460 = vpop.f32.mrf.mxu0
        %2461 = vmatprep.mubr.bf16.mxu0 0
        %2462 = vmatmul.mubr.bf16.gmra.mxu0 %v2386
        %v2463 = vpop.f32.mrf.mxu0
        %v2464 = vadd.f32 0.0, %v2463
        %v2465 = vpop.f32.mrf.mxu0
        %v2466 = vpop.f32.mrf.mxu0
        %v2467 = vadd.f32 0.0, %v2466
        %v2468 = vpop.f32.mrf.mxu0
        %2469 = vmatprep.mubr.bf16.mxu0 0
        %2470 = vmatmul.mubr.bf16.gmra.mxu0 %v2389
        %v2471 = vpop.f32.mrf.mxu0
        %v2472 = vadd.f32 0.0, %v2471
        %v2473 = vpop.f32.mrf.mxu0
        %v2474 = vpop.f32.mrf.mxu0
        %v2475 = vadd.f32 0.0, %v2474
        %v2476 = vpop.f32.mrf.mxu0
        %2477 = vmatprep.mubr.bf16.mxu0 0
        %2478 = vmatmul.mubr.bf16.gmra.mxu0 %v2392
        %v2479 = vpop.f32.mrf.mxu0
        %v2480 = vadd.f32 0.0, %v2479
        %v2481 = vpop.f32.mrf.mxu0
        %v2482 = vpop.f32.mrf.mxu0
        %v2483 = vpop.f32.mrf.mxu0
        %2484 = vdwg.mxu0
        %v2485 = vadd.f32 %v2254, %v2432
        %v2486 = vadd.f32 %v2255, %v2435
        %v2487 = vadd.f32 %v2256, %v2440
        %v2488 = vadd.f32 %v2257, %v2443
        %v2489 = vadd.f32 %v2258, %v2448
        %v2490 = vadd.f32 %v2259, %v2451
        %v2491 = vadd.f32 %v2260, %v2456
        %v2492 = vadd.f32 %v2261, %v2459
        %v2493 = vadd.f32 %v2262, %v2464
        %v2494 = vadd.f32 %v2263, %v2467
        %v2495 = vadd.f32 %v2264, %v2472
        %v2496 = vadd.f32 %v2265, %v2475
        %v2497 = vadd.f32 %v2266, %v2480
        %s2498 = scalar_lea.vmem %s219, 408
        %v2499 = vld [vmem:[%s2498] sm:$0xf]
        %v2500 = vld [vmem:[%s2498 + $0x4] sm:$0xf]
        %v2501 = vld [vmem:[%s2498 + $0x8] sm:$0xf]
        %v2502 = vld [vmem:[%s2498 + $0xc] sm:$0xf]
        %v2503 = vld [vmem:[%s2498 + $0x10] sm:$0xf]
        %v2504 = vld [vmem:[%s2498 + $0x14] sm:$0xf]
        %v2505 = vld [vmem:[%s2498 + $0x18] sm:$0xf]
        %v2506 = vld [vmem:[%s2498 + $0x1c] sm:$0xf]
        %v2507 = vld [vmem:[%s2498 + $0x20] sm:$0xf]
        %v2508 = vld [vmem:[%s2498 + $0x24] sm:$0xf]
        %v2509 = vld [vmem:[%s2498 + $0x28] sm:$0xf]
        %v2510 = vld [vmem:[%s2498 + $0x2c] sm:$0xf]
        %v2511 = vld [vmem:[%s2498 + $0x30] sm:$0xf]
        %s2512 = scalar_lea.vmem %s224, 24
        %v2513 = vld [vmem:[%s2512] sm:$0x3]
        %v2527 = vunpack.c.l.b16 %v2499
        %v2528 = vunpack.c.l.b16 %v2500
        %v2529 = vunpack.c.l.b16 %v2501
        %v2530 = vunpack.c.l.b16 %v2502
        %v2531 = vunpack.c.l.b16 %v2503
        %v2532 = vunpack.c.l.b16 %v2504
        %v2533 = vunpack.c.l.b16 %v2505
        %v2534 = vunpack.c.l.b16 %v2506
        %v2535 = vunpack.c.l.b16 %v2507
        %v2536 = vunpack.c.l.b16 %v2508
        %v2537 = vunpack.c.l.b16 %v2509
        %v2538 = vunpack.c.l.b16 %v2510
        %v2539 = vunpack.c.l.b16 %v2511
        %v2540 = vpack.c.b16 %v2528, %v2527
        %v2541 = vpack.c.b16 %v2530, %v2529
        %v2542 = vpack.c.b16 %v2532, %v2531
        %v2543 = vpack.c.b16 %v2534, %v2533
        %v2544 = vpack.c.b16 %v2536, %v2535
        %v2545 = vpack.c.b16 %v2538, %v2537
        %v2546 = vpack.c.b16 %v2539, %v2539
        %v2548 = vsel %vm293, %v2540, 0
        %v2551 = vsel %vm293, %v2541, 0
        %v2554 = vsel %vm293, %v2542, 0
        %v2557 = vsel %vm293, %v2543, 0
        %v2560 = vsel %vm293, %v2544, 0
        %v2563 = vsel %vm293, %v2545, 0
        %v2566 = vsel %vm293, %v2546, 0
        %v2569 = vsel %vm315, %v2513, 0
        %2571 = vmatprep.subr.bf16.mxu0 0
        %2572 = vmatpush1.bf16.msra.mxu0 0
        %2573 = vmatprep.subr.bf16.mxu0 0
        %2574 = vmatpush1.bf16.msra.mxu0 0
        %2575 = vmatprep.subr.bf16.mxu0 0
        %2576 = vmatpush1.bf16.msra.mxu0 0
        %2577 = vmatprep.subr.bf16.mxu0 0
        %2578 = vmatpush1.bf16.msra.mxu0 0
        %2579 = vmatprep.subr.bf16.mxu0 0
        %2580 = vmatpush1.bf16.msra.mxu0 0
        %2581 = vmatprep.subr.bf16.mxu0 0
        %2582 = vmatpush1.bf16.msra.mxu0 0
        %2583 = vmatprep.subr.bf16.mxu0 0
        %2584 = vmatpush1.bf16.msra.mxu0 0
        %2585 = vmatprep.subr.bf16.mxu0 0
        %2586 = vmatpush1.bf16.msra.mxu0 %v2569
        %2587 = vmatprep.subr.bf16.mxu0 0
        %2588 = vmatpush2.bf16.msra.mxu0 0
        %2589 = vmatprep.subr.bf16.mxu0 0
        %2590 = vmatpush2.bf16.msra.mxu0 0
        %2591 = vmatprep.subr.bf16.mxu0 0
        %2592 = vmatpush2.bf16.msra.mxu0 0
        %2593 = vmatprep.subr.bf16.mxu0 0
        %2594 = vmatpush2.bf16.msra.mxu0 0
        %2595 = vmatprep.subr.bf16.mxu0 0
        %2596 = vmatpush2.bf16.msra.mxu0 0
        %2597 = vmatprep.subr.bf16.mxu0 0
        %2598 = vmatpush2.bf16.msra.mxu0 0
        %2599 = vmatprep.subr.bf16.mxu0 0
        %2600 = vmatpush2.bf16.msra.mxu0 0
        %2601 = vmatprep.subr.bf16.mxu0 0
        %2602 = vmatpush2.bf16.msra.mxu0 0
        %2603 = vmatprep.mubr.bf16.mxu0 0
        %2604 = vmatmul.mubr.bf16.gmra.mxu0 %v2548
        %v2605 = vpop.f32.mrf.mxu0
        %v2606 = vadd.f32 0.0, %v2605
        %v2607 = vpop.f32.mrf.mxu0
        %v2608 = vpop.f32.mrf.mxu0
        %v2609 = vadd.f32 0.0, %v2608
        %v2610 = vpop.f32.mrf.mxu0
        %2611 = vmatprep.mubr.bf16.mxu0 0
        %2612 = vmatmul.mubr.bf16.gmra.mxu0 %v2551
        %v2613 = vpop.f32.mrf.mxu0
        %v2614 = vadd.f32 0.0, %v2613
        %v2615 = vpop.f32.mrf.mxu0
        %v2616 = vpop.f32.mrf.mxu0
        %v2617 = vadd.f32 0.0, %v2616
        %v2618 = vpop.f32.mrf.mxu0
        %2619 = vmatprep.mubr.bf16.mxu0 0
        %2620 = vmatmul.mubr.bf16.gmra.mxu0 %v2554
        %v2621 = vpop.f32.mrf.mxu0
        %v2622 = vadd.f32 0.0, %v2621
        %v2623 = vpop.f32.mrf.mxu0
        %v2624 = vpop.f32.mrf.mxu0
        %v2625 = vadd.f32 0.0, %v2624
        %v2626 = vpop.f32.mrf.mxu0
        %2627 = vmatprep.mubr.bf16.mxu0 0
        %2628 = vmatmul.mubr.bf16.gmra.mxu0 %v2557
        %v2629 = vpop.f32.mrf.mxu0
        %v2630 = vadd.f32 0.0, %v2629
        %v2631 = vpop.f32.mrf.mxu0
        %v2632 = vpop.f32.mrf.mxu0
        %v2633 = vadd.f32 0.0, %v2632
        %v2634 = vpop.f32.mrf.mxu0
        %2635 = vmatprep.mubr.bf16.mxu0 0
        %2636 = vmatmul.mubr.bf16.gmra.mxu0 %v2560
        %v2637 = vpop.f32.mrf.mxu0
        %v2638 = vadd.f32 0.0, %v2637
        %v2639 = vpop.f32.mrf.mxu0
        %v2640 = vpop.f32.mrf.mxu0
        %v2641 = vadd.f32 0.0, %v2640
        %v2642 = vpop.f32.mrf.mxu0
        %2643 = vmatprep.mubr.bf16.mxu0 0
        %2644 = vmatmul.mubr.bf16.gmra.mxu0 %v2563
        %v2645 = vpop.f32.mrf.mxu0
        %v2646 = vadd.f32 0.0, %v2645
        %v2647 = vpop.f32.mrf.mxu0
        %v2648 = vpop.f32.mrf.mxu0
        %v2649 = vadd.f32 0.0, %v2648
        %v2650 = vpop.f32.mrf.mxu0
        %2651 = vmatprep.mubr.bf16.mxu0 0
        %2652 = vmatmul.mubr.bf16.gmra.mxu0 %v2566
        %v2653 = vpop.f32.mrf.mxu0
        %v2654 = vadd.f32 0.0, %v2653
        %v2655 = vpop.f32.mrf.mxu0
        %v2656 = vpop.f32.mrf.mxu0
        %v2657 = vpop.f32.mrf.mxu0
        %2658 = vdwg.mxu0
        %v2659 = vadd.f32 %v2485, %v2606
        %v2660 = vadd.f32 %v2486, %v2609
        %v2661 = vadd.f32 %v2487, %v2614
        %v2662 = vadd.f32 %v2488, %v2617
        %v2663 = vadd.f32 %v2489, %v2622
        %v2664 = vadd.f32 %v2490, %v2625
        %v2665 = vadd.f32 %v2491, %v2630
        %v2666 = vadd.f32 %v2492, %v2633
        %v2667 = vadd.f32 %v2493, %v2638
        %v2668 = vadd.f32 %v2494, %v2641
        %v2669 = vadd.f32 %v2495, %v2646
        %v2670 = vadd.f32 %v2496, %v2649
        %v2671 = vadd.f32 %v2497, %v2654
        %s2672 = scalar_lea.vmem %s219, 476
        %v2673 = vld [vmem:[%s2672] sm:$0xf]
        %v2674 = vld [vmem:[%s2672 + $0x4] sm:$0xf]
        %v2675 = vld [vmem:[%s2672 + $0x8] sm:$0xf]
        %v2676 = vld [vmem:[%s2672 + $0xc] sm:$0xf]
        %v2677 = vld [vmem:[%s2672 + $0x10] sm:$0xf]
        %v2678 = vld [vmem:[%s2672 + $0x14] sm:$0xf]
        %v2679 = vld [vmem:[%s2672 + $0x18] sm:$0xf]
        %v2680 = vld [vmem:[%s2672 + $0x1c] sm:$0xf]
        %v2681 = vld [vmem:[%s2672 + $0x20] sm:$0xf]
        %v2682 = vld [vmem:[%s2672 + $0x24] sm:$0xf]
        %v2683 = vld [vmem:[%s2672 + $0x28] sm:$0xf]
        %v2684 = vld [vmem:[%s2672 + $0x2c] sm:$0xf]
        %v2685 = vld [vmem:[%s2672 + $0x30] sm:$0xf]
        %s2686 = scalar_lea.vmem %s224, 26
        %v2687 = vld [vmem:[%s2686] sm:$0x3]
        %v2701 = vunpack.c.l.b16 %v2673
        %v2702 = vunpack.c.l.b16 %v2674
        %v2703 = vunpack.c.l.b16 %v2675
        %v2704 = vunpack.c.l.b16 %v2676
        %v2705 = vunpack.c.l.b16 %v2677
        %v2706 = vunpack.c.l.b16 %v2678
        %v2707 = vunpack.c.l.b16 %v2679
        %v2708 = vunpack.c.l.b16 %v2680
        %v2709 = vunpack.c.l.b16 %v2681
        %v2710 = vunpack.c.l.b16 %v2682
        %v2711 = vunpack.c.l.b16 %v2683
        %v2712 = vunpack.c.l.b16 %v2684
        %v2713 = vunpack.c.l.b16 %v2685
        %v2714 = vpack.c.b16 %v2702, %v2701
        %v2715 = vpack.c.b16 %v2704, %v2703
        %v2716 = vpack.c.b16 %v2706, %v2705
        %v2717 = vpack.c.b16 %v2708, %v2707
        %v2718 = vpack.c.b16 %v2710, %v2709
        %v2719 = vpack.c.b16 %v2712, %v2711
        %v2720 = vpack.c.b16 %v2713, %v2713
        %v2722 = vsel %vm293, %v2714, 0
        %v2725 = vsel %vm293, %v2715, 0
        %v2728 = vsel %vm293, %v2716, 0
        %v2731 = vsel %vm293, %v2717, 0
        %v2734 = vsel %vm293, %v2718, 0
        %v2737 = vsel %vm293, %v2719, 0
        %v2740 = vsel %vm293, %v2720, 0
        %v2743 = vsel %vm315, %v2687, 0
        %2745 = vmatprep.subr.bf16.mxu0 0
        %2746 = vmatpush1.bf16.msra.mxu0 0
        %2747 = vmatprep.subr.bf16.mxu0 0
        %2748 = vmatpush1.bf16.msra.mxu0 0
        %2749 = vmatprep.subr.bf16.mxu0 0
        %2750 = vmatpush1.bf16.msra.mxu0 0
        %2751 = vmatprep.subr.bf16.mxu0 0
        %2752 = vmatpush1.bf16.msra.mxu0 0
        %2753 = vmatprep.subr.bf16.mxu0 0
        %2754 = vmatpush1.bf16.msra.mxu0 0
        %2755 = vmatprep.subr.bf16.mxu0 0
        %2756 = vmatpush1.bf16.msra.mxu0 0
        %2757 = vmatprep.subr.bf16.mxu0 0
        %2758 = vmatpush1.bf16.msra.mxu0 0
        %2759 = vmatprep.subr.bf16.mxu0 0
        %2760 = vmatpush1.bf16.msra.mxu0 %v2743
        %2761 = vmatprep.subr.bf16.mxu0 0
        %2762 = vmatpush2.bf16.msra.mxu0 0
        %2763 = vmatprep.subr.bf16.mxu0 0
        %2764 = vmatpush2.bf16.msra.mxu0 0
        %2765 = vmatprep.subr.bf16.mxu0 0
        %2766 = vmatpush2.bf16.msra.mxu0 0
        %2767 = vmatprep.subr.bf16.mxu0 0
        %2768 = vmatpush2.bf16.msra.mxu0 0
        %2769 = vmatprep.subr.bf16.mxu0 0
        %2770 = vmatpush2.bf16.msra.mxu0 0
        %2771 = vmatprep.subr.bf16.mxu0 0
        %2772 = vmatpush2.bf16.msra.mxu0 0
        %2773 = vmatprep.subr.bf16.mxu0 0
        %2774 = vmatpush2.bf16.msra.mxu0 0
        %2775 = vmatprep.subr.bf16.mxu0 0
        %2776 = vmatpush2.bf16.msra.mxu0 0
        %2777 = vmatprep.mubr.bf16.mxu0 0
        %2778 = vmatmul.mubr.bf16.gmra.mxu0 %v2722
        %v2779 = vpop.f32.mrf.mxu0
        %v2780 = vadd.f32 0.0, %v2779
        %v2781 = vpop.f32.mrf.mxu0
        %v2782 = vpop.f32.mrf.mxu0
        %v2783 = vadd.f32 0.0, %v2782
        %v2784 = vpop.f32.mrf.mxu0
        %2785 = vmatprep.mubr.bf16.mxu0 0
        %2786 = vmatmul.mubr.bf16.gmra.mxu0 %v2725
        %v2787 = vpop.f32.mrf.mxu0
        %v2788 = vadd.f32 0.0, %v2787
        %v2789 = vpop.f32.mrf.mxu0
        %v2790 = vpop.f32.mrf.mxu0
        %v2791 = vadd.f32 0.0, %v2790
        %v2792 = vpop.f32.mrf.mxu0
        %2793 = vmatprep.mubr.bf16.mxu0 0
        %2794 = vmatmul.mubr.bf16.gmra.mxu0 %v2728
        %v2795 = vpop.f32.mrf.mxu0
        %v2796 = vadd.f32 0.0, %v2795
        %v2797 = vpop.f32.mrf.mxu0
        %v2798 = vpop.f32.mrf.mxu0
        %v2799 = vadd.f32 0.0, %v2798
        %v2800 = vpop.f32.mrf.mxu0
        %2801 = vmatprep.mubr.bf16.mxu0 0
        %2802 = vmatmul.mubr.bf16.gmra.mxu0 %v2731
        %v2803 = vpop.f32.mrf.mxu0
        %v2804 = vadd.f32 0.0, %v2803
        %v2805 = vpop.f32.mrf.mxu0
        %v2806 = vpop.f32.mrf.mxu0
        %v2807 = vadd.f32 0.0, %v2806
        %v2808 = vpop.f32.mrf.mxu0
        %2809 = vmatprep.mubr.bf16.mxu0 0
        %2810 = vmatmul.mubr.bf16.gmra.mxu0 %v2734
        %v2811 = vpop.f32.mrf.mxu0
        %v2812 = vadd.f32 0.0, %v2811
        %v2813 = vpop.f32.mrf.mxu0
        %v2814 = vpop.f32.mrf.mxu0
        %v2815 = vadd.f32 0.0, %v2814
        %v2816 = vpop.f32.mrf.mxu0
        %2817 = vmatprep.mubr.bf16.mxu0 0
        %2818 = vmatmul.mubr.bf16.gmra.mxu0 %v2737
        %v2819 = vpop.f32.mrf.mxu0
        %v2820 = vadd.f32 0.0, %v2819
        %v2821 = vpop.f32.mrf.mxu0
        %v2822 = vpop.f32.mrf.mxu0
        %v2823 = vadd.f32 0.0, %v2822
        %v2824 = vpop.f32.mrf.mxu0
        %2825 = vmatprep.mubr.bf16.mxu0 0
        %2826 = vmatmul.mubr.bf16.gmra.mxu0 %v2740
        %v2827 = vpop.f32.mrf.mxu0
        %v2828 = vadd.f32 0.0, %v2827
        %v2829 = vpop.f32.mrf.mxu0
        %v2830 = vpop.f32.mrf.mxu0
        %v2831 = vpop.f32.mrf.mxu0
        %2832 = vdwg.mxu0
        %v2833 = vadd.f32 %v2659, %v2780
        %v2834 = vadd.f32 %v2660, %v2783
        %v2835 = vadd.f32 %v2661, %v2788
        %v2836 = vadd.f32 %v2662, %v2791
        %v2837 = vadd.f32 %v2663, %v2796
        %v2838 = vadd.f32 %v2664, %v2799
        %v2839 = vadd.f32 %v2665, %v2804
        %v2840 = vadd.f32 %v2666, %v2807
        %v2841 = vadd.f32 %v2667, %v2812
        %v2842 = vadd.f32 %v2668, %v2815
        %v2843 = vadd.f32 %v2669, %v2820
        %v2844 = vadd.f32 %v2670, %v2823
        %v2845 = vadd.f32 %v2671, %v2828
        %v2846 = vld [vmem:[%s2498] sm:$0xf]
        %v2847 = vld [vmem:[%s2498 + $0x4] sm:$0xf]
        %v2848 = vld [vmem:[%s2498 + $0x8] sm:$0xf]
        %v2849 = vld [vmem:[%s2498 + $0xc] sm:$0xf]
        %v2850 = vld [vmem:[%s2498 + $0x10] sm:$0xf]
        %v2851 = vld [vmem:[%s2498 + $0x14] sm:$0xf]
        %v2852 = vld [vmem:[%s2498 + $0x18] sm:$0xf]
        %v2853 = vld [vmem:[%s2498 + $0x1c] sm:$0xf]
        %v2854 = vld [vmem:[%s2498 + $0x20] sm:$0xf]
        %v2855 = vld [vmem:[%s2498 + $0x24] sm:$0xf]
        %v2856 = vld [vmem:[%s2498 + $0x28] sm:$0xf]
        %v2857 = vld [vmem:[%s2498 + $0x2c] sm:$0xf]
        %v2858 = vld [vmem:[%s2498 + $0x30] sm:$0xf]
        %v2859 = vld [vmem:[%s2498 + $0x34] sm:$0x1]
        %s2860 = scalar_lea.vmem %s224, 28
        %v2861 = vld [vmem:[%s2860] sm:$0x3]
        %v2876 = vunpack.c.l.b16 %v2846
        %v2877 = vunpack.c.l.b16 %v2847
        %v2878 = vunpack.c.l.b16 %v2848
        %v2879 = vunpack.c.l.b16 %v2849
        %v2880 = vunpack.c.l.b16 %v2850
        %v2881 = vunpack.c.l.b16 %v2851
        %v2882 = vunpack.c.l.b16 %v2852
        %v2883 = vunpack.c.l.b16 %v2853
        %v2884 = vunpack.c.l.b16 %v2854
        %v2885 = vunpack.c.l.b16 %v2855
        %v2886 = vunpack.c.l.b16 %v2856
        %v2887 = vunpack.c.l.b16 %v2857
        %v2888 = vunpack.c.l.b16 %v2858
        %v2889 = vunpack.c.l.b16 %v2859
        %v2890 = vpack.c.b16 %v2877, %v2876
        %v2891 = vpack.c.b16 %v2879, %v2878
        %v2892 = vpack.c.b16 %v2881, %v2880
        %v2893 = vpack.c.b16 %v2883, %v2882
        %v2894 = vpack.c.b16 %v2885, %v2884
        %v2895 = vpack.c.b16 %v2887, %v2886
        %v2896 = vpack.c.b16 %v2889, %v2888
        %v2898 = vshrl.u32 %v2890, 16
        %v2900 = vshll.u32 %v2890, 16
        %v2902 = vrot.slane %v2900, 1
        %v2903 = vor.u32 %v2898, %v2902
        %v2905 = vshll.u32 %v2891, 16
        %v2907 = vrot.slane %v2905, 1
        %v2908 = vsel %vm603, %v2903, %v2907
        %v2909 = vshrl.u32 %v2891, 16
        %v2911 = vor.u32 %v2909, %v2907
        %v2913 = vshll.u32 %v2892, 16
        %v2915 = vrot.slane %v2913, 1
        %v2916 = vsel %vm603, %v2911, %v2915
        %v2917 = vshrl.u32 %v2892, 16
        %v2919 = vor.u32 %v2917, %v2915
        %v2921 = vshll.u32 %v2893, 16
        %v2923 = vrot.slane %v2921, 1
        %v2924 = vsel %vm603, %v2919, %v2923
        %v2925 = vshrl.u32 %v2893, 16
        %v2927 = vor.u32 %v2925, %v2923
        %v2929 = vshll.u32 %v2894, 16
        %v2931 = vrot.slane %v2929, 1
        %v2932 = vsel %vm603, %v2927, %v2931
        %v2933 = vshrl.u32 %v2894, 16
        %v2935 = vor.u32 %v2933, %v2931
        %v2937 = vshll.u32 %v2895, 16
        %v2939 = vrot.slane %v2937, 1
        %v2940 = vsel %vm603, %v2935, %v2939
        %v2941 = vshrl.u32 %v2895, 16
        %v2943 = vor.u32 %v2941, %v2939
        %v2945 = vshll.u32 %v2896, 16
        %v2947 = vrot.slane %v2945, 1
        %v2948 = vsel %vm603, %v2943, %v2947
        %v2949 = vshrl.u32 %v2896, 16
        %v2951 = vor.u32 %v2949, %v2947
        %v2953 = vsel %vm293, %v2908, 0
        %v2956 = vsel %vm293, %v2916, 0
        %v2959 = vsel %vm293, %v2924, 0
        %v2962 = vsel %vm293, %v2932, 0
        %v2965 = vsel %vm293, %v2940, 0
        %v2968 = vsel %vm293, %v2948, 0
        %v2971 = vsel %vm293, %v2951, 0
        %v2974 = vsel %vm315, %v2861, 0
        %2976 = vmatprep.subr.bf16.mxu0 0
        %2977 = vmatpush1.bf16.msra.mxu0 0
        %2978 = vmatprep.subr.bf16.mxu0 0
        %2979 = vmatpush1.bf16.msra.mxu0 0
        %2980 = vmatprep.subr.bf16.mxu0 0
        %2981 = vmatpush1.bf16.msra.mxu0 0
        %2982 = vmatprep.subr.bf16.mxu0 0
        %2983 = vmatpush1.bf16.msra.mxu0 0
        %2984 = vmatprep.subr.bf16.mxu0 0
        %2985 = vmatpush1.bf16.msra.mxu0 0
        %2986 = vmatprep.subr.bf16.mxu0 0
        %2987 = vmatpush1.bf16.msra.mxu0 0
        %2988 = vmatprep.subr.bf16.mxu0 0
        %2989 = vmatpush1.bf16.msra.mxu0 0
        %2990 = vmatprep.subr.bf16.mxu0 0
        %2991 = vmatpush1.bf16.msra.mxu0 %v2974
        %2992 = vmatprep.subr.bf16.mxu0 0
        %2993 = vmatpush2.bf16.msra.mxu0 0
        %2994 = vmatprep.subr.bf16.mxu0 0
        %2995 = vmatpush2.bf16.msra.mxu0 0
        %2996 = vmatprep.subr.bf16.mxu0 0
        %2997 = vmatpush2.bf16.msra.mxu0 0
        %2998 = vmatprep.subr.bf16.mxu0 0
        %2999 = vmatpush2.bf16.msra.mxu0 0
        %3000 = vmatprep.subr.bf16.mxu0 0
        %3001 = vmatpush2.bf16.msra.mxu0 0
        %3002 = vmatprep.subr.bf16.mxu0 0
        %3003 = vmatpush2.bf16.msra.mxu0 0
        %3004 = vmatprep.subr.bf16.mxu0 0
        %3005 = vmatpush2.bf16.msra.mxu0 0
        %3006 = vmatprep.subr.bf16.mxu0 0
        %3007 = vmatpush2.bf16.msra.mxu0 0
        %3008 = vmatprep.mubr.bf16.mxu0 0
        %3009 = vmatmul.mubr.bf16.gmra.mxu0 %v2953
        %v3010 = vpop.f32.mrf.mxu0
        %v3011 = vadd.f32 0.0, %v3010
        %v3012 = vpop.f32.mrf.mxu0
        %v3013 = vpop.f32.mrf.mxu0
        %v3014 = vadd.f32 0.0, %v3013
        %v3015 = vpop.f32.mrf.mxu0
        %3016 = vmatprep.mubr.bf16.mxu0 0
        %3017 = vmatmul.mubr.bf16.gmra.mxu0 %v2956
        %v3018 = vpop.f32.mrf.mxu0
        %v3019 = vadd.f32 0.0, %v3018
        %v3020 = vpop.f32.mrf.mxu0
        %v3021 = vpop.f32.mrf.mxu0
        %v3022 = vadd.f32 0.0, %v3021
        %v3023 = vpop.f32.mrf.mxu0
        %3024 = vmatprep.mubr.bf16.mxu0 0
        %3025 = vmatmul.mubr.bf16.gmra.mxu0 %v2959
        %v3026 = vpop.f32.mrf.mxu0
        %v3027 = vadd.f32 0.0, %v3026
        %v3028 = vpop.f32.mrf.mxu0
        %v3029 = vpop.f32.mrf.mxu0
        %v3030 = vadd.f32 0.0, %v3029
        %v3031 = vpop.f32.mrf.mxu0
        %3032 = vmatprep.mubr.bf16.mxu0 0
        %3033 = vmatmul.mubr.bf16.gmra.mxu0 %v2962
        %v3034 = vpop.f32.mrf.mxu0
        %v3035 = vadd.f32 0.0, %v3034
        %v3036 = vpop.f32.mrf.mxu0
        %v3037 = vpop.f32.mrf.mxu0
        %v3038 = vadd.f32 0.0, %v3037
        %v3039 = vpop.f32.mrf.mxu0
        %3040 = vmatprep.mubr.bf16.mxu0 0
        %3041 = vmatmul.mubr.bf16.gmra.mxu0 %v2965
        %v3042 = vpop.f32.mrf.mxu0
        %v3043 = vadd.f32 0.0, %v3042
        %v3044 = vpop.f32.mrf.mxu0
        %v3045 = vpop.f32.mrf.mxu0
        %v3046 = vadd.f32 0.0, %v3045
        %v3047 = vpop.f32.mrf.mxu0
        %3048 = vmatprep.mubr.bf16.mxu0 0
        %3049 = vmatmul.mubr.bf16.gmra.mxu0 %v2968
        %v3050 = vpop.f32.mrf.mxu0
        %v3051 = vadd.f32 0.0, %v3050
        %v3052 = vpop.f32.mrf.mxu0
        %v3053 = vpop.f32.mrf.mxu0
        %v3054 = vadd.f32 0.0, %v3053
        %v3055 = vpop.f32.mrf.mxu0
        %3056 = vmatprep.mubr.bf16.mxu0 0
        %3057 = vmatmul.mubr.bf16.gmra.mxu0 %v2971
        %v3058 = vpop.f32.mrf.mxu0
        %v3059 = vadd.f32 0.0, %v3058
        %v3060 = vpop.f32.mrf.mxu0
        %v3061 = vpop.f32.mrf.mxu0
        %v3062 = vpop.f32.mrf.mxu0
        %3063 = vdwg.mxu0
        %v3064 = vadd.f32 %v2833, %v3011
        %v3065 = vadd.f32 %v2834, %v3014
        %v3066 = vadd.f32 %v2835, %v3019
        %v3067 = vadd.f32 %v2836, %v3022
        %v3068 = vadd.f32 %v2837, %v3027
        %v3069 = vadd.f32 %v2838, %v3030
        %v3070 = vadd.f32 %v2839, %v3035
        %v3071 = vadd.f32 %v2840, %v3038
        %v3072 = vadd.f32 %v2841, %v3043
        %v3073 = vadd.f32 %v2842, %v3046
        %v3074 = vadd.f32 %v2843, %v3051
        %v3075 = vadd.f32 %v2844, %v3054
        %v3076 = vadd.f32 %v2845, %v3059
        %v3077 = vld [vmem:[%s1919] sm:$0xc]
        %v3078 = vld [vmem:[%s1919 + $0x34] sm:$0x7]
        %s3079 = scalar_lea.vmem %s224, 30
        %v3080 = vld [vmem:[%s3079] sm:$0x3]
        %v3083 = vunpack.c.l.b16 %v3077
        %v3084 = vunpack.c.l.b16 %v3078
        %v3085 = vpack.c.b16 %v2298, %v3083
        %v3086 = vpack.c.b16 %v3084, %v2309
        %v3088 = vshrl.u32 %v3085, 16
        %v3090 = vrot.slane %v3088, 2
        %v3091 = vshll.u32 %v3085, 16
        %v3093 = vrot.slane %v3091, 3
        %v3094 = vor.u32 %v3090, %v3093
        %v3095 = vrot.slane %v2330, 2
        %v3096 = vrot.slane %v2326, 3
        %v3097 = vor.u32 %v3095, %v3096
        %v3098 = vsel %vm1373, %v3094, %v3097
        %v3099 = vrot.slane %v2338, 2
        %v3100 = vrot.slane %v2334, 3
        %v3101 = vor.u32 %v3099, %v3100
        %v3102 = vsel %vm1373, %v3097, %v3101
        %v3103 = vrot.slane %v2346, 2
        %v3104 = vrot.slane %v2342, 3
        %v3105 = vor.u32 %v3103, %v3104
        %v3106 = vsel %vm1373, %v3101, %v3105
        %v3107 = vrot.slane %v2354, 2
        %v3108 = vrot.slane %v2350, 3
        %v3109 = vor.u32 %v3107, %v3108
        %v3110 = vsel %vm1373, %v3105, %v3109
        %v3111 = vrot.slane %v2362, 2
        %v3112 = vrot.slane %v2358, 3
        %v3113 = vor.u32 %v3111, %v3112
        %v3114 = vsel %vm1373, %v3109, %v3113
        %v3116 = vshrl.u32 %v3086, 16
        %v3118 = vrot.slane %v3116, 2
        %v3119 = vshll.u32 %v3086, 16
        %v3121 = vrot.slane %v3119, 3
        %v3122 = vor.u32 %v3118, %v3121
        %v3123 = vsel %vm1373, %v3113, %v3122
        %v3125 = vsel %vm293, %v3098, 0
        %v3128 = vsel %vm293, %v3102, 0
        %v3131 = vsel %vm293, %v3106, 0
        %v3134 = vsel %vm293, %v3110, 0
        %v3137 = vsel %vm293, %v3114, 0
        %v3140 = vsel %vm293, %v3123, 0
        %v3143 = vsel %vm293, %v3122, 0
        %v3146 = vsel %vm315, %v3080, 0
        %3148 = vmatprep.subr.bf16.mxu0 0
        %3149 = vmatpush1.bf16.msra.mxu0 0
        %3150 = vmatprep.subr.bf16.mxu0 0
        %3151 = vmatpush1.bf16.msra.mxu0 0
        %3152 = vmatprep.subr.bf16.mxu0 0
        %3153 = vmatpush1.bf16.msra.mxu0 0
        %3154 = vmatprep.subr.bf16.mxu0 0
        %3155 = vmatpush1.bf16.msra.mxu0 0
        %3156 = vmatprep.subr.bf16.mxu0 0
        %3157 = vmatpush1.bf16.msra.mxu0 0
        %3158 = vmatprep.subr.bf16.mxu0 0
        %3159 = vmatpush1.bf16.msra.mxu0 0
        %3160 = vmatprep.subr.bf16.mxu0 0
        %3161 = vmatpush1.bf16.msra.mxu0 0
        %3162 = vmatprep.subr.bf16.mxu0 0
        %3163 = vmatpush1.bf16.msra.mxu0 %v3146
        %3164 = vmatprep.subr.bf16.mxu0 0
        %3165 = vmatpush2.bf16.msra.mxu0 0
        %3166 = vmatprep.subr.bf16.mxu0 0
        %3167 = vmatpush2.bf16.msra.mxu0 0
        %3168 = vmatprep.subr.bf16.mxu0 0
        %3169 = vmatpush2.bf16.msra.mxu0 0
        %3170 = vmatprep.subr.bf16.mxu0 0
        %3171 = vmatpush2.bf16.msra.mxu0 0
        %3172 = vmatprep.subr.bf16.mxu0 0
        %3173 = vmatpush2.bf16.msra.mxu0 0
        %3174 = vmatprep.subr.bf16.mxu0 0
        %3175 = vmatpush2.bf16.msra.mxu0 0
        %3176 = vmatprep.subr.bf16.mxu0 0
        %3177 = vmatpush2.bf16.msra.mxu0 0
        %3178 = vmatprep.subr.bf16.mxu0 0
        %3179 = vmatpush2.bf16.msra.mxu0 0
        %3180 = vmatprep.mubr.bf16.mxu0 0
        %3181 = vmatmul.mubr.bf16.gmra.mxu0 %v3125
        %v3182 = vpop.f32.mrf.mxu0
        %v3183 = vadd.f32 0.0, %v3182
        %v3184 = vpop.f32.mrf.mxu0
        %v3185 = vpop.f32.mrf.mxu0
        %v3186 = vadd.f32 0.0, %v3185
        %v3187 = vpop.f32.mrf.mxu0
        %3188 = vmatprep.mubr.bf16.mxu0 0
        %3189 = vmatmul.mubr.bf16.gmra.mxu0 %v3128
        %v3190 = vpop.f32.mrf.mxu0
        %v3191 = vadd.f32 0.0, %v3190
        %v3192 = vpop.f32.mrf.mxu0
        %v3193 = vpop.f32.mrf.mxu0
        %v3194 = vadd.f32 0.0, %v3193
        %v3195 = vpop.f32.mrf.mxu0
        %3196 = vmatprep.mubr.bf16.mxu0 0
        %3197 = vmatmul.mubr.bf16.gmra.mxu0 %v3131
        %v3198 = vpop.f32.mrf.mxu0
        %v3199 = vadd.f32 0.0, %v3198
        %v3200 = vpop.f32.mrf.mxu0
        %v3201 = vpop.f32.mrf.mxu0
        %v3202 = vadd.f32 0.0, %v3201
        %v3203 = vpop.f32.mrf.mxu0
        %3204 = vmatprep.mubr.bf16.mxu0 0
        %3205 = vmatmul.mubr.bf16.gmra.mxu0 %v3134
        %v3206 = vpop.f32.mrf.mxu0
        %v3207 = vadd.f32 0.0, %v3206
        %v3208 = vpop.f32.mrf.mxu0
        %v3209 = vpop.f32.mrf.mxu0
        %v3210 = vadd.f32 0.0, %v3209
        %v3211 = vpop.f32.mrf.mxu0
        %3212 = vmatprep.mubr.bf16.mxu0 0
        %3213 = vmatmul.mubr.bf16.gmra.mxu0 %v3137
        %v3214 = vpop.f32.mrf.mxu0
        %v3215 = vadd.f32 0.0, %v3214
        %v3216 = vpop.f32.mrf.mxu0
        %v3217 = vpop.f32.mrf.mxu0
        %v3218 = vadd.f32 0.0, %v3217
        %v3219 = vpop.f32.mrf.mxu0
        %3220 = vmatprep.mubr.bf16.mxu0 0
        %3221 = vmatmul.mubr.bf16.gmra.mxu0 %v3140
        %v3222 = vpop.f32.mrf.mxu0
        %v3223 = vadd.f32 0.0, %v3222
        %v3224 = vpop.f32.mrf.mxu0
        %v3225 = vpop.f32.mrf.mxu0
        %v3226 = vadd.f32 0.0, %v3225
        %v3227 = vpop.f32.mrf.mxu0
        %3228 = vmatprep.mubr.bf16.mxu0 0
        %3229 = vmatmul.mubr.bf16.gmra.mxu0 %v3143
        %v3230 = vpop.f32.mrf.mxu0
        %v3231 = vadd.f32 0.0, %v3230
        %v3232 = vpop.f32.mrf.mxu0
        %v3233 = vpop.f32.mrf.mxu0
        %v3234 = vpop.f32.mrf.mxu0
        %3235 = vdwg.mxu0
        %v3236 = vadd.f32 %v3064, %v3183
        %v3237 = vadd.f32 %v3065, %v3186
        %v3238 = vadd.f32 %v3066, %v3191
        %v3239 = vadd.f32 %v3067, %v3194
        %v3240 = vadd.f32 %v3068, %v3199
        %v3241 = vadd.f32 %v3069, %v3202
        %v3242 = vadd.f32 %v3070, %v3207
        %v3243 = vadd.f32 %v3071, %v3210
        %v3244 = vadd.f32 %v3072, %v3215
        %v3245 = vadd.f32 %v3073, %v3218
        %v3246 = vadd.f32 %v3074, %v3223
        %v3247 = vadd.f32 %v3075, %v3226
        %v3248 = vadd.f32 %v3076, %v3231
        %v3249 = vld [vmem:[%s2093] sm:$0xc]
        %v3250 = vld [vmem:[%s2093 + $0x4] sm:$0xf]
        %v3251 = vld [vmem:[%s2093 + $0x8] sm:$0xf]
        %v3252 = vld [vmem:[%s2093 + $0xc] sm:$0xf]
        %v3253 = vld [vmem:[%s2093 + $0x10] sm:$0xf]
        %v3254 = vld [vmem:[%s2093 + $0x14] sm:$0xf]
        %v3255 = vld [vmem:[%s2093 + $0x18] sm:$0xf]
        %v3256 = vld [vmem:[%s2093 + $0x1c] sm:$0xf]
        %v3257 = vld [vmem:[%s2093 + $0x20] sm:$0xf]
        %v3258 = vld [vmem:[%s2093 + $0x24] sm:$0xf]
        %v3259 = vld [vmem:[%s2093 + $0x28] sm:$0xf]
        %v3260 = vld [vmem:[%s2093 + $0x2c] sm:$0xf]
        %v3261 = vld [vmem:[%s2093 + $0x30] sm:$0xf]
        %v3262 = vld [vmem:[%s2093 + $0x34] sm:$0x7]
        %s3263 = scalar_lea.vmem %s224, 32
        %v3264 = vld [vmem:[%s3263] sm:$0x3]
        %v3279 = vunpack.c.l.b16 %v3249
        %v3280 = vunpack.c.l.b16 %v3250
        %v3281 = vunpack.c.l.b16 %v3251
        %v3282 = vunpack.c.l.b16 %v3252
        %v3283 = vunpack.c.l.b16 %v3253
        %v3284 = vunpack.c.l.b16 %v3254
        %v3285 = vunpack.c.l.b16 %v3255
        %v3286 = vunpack.c.l.b16 %v3256
        %v3287 = vunpack.c.l.b16 %v3257
        %v3288 = vunpack.c.l.b16 %v3258
        %v3289 = vunpack.c.l.b16 %v3259
        %v3290 = vunpack.c.l.b16 %v3260
        %v3291 = vunpack.c.l.b16 %v3261
        %v3292 = vunpack.c.l.b16 %v3262
        %v3293 = vpack.c.b16 %v3280, %v3279
        %v3294 = vpack.c.b16 %v3282, %v3281
        %v3295 = vpack.c.b16 %v3284, %v3283
        %v3296 = vpack.c.b16 %v3286, %v3285
        %v3297 = vpack.c.b16 %v3288, %v3287
        %v3298 = vpack.c.b16 %v3290, %v3289
        %v3299 = vpack.c.b16 %v3292, %v3291
        %v3301 = vshrl.u32 %v3293, 16
        %v3303 = vrot.slane %v3301, 2
        %v3304 = vshll.u32 %v3293, 16
        %v3306 = vrot.slane %v3304, 3
        %v3307 = vor.u32 %v3303, %v3306
        %v3309 = vshrl.u32 %v3294, 16
        %v3311 = vrot.slane %v3309, 2
        %v3312 = vshll.u32 %v3294, 16
        %v3314 = vrot.slane %v3312, 3
        %v3315 = vor.u32 %v3311, %v3314
        %v3316 = vsel %vm1373, %v3307, %v3315
        %v3318 = vshrl.u32 %v3295, 16
        %v3320 = vrot.slane %v3318, 2
        %v3321 = vshll.u32 %v3295, 16
        %v3323 = vrot.slane %v3321, 3
        %v3324 = vor.u32 %v3320, %v3323
        %v3325 = vsel %vm1373, %v3315, %v3324
        %v3327 = vshrl.u32 %v3296, 16
        %v3329 = vrot.slane %v3327, 2
        %v3330 = vshll.u32 %v3296, 16
        %v3332 = vrot.slane %v3330, 3
        %v3333 = vor.u32 %v3329, %v3332
        %v3334 = vsel %vm1373, %v3324, %v3333
        %v3336 = vshrl.u32 %v3297, 16
        %v3338 = vrot.slane %v3336, 2
        %v3339 = vshll.u32 %v3297, 16
        %v3341 = vrot.slane %v3339, 3
        %v3342 = vor.u32 %v3338, %v3341
        %v3343 = vsel %vm1373, %v3333, %v3342
        %v3345 = vshrl.u32 %v3298, 16
        %v3347 = vrot.slane %v3345, 2
        %v3348 = vshll.u32 %v3298, 16
        %v3350 = vrot.slane %v3348, 3
        %v3351 = vor.u32 %v3347, %v3350
        %v3352 = vsel %vm1373, %v3342, %v3351
        %v3354 = vshrl.u32 %v3299, 16
        %v3356 = vrot.slane %v3354, 2
        %v3357 = vshll.u32 %v3299, 16
        %v3359 = vrot.slane %v3357, 3
        %v3360 = vor.u32 %v3356, %v3359
        %v3361 = vsel %vm1373, %v3351, %v3360
        %v3363 = vsel %vm293, %v3316, 0
        %v3366 = vsel %vm293, %v3325, 0
        %v3369 = vsel %vm293, %v3334, 0
        %v3372 = vsel %vm293, %v3343, 0
        %v3375 = vsel %vm293, %v3352, 0
        %v3378 = vsel %vm293, %v3361, 0
        %v3381 = vsel %vm293, %v3360, 0
        %v3384 = vsel %vm315, %v3264, 0
        %3386 = vmatprep.subr.bf16.mxu0 0
        %3387 = vmatpush1.bf16.msra.mxu0 0
        %3388 = vmatprep.subr.bf16.mxu0 0
        %3389 = vmatpush1.bf16.msra.mxu0 0
        %3390 = vmatprep.subr.bf16.mxu0 0
        %3391 = vmatpush1.bf16.msra.mxu0 0
        %3392 = vmatprep.subr.bf16.mxu0 0
        %3393 = vmatpush1.bf16.msra.mxu0 0
        %3394 = vmatprep.subr.bf16.mxu0 0
        %3395 = vmatpush1.bf16.msra.mxu0 0
        %3396 = vmatprep.subr.bf16.mxu0 0
        %3397 = vmatpush1.bf16.msra.mxu0 0
        %3398 = vmatprep.subr.bf16.mxu0 0
        %3399 = vmatpush1.bf16.msra.mxu0 0
        %3400 = vmatprep.subr.bf16.mxu0 0
        %3401 = vmatpush1.bf16.msra.mxu0 %v3384
        %3402 = vmatprep.subr.bf16.mxu0 0
        %3403 = vmatpush2.bf16.msra.mxu0 0
        %3404 = vmatprep.subr.bf16.mxu0 0
        %3405 = vmatpush2.bf16.msra.mxu0 0
        %3406 = vmatprep.subr.bf16.mxu0 0
        %3407 = vmatpush2.bf16.msra.mxu0 0
        %3408 = vmatprep.subr.bf16.mxu0 0
        %3409 = vmatpush2.bf16.msra.mxu0 0
        %3410 = vmatprep.subr.bf16.mxu0 0
        %3411 = vmatpush2.bf16.msra.mxu0 0
        %3412 = vmatprep.subr.bf16.mxu0 0
        %3413 = vmatpush2.bf16.msra.mxu0 0
        %3414 = vmatprep.subr.bf16.mxu0 0
        %3415 = vmatpush2.bf16.msra.mxu0 0
        %3416 = vmatprep.subr.bf16.mxu0 0
        %3417 = vmatpush2.bf16.msra.mxu0 0
        %3418 = vmatprep.mubr.bf16.mxu0 0
        %3419 = vmatmul.mubr.bf16.gmra.mxu0 %v3363
        %v3420 = vpop.f32.mrf.mxu0
        %v3421 = vadd.f32 0.0, %v3420
        %v3422 = vpop.f32.mrf.mxu0
        %v3423 = vpop.f32.mrf.mxu0
        %v3424 = vadd.f32 0.0, %v3423
        %v3425 = vpop.f32.mrf.mxu0
        %3426 = vmatprep.mubr.bf16.mxu0 0
        %3427 = vmatmul.mubr.bf16.gmra.mxu0 %v3366
        %v3428 = vpop.f32.mrf.mxu0
        %v3429 = vadd.f32 0.0, %v3428
        %v3430 = vpop.f32.mrf.mxu0
        %v3431 = vpop.f32.mrf.mxu0
        %v3432 = vadd.f32 0.0, %v3431
        %v3433 = vpop.f32.mrf.mxu0
        %3434 = vmatprep.mubr.bf16.mxu0 0
        %3435 = vmatmul.mubr.bf16.gmra.mxu0 %v3369
        %v3436 = vpop.f32.mrf.mxu0
        %v3437 = vadd.f32 0.0, %v3436
        %v3438 = vpop.f32.mrf.mxu0
        %v3439 = vpop.f32.mrf.mxu0
        %v3440 = vadd.f32 0.0, %v3439
        %v3441 = vpop.f32.mrf.mxu0
        %3442 = vmatprep.mubr.bf16.mxu0 0
        %3443 = vmatmul.mubr.bf16.gmra.mxu0 %v3372
        %v3444 = vpop.f32.mrf.mxu0
        %v3445 = vadd.f32 0.0, %v3444
        %v3446 = vpop.f32.mrf.mxu0
        %v3447 = vpop.f32.mrf.mxu0
        %v3448 = vadd.f32 0.0, %v3447
        %v3449 = vpop.f32.mrf.mxu0
        %3450 = vmatprep.mubr.bf16.mxu0 0
        %3451 = vmatmul.mubr.bf16.gmra.mxu0 %v3375
        %v3452 = vpop.f32.mrf.mxu0
        %v3453 = vadd.f32 0.0, %v3452
        %v3454 = vpop.f32.mrf.mxu0
        %v3455 = vpop.f32.mrf.mxu0
        %v3456 = vadd.f32 0.0, %v3455
        %v3457 = vpop.f32.mrf.mxu0
        %3458 = vmatprep.mubr.bf16.mxu0 0
        %3459 = vmatmul.mubr.bf16.gmra.mxu0 %v3378
        %v3460 = vpop.f32.mrf.mxu0
        %v3461 = vadd.f32 0.0, %v3460
        %v3462 = vpop.f32.mrf.mxu0
        %v3463 = vpop.f32.mrf.mxu0
        %v3464 = vadd.f32 0.0, %v3463
        %v3465 = vpop.f32.mrf.mxu0
        %3466 = vmatprep.mubr.bf16.mxu0 0
        %3467 = vmatmul.mubr.bf16.gmra.mxu0 %v3381
        %v3468 = vpop.f32.mrf.mxu0
        %v3469 = vadd.f32 0.0, %v3468
        %v3470 = vpop.f32.mrf.mxu0
        %v3471 = vpop.f32.mrf.mxu0
        %v3472 = vpop.f32.mrf.mxu0
        %3473 = vdwg.mxu0
        %v3474 = vadd.f32 %v3236, %v3421
        %v3475 = vadd.f32 %v3237, %v3424
        %v3476 = vadd.f32 %v3238, %v3429
        %v3477 = vadd.f32 %v3239, %v3432
        %v3478 = vadd.f32 %v3240, %v3437
        %v3479 = vadd.f32 %v3241, %v3440
        %v3480 = vadd.f32 %v3242, %v3445
        %v3481 = vadd.f32 %v3243, %v3448
        %v3482 = vadd.f32 %v3244, %v3453
        %v3483 = vadd.f32 %v3245, %v3456
        %v3484 = vadd.f32 %v3246, %v3461
        %v3485 = vadd.f32 %v3247, %v3464
        %v3486 = vadd.f32 %v3248, %v3469
        %v3487 = vld [vmem:[%s1919] sm:$0x8]
        %s3488 = scalar_lea.vmem %s224, 34
        %v3489 = vld [vmem:[%s3488] sm:$0x3]
        %v3491 = vunpack.c.l.b16 %v3487
        %v3492 = vpack.c.b16 %v2298, %v3491
        %v3493 = vrot.slane %v3492, 3
        %v3494 = vrot.slane %v2312, 3
        %v3495 = vsel %vm1780, %v3493, %v3494
        %v3496 = vrot.slane %v2313, 3
        %v3497 = vsel %vm1780, %v3494, %v3496
        %v3498 = vrot.slane %v2314, 3
        %v3499 = vsel %vm1780, %v3496, %v3498
        %v3500 = vrot.slane %v2315, 3
        %v3501 = vsel %vm1780, %v3498, %v3500
        %v3502 = vrot.slane %v2316, 3
        %v3503 = vsel %vm1780, %v3500, %v3502
        %v3504 = vrot.slane %v3086, 3
        %v3505 = vsel %vm1780, %v3502, %v3504
        %v3507 = vsel %vm293, %v3495, 0
        %v3510 = vsel %vm293, %v3497, 0
        %v3513 = vsel %vm293, %v3499, 0
        %v3516 = vsel %vm293, %v3501, 0
        %v3519 = vsel %vm293, %v3503, 0
        %v3522 = vsel %vm293, %v3505, 0
        %v3525 = vsel %vm293, %v3504, 0
        %v3528 = vsel %vm315, %v3489, 0
        %3530 = vmatprep.subr.bf16.mxu0 0
        %3531 = vmatpush1.bf16.msra.mxu0 0
        %3532 = vmatprep.subr.bf16.mxu0 0
        %3533 = vmatpush1.bf16.msra.mxu0 0
        %3534 = vmatprep.subr.bf16.mxu0 0
        %3535 = vmatpush1.bf16.msra.mxu0 0
        %3536 = vmatprep.subr.bf16.mxu0 0
        %3537 = vmatpush1.bf16.msra.mxu0 0
        %3538 = vmatprep.subr.bf16.mxu0 0
        %3539 = vmatpush1.bf16.msra.mxu0 0
        %3540 = vmatprep.subr.bf16.mxu0 0
        %3541 = vmatpush1.bf16.msra.mxu0 0
        %3542 = vmatprep.subr.bf16.mxu0 0
        %3543 = vmatpush1.bf16.msra.mxu0 0
        %3544 = vmatprep.subr.bf16.mxu0 0
        %3545 = vmatpush1.bf16.msra.mxu0 %v3528
        %3546 = vmatprep.subr.bf16.mxu0 0
        %3547 = vmatpush2.bf16.msra.mxu0 0
        %3548 = vmatprep.subr.bf16.mxu0 0
        %3549 = vmatpush2.bf16.msra.mxu0 0
        %3550 = vmatprep.subr.bf16.mxu0 0
        %3551 = vmatpush2.bf16.msra.mxu0 0
        %3552 = vmatprep.subr.bf16.mxu0 0
        %3553 = vmatpush2.bf16.msra.mxu0 0
        %3554 = vmatprep.subr.bf16.mxu0 0
        %3555 = vmatpush2.bf16.msra.mxu0 0
        %3556 = vmatprep.subr.bf16.mxu0 0
        %3557 = vmatpush2.bf16.msra.mxu0 0
        %3558 = vmatprep.subr.bf16.mxu0 0
        %3559 = vmatpush2.bf16.msra.mxu0 0
        %3560 = vmatprep.subr.bf16.mxu0 0
        %3561 = vmatpush2.bf16.msra.mxu0 0
        %3562 = vmatprep.mubr.bf16.mxu0 0
        %3563 = vmatmul.mubr.bf16.gmra.mxu0 %v3507
        %v3564 = vpop.f32.mrf.mxu0
        %v3565 = vadd.f32 0.0, %v3564
        %v3566 = vpop.f32.mrf.mxu0
        %v3567 = vpop.f32.mrf.mxu0
        %v3568 = vadd.f32 0.0, %v3567
        %v3569 = vpop.f32.mrf.mxu0
        %3570 = vmatprep.mubr.bf16.mxu0 0
        %3571 = vmatmul.mubr.bf16.gmra.mxu0 %v3510
        %v3572 = vpop.f32.mrf.mxu0
        %v3573 = vadd.f32 0.0, %v3572
        %v3574 = vpop.f32.mrf.mxu0
        %v3575 = vpop.f32.mrf.mxu0
        %v3576 = vadd.f32 0.0, %v3575
        %v3577 = vpop.f32.mrf.mxu0
        %3578 = vmatprep.mubr.bf16.mxu0 0
        %3579 = vmatmul.mubr.bf16.gmra.mxu0 %v3513
        %v3580 = vpop.f32.mrf.mxu0
        %v3581 = vadd.f32 0.0, %v3580
        %v3582 = vpop.f32.mrf.mxu0
        %v3583 = vpop.f32.mrf.mxu0
        %v3584 = vadd.f32 0.0, %v3583
        %v3585 = vpop.f32.mrf.mxu0
        %3586 = vmatprep.mubr.bf16.mxu0 0
        %3587 = vmatmul.mubr.bf16.gmra.mxu0 %v3516
        %v3588 = vpop.f32.mrf.mxu0
        %v3589 = vadd.f32 0.0, %v3588
        %v3590 = vpop.f32.mrf.mxu0
        %v3591 = vpop.f32.mrf.mxu0
        %v3592 = vadd.f32 0.0, %v3591
        %v3593 = vpop.f32.mrf.mxu0
        %3594 = vmatprep.mubr.bf16.mxu0 0
        %3595 = vmatmul.mubr.bf16.gmra.mxu0 %v3519
        %v3596 = vpop.f32.mrf.mxu0
        %v3597 = vadd.f32 0.0, %v3596
        %v3598 = vpop.f32.mrf.mxu0
        %v3599 = vpop.f32.mrf.mxu0
        %v3600 = vadd.f32 0.0, %v3599
        %v3601 = vpop.f32.mrf.mxu0
        %3602 = vmatprep.mubr.bf16.mxu0 0
        %3603 = vmatmul.mubr.bf16.gmra.mxu0 %v3522
        %v3604 = vpop.f32.mrf.mxu0
        %v3605 = vadd.f32 0.0, %v3604
        %v3606 = vpop.f32.mrf.mxu0
        %v3607 = vpop.f32.mrf.mxu0
        %v3608 = vadd.f32 0.0, %v3607
        %v3609 = vpop.f32.mrf.mxu0
        %3610 = vmatprep.mubr.bf16.mxu0 0
        %3611 = vmatmul.mubr.bf16.gmra.mxu0 %v3525
        %v3612 = vpop.f32.mrf.mxu0
        %v3613 = vadd.f32 0.0, %v3612
        %v3614 = vpop.f32.mrf.mxu0
        %v3615 = vpop.f32.mrf.mxu0
        %v3616 = vpop.f32.mrf.mxu0
        %3617 = vdwg.mxu0
        %v3618 = vadd.f32 %v3474, %v3565
        %v3619 = vadd.f32 %v3475, %v3568
        %v3620 = vadd.f32 %v3476, %v3573
        %v3621 = vadd.f32 %v3477, %v3576
        %v3622 = vadd.f32 %v3478, %v3581
        %v3623 = vadd.f32 %v3479, %v3584
        %v3624 = vadd.f32 %v3480, %v3589
        %v3625 = vadd.f32 %v3481, %v3592
        %v3626 = vadd.f32 %v3482, %v3597
        %v3627 = vadd.f32 %v3483, %v3600
        %v3628 = vadd.f32 %v3484, %v3605
        %v3629 = vadd.f32 %v3485, %v3608
        %v3630 = vadd.f32 %v3486, %v3613
        %v3631 = vld [vmem:[%s219 + $0xc] sm:$0xf]
        %v3632 = vld [vmem:[%s219 + $0x10] sm:$0xf]
        %v3633 = vld [vmem:[%s219 + $0x14] sm:$0xf]
        %v3634 = vld [vmem:[%s219 + $0x18] sm:$0xf]
        %v3635 = vld [vmem:[%s219 + $0x1c] sm:$0xf]
        %v3636 = vld [vmem:[%s219 + $0x20] sm:$0xf]
        %v3637 = vld [vmem:[%s219 + $0x24] sm:$0xf]
        %v3638 = vld [vmem:[%s219 + $0x28] sm:$0xf]
        %v3639 = vld [vmem:[%s219 + $0x2c] sm:$0xf]
        %v3640 = vld [vmem:[%s219 + $0x30] sm:$0xf]
        %v3641 = vld [vmem:[%s219 + $0x34] sm:$0xf]
        %v3642 = vld [vmem:[%s219 + $0x38] sm:$0xf]
        %v3643 = vld [vmem:[%s219 + $0x3c] sm:$0xf]
        %v3644 = vld [vmem:[%s219 + $0x40] sm:$0x1]
        %s3645 = scalar_lea.vmem %s224, 36
        %v3646 = vld [vmem:[%s3645] sm:$0x3]
        %v3661 = vunpack.c.l.b16 %v3631
        %v3662 = vunpack.c.l.b16 %v3632
        %v3663 = vunpack.c.l.b16 %v3633
        %v3664 = vunpack.c.l.b16 %v3634
        %v3665 = vunpack.c.l.b16 %v3635
        %v3666 = vunpack.c.l.b16 %v3636
        %v3667 = vunpack.c.l.b16 %v3637
        %v3668 = vunpack.c.l.b16 %v3638
        %v3669 = vunpack.c.l.b16 %v3639
        %v3670 = vunpack.c.l.b16 %v3640
        %v3671 = vunpack.c.l.b16 %v3641
        %v3672 = vunpack.c.l.b16 %v3642
        %v3673 = vunpack.c.l.b16 %v3643
        %v3674 = vunpack.c.l.b16 %v3644
        %v3675 = vpack.c.b16 %v3662, %v3661
        %v3676 = vpack.c.b16 %v3664, %v3663
        %v3677 = vpack.c.b16 %v3666, %v3665
        %v3678 = vpack.c.b16 %v3668, %v3667
        %v3679 = vpack.c.b16 %v3670, %v3669
        %v3680 = vpack.c.b16 %v3672, %v3671
        %v3681 = vpack.c.b16 %v3674, %v3673
        %v3683 = vshrl.u32 %v3675, 16
        %v3685 = vshll.u32 %v3675, 16
        %v3687 = vrot.slane %v3685, 1
        %v3688 = vor.u32 %v3683, %v3687
        %v3690 = vshll.u32 %v3676, 16
        %v3692 = vrot.slane %v3690, 1
        %v3693 = vsel %vm603, %v3688, %v3692
        %v3694 = vshrl.u32 %v3676, 16
        %v3696 = vor.u32 %v3694, %v3692
        %v3698 = vshll.u32 %v3677, 16
        %v3700 = vrot.slane %v3698, 1
        %v3701 = vsel %vm603, %v3696, %v3700
        %v3702 = vshrl.u32 %v3677, 16
        %v3704 = vor.u32 %v3702, %v3700
        %v3706 = vshll.u32 %v3678, 16
        %v3708 = vrot.slane %v3706, 1
        %v3709 = vsel %vm603, %v3704, %v3708
        %v3710 = vshrl.u32 %v3678, 16
        %v3712 = vor.u32 %v3710, %v3708
        %v3714 = vshll.u32 %v3679, 16
        %v3716 = vrot.slane %v3714, 1
        %v3717 = vsel %vm603, %v3712, %v3716
        %v3718 = vshrl.u32 %v3679, 16
        %v3720 = vor.u32 %v3718, %v3716
        %v3722 = vshll.u32 %v3680, 16
        %v3724 = vrot.slane %v3722, 1
        %v3725 = vsel %vm603, %v3720, %v3724
        %v3726 = vshrl.u32 %v3680, 16
        %v3728 = vor.u32 %v3726, %v3724
        %v3730 = vshll.u32 %v3681, 16
        %v3732 = vrot.slane %v3730, 1
        %v3733 = vsel %vm603, %v3728, %v3732
        %v3734 = vshrl.u32 %v3681, 16
        %v3736 = vor.u32 %v3734, %v3732
        %v3738 = vsel %vm293, %v3693, 0
        %v3741 = vsel %vm293, %v3701, 0
        %v3744 = vsel %vm293, %v3709, 0
        %v3747 = vsel %vm293, %v3717, 0
        %v3750 = vsel %vm293, %v3725, 0
        %v3753 = vsel %vm293, %v3733, 0
        %v3756 = vsel %vm293, %v3736, 0
        %v3759 = vsel %vm315, %v3646, 0
        %3761 = vmatprep.subr.bf16.mxu0 0
        %3762 = vmatpush1.bf16.msra.mxu0 0
        %3763 = vmatprep.subr.bf16.mxu0 0
        %3764 = vmatpush1.bf16.msra.mxu0 0
        %3765 = vmatprep.subr.bf16.mxu0 0
        %3766 = vmatpush1.bf16.msra.mxu0 0
        %3767 = vmatprep.subr.bf16.mxu0 0
        %3768 = vmatpush1.bf16.msra.mxu0 0
        %3769 = vmatprep.subr.bf16.mxu0 0
        %3770 = vmatpush1.bf16.msra.mxu0 0
        %3771 = vmatprep.subr.bf16.mxu0 0
        %3772 = vmatpush1.bf16.msra.mxu0 0
        %3773 = vmatprep.subr.bf16.mxu0 0
        %3774 = vmatpush1.bf16.msra.mxu0 0
        %3775 = vmatprep.subr.bf16.mxu0 0
        %3776 = vmatpush1.bf16.msra.mxu0 %v3759
        %3777 = vmatprep.subr.bf16.mxu0 0
        %3778 = vmatpush2.bf16.msra.mxu0 0
        %3779 = vmatprep.subr.bf16.mxu0 0
        %3780 = vmatpush2.bf16.msra.mxu0 0
        %3781 = vmatprep.subr.bf16.mxu0 0
        %3782 = vmatpush2.bf16.msra.mxu0 0
        %3783 = vmatprep.subr.bf16.mxu0 0
        %3784 = vmatpush2.bf16.msra.mxu0 0
        %3785 = vmatprep.subr.bf16.mxu0 0
        %3786 = vmatpush2.bf16.msra.mxu0 0
        %3787 = vmatprep.subr.bf16.mxu0 0
        %3788 = vmatpush2.bf16.msra.mxu0 0
        %3789 = vmatprep.subr.bf16.mxu0 0
        %3790 = vmatpush2.bf16.msra.mxu0 0
        %3791 = vmatprep.subr.bf16.mxu0 0
        %3792 = vmatpush2.bf16.msra.mxu0 0
        %3793 = vmatprep.mubr.bf16.mxu0 0
        %3794 = vmatmul.mubr.bf16.gmra.mxu0 %v3738
        %v3795 = vpop.f32.mrf.mxu0
        %v3796 = vadd.f32 0.0, %v3795
        %v3797 = vpop.f32.mrf.mxu0
        %v3798 = vpop.f32.mrf.mxu0
        %v3799 = vadd.f32 0.0, %v3798
        %v3800 = vpop.f32.mrf.mxu0
        %3801 = vmatprep.mubr.bf16.mxu0 0
        %3802 = vmatmul.mubr.bf16.gmra.mxu0 %v3741
        %v3803 = vpop.f32.mrf.mxu0
        %v3804 = vadd.f32 0.0, %v3803
        %v3805 = vpop.f32.mrf.mxu0
        %v3806 = vpop.f32.mrf.mxu0
        %v3807 = vadd.f32 0.0, %v3806
        %v3808 = vpop.f32.mrf.mxu0
        %3809 = vmatprep.mubr.bf16.mxu0 0
        %3810 = vmatmul.mubr.bf16.gmra.mxu0 %v3744
        %v3811 = vpop.f32.mrf.mxu0
        %v3812 = vadd.f32 0.0, %v3811
        %v3813 = vpop.f32.mrf.mxu0
        %v3814 = vpop.f32.mrf.mxu0
        %v3815 = vadd.f32 0.0, %v3814
        %v3816 = vpop.f32.mrf.mxu0
        %3817 = vmatprep.mubr.bf16.mxu0 0
        %3818 = vmatmul.mubr.bf16.gmra.mxu0 %v3747
        %v3819 = vpop.f32.mrf.mxu0
        %v3820 = vadd.f32 0.0, %v3819
        %v3821 = vpop.f32.mrf.mxu0
        %v3822 = vpop.f32.mrf.mxu0
        %v3823 = vadd.f32 0.0, %v3822
        %v3824 = vpop.f32.mrf.mxu0
        %3825 = vmatprep.mubr.bf16.mxu0 0
        %3826 = vmatmul.mubr.bf16.gmra.mxu0 %v3750
        %v3827 = vpop.f32.mrf.mxu0
        %v3828 = vadd.f32 0.0, %v3827
        %v3829 = vpop.f32.mrf.mxu0
        %v3830 = vpop.f32.mrf.mxu0
        %v3831 = vadd.f32 0.0, %v3830
        %v3832 = vpop.f32.mrf.mxu0
        %3833 = vmatprep.mubr.bf16.mxu0 0
        %3834 = vmatmul.mubr.bf16.gmra.mxu0 %v3753
        %v3835 = vpop.f32.mrf.mxu0
        %v3836 = vadd.f32 0.0, %v3835
        %v3837 = vpop.f32.mrf.mxu0
        %v3838 = vpop.f32.mrf.mxu0
        %v3839 = vadd.f32 0.0, %v3838
        %v3840 = vpop.f32.mrf.mxu0
        %3841 = vmatprep.mubr.bf16.mxu0 0
        %3842 = vmatmul.mubr.bf16.gmra.mxu0 %v3756
        %v3843 = vpop.f32.mrf.mxu0
        %v3844 = vadd.f32 0.0, %v3843
        %v3845 = vpop.f32.mrf.mxu0
        %v3846 = vpop.f32.mrf.mxu0
        %v3847 = vpop.f32.mrf.mxu0
        %3848 = vdwg.mxu0
        %v3849 = vadd.f32 %v3618, %v3796
        %v3850 = vadd.f32 %v3619, %v3799
        %v3851 = vadd.f32 %v3620, %v3804
        %v3852 = vadd.f32 %v3621, %v3807
        %v3853 = vadd.f32 %v3622, %v3812
        %v3854 = vadd.f32 %v3623, %v3815
        %v3855 = vadd.f32 %v3624, %v3820
        %v3856 = vadd.f32 %v3625, %v3823
        %v3857 = vadd.f32 %v3626, %v3828
        %v3858 = vadd.f32 %v3627, %v3831
        %v3859 = vadd.f32 %v3628, %v3836
        %v3860 = vadd.f32 %v3629, %v3839
        %v3861 = vadd.f32 %v3630, %v3844
        %v3862 = vld [vmem:[%s244 + $0xc] sm:$0xf]
        %v3863 = vld [vmem:[%s244 + $0x10] sm:$0xf]
        %v3864 = vld [vmem:[%s244 + $0x14] sm:$0xf]
        %v3865 = vld [vmem:[%s244 + $0x18] sm:$0xf]
        %v3866 = vld [vmem:[%s244 + $0x1c] sm:$0xf]
        %v3867 = vld [vmem:[%s244 + $0x20] sm:$0xf]
        %v3868 = vld [vmem:[%s244 + $0x24] sm:$0xf]
        %v3869 = vld [vmem:[%s244 + $0x28] sm:$0xf]
        %v3870 = vld [vmem:[%s244 + $0x2c] sm:$0xf]
        %v3871 = vld [vmem:[%s244 + $0x30] sm:$0xf]
        %v3872 = vld [vmem:[%s244 + $0x34] sm:$0xf]
        %v3873 = vld [vmem:[%s244 + $0x38] sm:$0xf]
        %v3874 = vld [vmem:[%s244 + $0x3c] sm:$0xf]
        %v3875 = vld [vmem:[%s244 + $0x40] sm:$0x1]
        %s3876 = scalar_lea.vmem %s224, 38
        %v3877 = vld [vmem:[%s3876] sm:$0x3]
        %v3892 = vunpack.c.l.b16 %v3862
        %v3893 = vunpack.c.l.b16 %v3863
        %v3894 = vunpack.c.l.b16 %v3864
        %v3895 = vunpack.c.l.b16 %v3865
        %v3896 = vunpack.c.l.b16 %v3866
        %v3897 = vunpack.c.l.b16 %v3867
        %v3898 = vunpack.c.l.b16 %v3868
        %v3899 = vunpack.c.l.b16 %v3869
        %v3900 = vunpack.c.l.b16 %v3870
        %v3901 = vunpack.c.l.b16 %v3871
        %v3902 = vunpack.c.l.b16 %v3872
        %v3903 = vunpack.c.l.b16 %v3873
        %v3904 = vunpack.c.l.b16 %v3874
        %v3905 = vunpack.c.l.b16 %v3875
        %v3906 = vpack.c.b16 %v3893, %v3892
        %v3907 = vpack.c.b16 %v3895, %v3894
        %v3908 = vpack.c.b16 %v3897, %v3896
        %v3909 = vpack.c.b16 %v3899, %v3898
        %v3910 = vpack.c.b16 %v3901, %v3900
        %v3911 = vpack.c.b16 %v3903, %v3902
        %v3912 = vpack.c.b16 %v3905, %v3904
        %v3914 = vshrl.u32 %v3906, 16
        %v3916 = vshll.u32 %v3906, 16
        %v3918 = vrot.slane %v3916, 1
        %v3919 = vor.u32 %v3914, %v3918
        %v3921 = vshll.u32 %v3907, 16
        %v3923 = vrot.slane %v3921, 1
        %v3924 = vsel %vm603, %v3919, %v3923
        %v3925 = vshrl.u32 %v3907, 16
        %v3927 = vor.u32 %v3925, %v3923
        %v3929 = vshll.u32 %v3908, 16
        %v3931 = vrot.slane %v3929, 1
        %v3932 = vsel %vm603, %v3927, %v3931
        %v3933 = vshrl.u32 %v3908, 16
        %v3935 = vor.u32 %v3933, %v3931
        %v3937 = vshll.u32 %v3909, 16
        %v3939 = vrot.slane %v3937, 1
        %v3940 = vsel %vm603, %v3935, %v3939
        %v3941 = vshrl.u32 %v3909, 16
        %v3943 = vor.u32 %v3941, %v3939
        %v3945 = vshll.u32 %v3910, 16
        %v3947 = vrot.slane %v3945, 1
        %v3948 = vsel %vm603, %v3943, %v3947
        %v3949 = vshrl.u32 %v3910, 16
        %v3951 = vor.u32 %v3949, %v3947
        %v3953 = vshll.u32 %v3911, 16
        %v3955 = vrot.slane %v3953, 1
        %v3956 = vsel %vm603, %v3951, %v3955
        %v3957 = vshrl.u32 %v3911, 16
        %v3959 = vor.u32 %v3957, %v3955
        %v3961 = vshll.u32 %v3912, 16
        %v3963 = vrot.slane %v3961, 1
        %v3964 = vsel %vm603, %v3959, %v3963
        %v3965 = vshrl.u32 %v3912, 16
        %v3967 = vor.u32 %v3965, %v3963
        %v3969 = vsel %vm293, %v3924, 0
        %v3972 = vsel %vm293, %v3932, 0
        %v3975 = vsel %vm293, %v3940, 0
        %v3978 = vsel %vm293, %v3948, 0
        %v3981 = vsel %vm293, %v3956, 0
        %v3984 = vsel %vm293, %v3964, 0
        %v3987 = vsel %vm293, %v3967, 0
        %v3990 = vsel %vm315, %v3877, 0
        %3992 = vmatprep.subr.bf16.mxu0 0
        %3993 = vmatpush1.bf16.msra.mxu0 0
        %3994 = vmatprep.subr.bf16.mxu0 0
        %3995 = vmatpush1.bf16.msra.mxu0 0
        %3996 = vmatprep.subr.bf16.mxu0 0
        %3997 = vmatpush1.bf16.msra.mxu0 0
        %3998 = vmatprep.subr.bf16.mxu0 0
        %3999 = vmatpush1.bf16.msra.mxu0 0
        %4000 = vmatprep.subr.bf16.mxu0 0
        %4001 = vmatpush1.bf16.msra.mxu0 0
        %4002 = vmatprep.subr.bf16.mxu0 0
        %4003 = vmatpush1.bf16.msra.mxu0 0
        %4004 = vmatprep.subr.bf16.mxu0 0
        %4005 = vmatpush1.bf16.msra.mxu0 0
        %4006 = vmatprep.subr.bf16.mxu0 0
        %4007 = vmatpush1.bf16.msra.mxu0 %v3990
        %4008 = vmatprep.subr.bf16.mxu0 0
        %4009 = vmatpush2.bf16.msra.mxu0 0
        %4010 = vmatprep.subr.bf16.mxu0 0
        %4011 = vmatpush2.bf16.msra.mxu0 0
        %4012 = vmatprep.subr.bf16.mxu0 0
        %4013 = vmatpush2.bf16.msra.mxu0 0
        %4014 = vmatprep.subr.bf16.mxu0 0
        %4015 = vmatpush2.bf16.msra.mxu0 0
        %4016 = vmatprep.subr.bf16.mxu0 0
        %4017 = vmatpush2.bf16.msra.mxu0 0
        %4018 = vmatprep.subr.bf16.mxu0 0
        %4019 = vmatpush2.bf16.msra.mxu0 0
        %4020 = vmatprep.subr.bf16.mxu0 0
        %4021 = vmatpush2.bf16.msra.mxu0 0
        %4022 = vmatprep.subr.bf16.mxu0 0
        %4023 = vmatpush2.bf16.msra.mxu0 0
        %4024 = vmatprep.mubr.bf16.mxu0 0
        %4025 = vmatmul.mubr.bf16.gmra.mxu0 %v3969
        %v4026 = vpop.f32.mrf.mxu0
        %v4027 = vadd.f32 0.0, %v4026
        %v4028 = vpop.f32.mrf.mxu0
        %v4029 = vpop.f32.mrf.mxu0
        %v4030 = vadd.f32 0.0, %v4029
        %v4031 = vpop.f32.mrf.mxu0
        %4032 = vmatprep.mubr.bf16.mxu0 0
        %4033 = vmatmul.mubr.bf16.gmra.mxu0 %v3972
        %v4034 = vpop.f32.mrf.mxu0
        %v4035 = vadd.f32 0.0, %v4034
        %v4036 = vpop.f32.mrf.mxu0
        %v4037 = vpop.f32.mrf.mxu0
        %v4038 = vadd.f32 0.0, %v4037
        %v4039 = vpop.f32.mrf.mxu0
        %4040 = vmatprep.mubr.bf16.mxu0 0
        %4041 = vmatmul.mubr.bf16.gmra.mxu0 %v3975
        %v4042 = vpop.f32.mrf.mxu0
        %v4043 = vadd.f32 0.0, %v4042
        %v4044 = vpop.f32.mrf.mxu0
        %v4045 = vpop.f32.mrf.mxu0
        %v4046 = vadd.f32 0.0, %v4045
        %v4047 = vpop.f32.mrf.mxu0
        %4048 = vmatprep.mubr.bf16.mxu0 0
        %4049 = vmatmul.mubr.bf16.gmra.mxu0 %v3978
        %v4050 = vpop.f32.mrf.mxu0
        %v4051 = vadd.f32 0.0, %v4050
        %v4052 = vpop.f32.mrf.mxu0
        %v4053 = vpop.f32.mrf.mxu0
        %v4054 = vadd.f32 0.0, %v4053
        %v4055 = vpop.f32.mrf.mxu0
        %4056 = vmatprep.mubr.bf16.mxu0 0
        %4057 = vmatmul.mubr.bf16.gmra.mxu0 %v3981
        %v4058 = vpop.f32.mrf.mxu0
        %v4059 = vadd.f32 0.0, %v4058
        %v4060 = vpop.f32.mrf.mxu0
        %v4061 = vpop.f32.mrf.mxu0
        %v4062 = vadd.f32 0.0, %v4061
        %v4063 = vpop.f32.mrf.mxu0
        %4064 = vmatprep.mubr.bf16.mxu0 0
        %4065 = vmatmul.mubr.bf16.gmra.mxu0 %v3984
        %v4066 = vpop.f32.mrf.mxu0
        %v4067 = vadd.f32 0.0, %v4066
        %v4068 = vpop.f32.mrf.mxu0
        %v4069 = vpop.f32.mrf.mxu0
        %v4070 = vadd.f32 0.0, %v4069
        %v4071 = vpop.f32.mrf.mxu0
        %4072 = vmatprep.mubr.bf16.mxu0 0
        %4073 = vmatmul.mubr.bf16.gmra.mxu0 %v3987
        %v4074 = vpop.f32.mrf.mxu0
        %v4075 = vadd.f32 0.0, %v4074
        %v4076 = vpop.f32.mrf.mxu0
        %v4077 = vpop.f32.mrf.mxu0
        %v4078 = vpop.f32.mrf.mxu0
        %4079 = vdwg.mxu0
        %v4080 = vadd.f32 %v3849, %v4027
        %v4081 = vadd.f32 %v3850, %v4030
        %v4082 = vadd.f32 %v3851, %v4035
        %v4083 = vadd.f32 %v3852, %v4038
        %v4084 = vadd.f32 %v3853, %v4043
        %v4085 = vadd.f32 %v3854, %v4046
        %v4086 = vadd.f32 %v3855, %v4051
        %v4087 = vadd.f32 %v3856, %v4054
        %v4088 = vadd.f32 %v3857, %v4059
        %v4089 = vadd.f32 %v3858, %v4062
        %v4090 = vadd.f32 %v3859, %v4067
        %v4091 = vadd.f32 %v3860, %v4070
        %v4092 = vadd.f32 %v3861, %v4075
        %v4093 = vld [vmem:[%s219 + $0xc] sm:$0xe]
        %s4094 = scalar_lea.vmem %s224, 40
        %v4095 = vld [vmem:[%s4094] sm:$0x3]
        %v4097 = vunpack.c.l.b16 %v4093
        %v4098 = vpack.c.b16 %v3662, %v4097
        %vm4099 = vcmask 1046528
        %v4100 = vrot.slane %v4098, 1
        %v4101 = vrot.slane %v3676, 1
        %v4102 = vsel %vm4099, %v4100, %v4101
        %v4103 = vrot.slane %v3677, 1
        %v4104 = vsel %vm4099, %v4101, %v4103
        %v4105 = vrot.slane %v3678, 1
        %v4106 = vsel %vm4099, %v4103, %v4105
        %v4107 = vrot.slane %v3679, 1
        %v4108 = vsel %vm4099, %v4105, %v4107
        %v4109 = vrot.slane %v3680, 1
        %v4110 = vsel %vm4099, %v4107, %v4109
        %v4111 = vrot.slane %v3681, 1
        %v4112 = vsel %vm4099, %v4109, %v4111
        %v4114 = vsel %vm293, %v4102, 0
        %v4117 = vsel %vm293, %v4104, 0
        %v4120 = vsel %vm293, %v4106, 0
        %v4123 = vsel %vm293, %v4108, 0
        %v4126 = vsel %vm293, %v4110, 0
        %v4129 = vsel %vm293, %v4112, 0
        %v4132 = vsel %vm293, %v4111, 0
        %v4135 = vsel %vm315, %v4095, 0
        %4137 = vmatprep.subr.bf16.mxu0 0
        %4138 = vmatpush1.bf16.msra.mxu0 0
        %4139 = vmatprep.subr.bf16.mxu0 0
        %4140 = vmatpush1.bf16.msra.mxu0 0
        %4141 = vmatprep.subr.bf16.mxu0 0
        %4142 = vmatpush1.bf16.msra.mxu0 0
        %4143 = vmatprep.subr.bf16.mxu0 0
        %4144 = vmatpush1.bf16.msra.mxu0 0
        %4145 = vmatprep.subr.bf16.mxu0 0
        %4146 = vmatpush1.bf16.msra.mxu0 0
        %4147 = vmatprep.subr.bf16.mxu0 0
        %4148 = vmatpush1.bf16.msra.mxu0 0
        %4149 = vmatprep.subr.bf16.mxu0 0
        %4150 = vmatpush1.bf16.msra.mxu0 0
        %4151 = vmatprep.subr.bf16.mxu0 0
        %4152 = vmatpush1.bf16.msra.mxu0 %v4135
        %4153 = vmatprep.subr.bf16.mxu0 0
        %4154 = vmatpush2.bf16.msra.mxu0 0
        %4155 = vmatprep.subr.bf16.mxu0 0
        %4156 = vmatpush2.bf16.msra.mxu0 0
        %4157 = vmatprep.subr.bf16.mxu0 0
        %4158 = vmatpush2.bf16.msra.mxu0 0
        %4159 = vmatprep.subr.bf16.mxu0 0
        %4160 = vmatpush2.bf16.msra.mxu0 0
        %4161 = vmatprep.subr.bf16.mxu0 0
        %4162 = vmatpush2.bf16.msra.mxu0 0
        %4163 = vmatprep.subr.bf16.mxu0 0
        %4164 = vmatpush2.bf16.msra.mxu0 0
        %4165 = vmatprep.subr.bf16.mxu0 0
        %4166 = vmatpush2.bf16.msra.mxu0 0
        %4167 = vmatprep.subr.bf16.mxu0 0
        %4168 = vmatpush2.bf16.msra.mxu0 0
        %4169 = vmatprep.mubr.bf16.mxu0 0
        %4170 = vmatmul.mubr.bf16.gmra.mxu0 %v4114
        %v4171 = vpop.f32.mrf.mxu0
        %v4172 = vadd.f32 0.0, %v4171
        %v4173 = vpop.f32.mrf.mxu0
        %v4174 = vpop.f32.mrf.mxu0
        %v4175 = vadd.f32 0.0, %v4174
        %v4176 = vpop.f32.mrf.mxu0
        %4177 = vmatprep.mubr.bf16.mxu0 0
        %4178 = vmatmul.mubr.bf16.gmra.mxu0 %v4117
        %v4179 = vpop.f32.mrf.mxu0
        %v4180 = vadd.f32 0.0, %v4179
        %v4181 = vpop.f32.mrf.mxu0
        %v4182 = vpop.f32.mrf.mxu0
        %v4183 = vadd.f32 0.0, %v4182
        %v4184 = vpop.f32.mrf.mxu0
        %4185 = vmatprep.mubr.bf16.mxu0 0
        %4186 = vmatmul.mubr.bf16.gmra.mxu0 %v4120
        %v4187 = vpop.f32.mrf.mxu0
        %v4188 = vadd.f32 0.0, %v4187
        %v4189 = vpop.f32.mrf.mxu0
        %v4190 = vpop.f32.mrf.mxu0
        %v4191 = vadd.f32 0.0, %v4190
        %v4192 = vpop.f32.mrf.mxu0
        %4193 = vmatprep.mubr.bf16.mxu0 0
        %4194 = vmatmul.mubr.bf16.gmra.mxu0 %v4123
        %v4195 = vpop.f32.mrf.mxu0
        %v4196 = vadd.f32 0.0, %v4195
        %v4197 = vpop.f32.mrf.mxu0
        %v4198 = vpop.f32.mrf.mxu0
        %v4199 = vadd.f32 0.0, %v4198
        %v4200 = vpop.f32.mrf.mxu0
        %4201 = vmatprep.mubr.bf16.mxu0 0
        %4202 = vmatmul.mubr.bf16.gmra.mxu0 %v4126
        %v4203 = vpop.f32.mrf.mxu0
        %v4204 = vadd.f32 0.0, %v4203
        %v4205 = vpop.f32.mrf.mxu0
        %v4206 = vpop.f32.mrf.mxu0
        %v4207 = vadd.f32 0.0, %v4206
        %v4208 = vpop.f32.mrf.mxu0
        %4209 = vmatprep.mubr.bf16.mxu0 0
        %4210 = vmatmul.mubr.bf16.gmra.mxu0 %v4129
        %v4211 = vpop.f32.mrf.mxu0
        %v4212 = vadd.f32 0.0, %v4211
        %v4213 = vpop.f32.mrf.mxu0
        %v4214 = vpop.f32.mrf.mxu0
        %v4215 = vadd.f32 0.0, %v4214
        %v4216 = vpop.f32.mrf.mxu0
        %4217 = vmatprep.mubr.bf16.mxu0 0
        %4218 = vmatmul.mubr.bf16.gmra.mxu0 %v4132
        %v4219 = vpop.f32.mrf.mxu0
        %v4220 = vadd.f32 0.0, %v4219
        %v4221 = vpop.f32.mrf.mxu0
        %v4222 = vpop.f32.mrf.mxu0
        %v4223 = vpop.f32.mrf.mxu0
        %4224 = vdwg.mxu0
        %v4225 = vadd.f32 %v4080, %v4172
        %v4226 = vadd.f32 %v4081, %v4175
        %v4227 = vadd.f32 %v4082, %v4180
        %v4228 = vadd.f32 %v4083, %v4183
        %v4229 = vadd.f32 %v4084, %v4188
        %v4230 = vadd.f32 %v4085, %v4191
        %v4231 = vadd.f32 %v4086, %v4196
        %v4232 = vadd.f32 %v4087, %v4199
        %v4233 = vadd.f32 %v4088, %v4204
        %v4234 = vadd.f32 %v4089, %v4207
        %v4235 = vadd.f32 %v4090, %v4212
        %v4236 = vadd.f32 %v4091, %v4215
        %v4237 = vadd.f32 %v4092, %v4220
        %v4238 = vld [vmem:[%s784 + $0xc] sm:$0xf]
        %v4239 = vld [vmem:[%s784 + $0x10] sm:$0xf]
        %v4240 = vld [vmem:[%s784 + $0x14] sm:$0xf]
        %v4241 = vld [vmem:[%s784 + $0x18] sm:$0xf]
        %v4242 = vld [vmem:[%s784 + $0x1c] sm:$0xf]
        %v4243 = vld [vmem:[%s784 + $0x20] sm:$0xf]
        %v4244 = vld [vmem:[%s784 + $0x24] sm:$0xf]
        %v4245 = vld [vmem:[%s784 + $0x28] sm:$0xf]
        %v4246 = vld [vmem:[%s784 + $0x2c] sm:$0xf]
        %v4247 = vld [vmem:[%s784 + $0x30] sm:$0xf]
        %v4248 = vld [vmem:[%s784 + $0x34] sm:$0xf]
        %v4249 = vld [vmem:[%s784 + $0x38] sm:$0xf]
        %v4250 = vld [vmem:[%s784 + $0x3c] sm:$0xf]
        %v4251 = vld [vmem:[%s784 + $0x40] sm:$0x1]
        %s4252 = scalar_lea.vmem %s224, 42
        %v4253 = vld [vmem:[%s4252] sm:$0x3]
        %v4268 = vunpack.c.l.b16 %v4238
        %v4269 = vunpack.c.l.b16 %v4239
        %v4270 = vunpack.c.l.b16 %v4240
        %v4271 = vunpack.c.l.b16 %v4241
        %v4272 = vunpack.c.l.b16 %v4242
        %v4273 = vunpack.c.l.b16 %v4243
        %v4274 = vunpack.c.l.b16 %v4244
        %v4275 = vunpack.c.l.b16 %v4245
        %v4276 = vunpack.c.l.b16 %v4246
        %v4277 = vunpack.c.l.b16 %v4247
        %v4278 = vunpack.c.l.b16 %v4248
        %v4279 = vunpack.c.l.b16 %v4249
        %v4280 = vunpack.c.l.b16 %v4250
        %v4281 = vunpack.c.l.b16 %v4251
        %v4282 = vpack.c.b16 %v4269, %v4268
        %v4283 = vpack.c.b16 %v4271, %v4270
        %v4284 = vpack.c.b16 %v4273, %v4272
        %v4285 = vpack.c.b16 %v4275, %v4274
        %v4286 = vpack.c.b16 %v4277, %v4276
        %v4287 = vpack.c.b16 %v4279, %v4278
        %v4288 = vpack.c.b16 %v4281, %v4280
        %v4290 = vshrl.u32 %v4282, 16
        %v4292 = vshll.u32 %v4282, 16
        %v4294 = vrot.slane %v4292, 1
        %v4295 = vor.u32 %v4290, %v4294
        %v4297 = vshll.u32 %v4283, 16
        %v4299 = vrot.slane %v4297, 1
        %v4300 = vsel %vm603, %v4295, %v4299
        %v4301 = vshrl.u32 %v4283, 16
        %v4303 = vor.u32 %v4301, %v4299
        %v4305 = vshll.u32 %v4284, 16
        %v4307 = vrot.slane %v4305, 1
        %v4308 = vsel %vm603, %v4303, %v4307
        %v4309 = vshrl.u32 %v4284, 16
        %v4311 = vor.u32 %v4309, %v4307
        %v4313 = vshll.u32 %v4285, 16
        %v4315 = vrot.slane %v4313, 1
        %v4316 = vsel %vm603, %v4311, %v4315
        %v4317 = vshrl.u32 %v4285, 16
        %v4319 = vor.u32 %v4317, %v4315
        %v4321 = vshll.u32 %v4286, 16
        %v4323 = vrot.slane %v4321, 1
        %v4324 = vsel %vm603, %v4319, %v4323
        %v4325 = vshrl.u32 %v4286, 16
        %v4327 = vor.u32 %v4325, %v4323
        %v4329 = vshll.u32 %v4287, 16
        %v4331 = vrot.slane %v4329, 1
        %v4332 = vsel %vm603, %v4327, %v4331
        %v4333 = vshrl.u32 %v4287, 16
        %v4335 = vor.u32 %v4333, %v4331
        %v4337 = vshll.u32 %v4288, 16
        %v4339 = vrot.slane %v4337, 1
        %v4340 = vsel %vm603, %v4335, %v4339
        %v4341 = vshrl.u32 %v4288, 16
        %v4343 = vor.u32 %v4341, %v4339
        %v4345 = vsel %vm293, %v4300, 0
        %v4348 = vsel %vm293, %v4308, 0
        %v4351 = vsel %vm293, %v4316, 0
        %v4354 = vsel %vm293, %v4324, 0
        %v4357 = vsel %vm293, %v4332, 0
        %v4360 = vsel %vm293, %v4340, 0
        %v4363 = vsel %vm293, %v4343, 0
        %v4366 = vsel %vm315, %v4253, 0
        %4368 = vmatprep.subr.bf16.mxu0 0
        %4369 = vmatpush1.bf16.msra.mxu0 0
        %4370 = vmatprep.subr.bf16.mxu0 0
        %4371 = vmatpush1.bf16.msra.mxu0 0
        %4372 = vmatprep.subr.bf16.mxu0 0
        %4373 = vmatpush1.bf16.msra.mxu0 0
        %4374 = vmatprep.subr.bf16.mxu0 0
        %4375 = vmatpush1.bf16.msra.mxu0 0
        %4376 = vmatprep.subr.bf16.mxu0 0
        %4377 = vmatpush1.bf16.msra.mxu0 0
        %4378 = vmatprep.subr.bf16.mxu0 0
        %4379 = vmatpush1.bf16.msra.mxu0 0
        %4380 = vmatprep.subr.bf16.mxu0 0
        %4381 = vmatpush1.bf16.msra.mxu0 0
        %4382 = vmatprep.subr.bf16.mxu0 0
        %4383 = vmatpush1.bf16.msra.mxu0 %v4366
        %4384 = vmatprep.subr.bf16.mxu0 0
        %4385 = vmatpush2.bf16.msra.mxu0 0
        %4386 = vmatprep.subr.bf16.mxu0 0
        %4387 = vmatpush2.bf16.msra.mxu0 0
        %4388 = vmatprep.subr.bf16.mxu0 0
        %4389 = vmatpush2.bf16.msra.mxu0 0
        %4390 = vmatprep.subr.bf16.mxu0 0
        %4391 = vmatpush2.bf16.msra.mxu0 0
        %4392 = vmatprep.subr.bf16.mxu0 0
        %4393 = vmatpush2.bf16.msra.mxu0 0
        %4394 = vmatprep.subr.bf16.mxu0 0
        %4395 = vmatpush2.bf16.msra.mxu0 0
        %4396 = vmatprep.subr.bf16.mxu0 0
        %4397 = vmatpush2.bf16.msra.mxu0 0
        %4398 = vmatprep.subr.bf16.mxu0 0
        %4399 = vmatpush2.bf16.msra.mxu0 0
        %4400 = vmatprep.mubr.bf16.mxu0 0
        %4401 = vmatmul.mubr.bf16.gmra.mxu0 %v4345
        %v4402 = vpop.f32.mrf.mxu0
        %v4403 = vadd.f32 0.0, %v4402
        %v4404 = vpop.f32.mrf.mxu0
        %v4405 = vpop.f32.mrf.mxu0
        %v4406 = vadd.f32 0.0, %v4405
        %v4407 = vpop.f32.mrf.mxu0
        %4408 = vmatprep.mubr.bf16.mxu0 0
        %4409 = vmatmul.mubr.bf16.gmra.mxu0 %v4348
        %v4410 = vpop.f32.mrf.mxu0
        %v4411 = vadd.f32 0.0, %v4410
        %v4412 = vpop.f32.mrf.mxu0
        %v4413 = vpop.f32.mrf.mxu0
        %v4414 = vadd.f32 0.0, %v4413
        %v4415 = vpop.f32.mrf.mxu0
        %4416 = vmatprep.mubr.bf16.mxu0 0
        %4417 = vmatmul.mubr.bf16.gmra.mxu0 %v4351
        %v4418 = vpop.f32.mrf.mxu0
        %v4419 = vadd.f32 0.0, %v4418
        %v4420 = vpop.f32.mrf.mxu0
        %v4421 = vpop.f32.mrf.mxu0
        %v4422 = vadd.f32 0.0, %v4421
        %v4423 = vpop.f32.mrf.mxu0
        %4424 = vmatprep.mubr.bf16.mxu0 0
        %4425 = vmatmul.mubr.bf16.gmra.mxu0 %v4354
        %v4426 = vpop.f32.mrf.mxu0
        %v4427 = vadd.f32 0.0, %v4426
        %v4428 = vpop.f32.mrf.mxu0
        %v4429 = vpop.f32.mrf.mxu0
        %v4430 = vadd.f32 0.0, %v4429
        %v4431 = vpop.f32.mrf.mxu0
        %4432 = vmatprep.mubr.bf16.mxu0 0
        %4433 = vmatmul.mubr.bf16.gmra.mxu0 %v4357
        %v4434 = vpop.f32.mrf.mxu0
        %v4435 = vadd.f32 0.0, %v4434
        %v4436 = vpop.f32.mrf.mxu0
        %v4437 = vpop.f32.mrf.mxu0
        %v4438 = vadd.f32 0.0, %v4437
        %v4439 = vpop.f32.mrf.mxu0
        %4440 = vmatprep.mubr.bf16.mxu0 0
        %4441 = vmatmul.mubr.bf16.gmra.mxu0 %v4360
        %v4442 = vpop.f32.mrf.mxu0
        %v4443 = vadd.f32 0.0, %v4442
        %v4444 = vpop.f32.mrf.mxu0
        %v4445 = vpop.f32.mrf.mxu0
        %v4446 = vadd.f32 0.0, %v4445
        %v4447 = vpop.f32.mrf.mxu0
        %4448 = vmatprep.mubr.bf16.mxu0 0
        %4449 = vmatmul.mubr.bf16.gmra.mxu0 %v4363
        %v4450 = vpop.f32.mrf.mxu0
        %v4451 = vadd.f32 0.0, %v4450
        %v4452 = vpop.f32.mrf.mxu0
        %v4453 = vpop.f32.mrf.mxu0
        %v4454 = vpop.f32.mrf.mxu0
        %4455 = vdwg.mxu0
        %v4456 = vadd.f32 %v4225, %v4403
        %v4457 = vadd.f32 %v4226, %v4406
        %v4458 = vadd.f32 %v4227, %v4411
        %v4459 = vadd.f32 %v4228, %v4414
        %v4460 = vadd.f32 %v4229, %v4419
        %v4461 = vadd.f32 %v4230, %v4422
        %v4462 = vadd.f32 %v4231, %v4427
        %v4463 = vadd.f32 %v4232, %v4430
        %v4464 = vadd.f32 %v4233, %v4435
        %v4465 = vadd.f32 %v4234, %v4438
        %v4466 = vadd.f32 %v4235, %v4443
        %v4467 = vadd.f32 %v4236, %v4446
        %v4468 = vadd.f32 %v4237, %v4451
        %v4469 = vld [vmem:[%s958 + $0xc] sm:$0xf]
        %v4470 = vld [vmem:[%s958 + $0x10] sm:$0xf]
        %v4471 = vld [vmem:[%s958 + $0x14] sm:$0xf]
        %v4472 = vld [vmem:[%s958 + $0x18] sm:$0xf]
        %v4473 = vld [vmem:[%s958 + $0x1c] sm:$0xf]
        %v4474 = vld [vmem:[%s958 + $0x20] sm:$0xf]
        %v4475 = vld [vmem:[%s958 + $0x24] sm:$0xf]
        %v4476 = vld [vmem:[%s958 + $0x28] sm:$0xf]
        %v4477 = vld [vmem:[%s958 + $0x2c] sm:$0xf]
        %v4478 = vld [vmem:[%s958 + $0x30] sm:$0xf]
        %v4479 = vld [vmem:[%s958 + $0x34] sm:$0xf]
        %v4480 = vld [vmem:[%s958 + $0x38] sm:$0xf]
        %v4481 = vld [vmem:[%s958 + $0x3c] sm:$0xf]
        %v4482 = vld [vmem:[%s958 + $0x40] sm:$0x1]
        %s4483 = scalar_lea.vmem %s224, 44
        %v4484 = vld [vmem:[%s4483] sm:$0x3]
        %v4499 = vunpack.c.l.b16 %v4469
        %v4500 = vunpack.c.l.b16 %v4470
        %v4501 = vunpack.c.l.b16 %v4471
        %v4502 = vunpack.c.l.b16 %v4472
        %v4503 = vunpack.c.l.b16 %v4473
        %v4504 = vunpack.c.l.b16 %v4474
        %v4505 = vunpack.c.l.b16 %v4475
        %v4506 = vunpack.c.l.b16 %v4476
        %v4507 = vunpack.c.l.b16 %v4477
        %v4508 = vunpack.c.l.b16 %v4478
        %v4509 = vunpack.c.l.b16 %v4479
        %v4510 = vunpack.c.l.b16 %v4480
        %v4511 = vunpack.c.l.b16 %v4481
        %v4512 = vunpack.c.l.b16 %v4482
        %v4513 = vpack.c.b16 %v4500, %v4499
        %v4514 = vpack.c.b16 %v4502, %v4501
        %v4515 = vpack.c.b16 %v4504, %v4503
        %v4516 = vpack.c.b16 %v4506, %v4505
        %v4517 = vpack.c.b16 %v4508, %v4507
        %v4518 = vpack.c.b16 %v4510, %v4509
        %v4519 = vpack.c.b16 %v4512, %v4511
        %v4521 = vshrl.u32 %v4513, 16
        %v4523 = vshll.u32 %v4513, 16
        %v4525 = vrot.slane %v4523, 1
        %v4526 = vor.u32 %v4521, %v4525
        %v4528 = vshll.u32 %v4514, 16
        %v4530 = vrot.slane %v4528, 1
        %v4531 = vsel %vm603, %v4526, %v4530
        %v4532 = vshrl.u32 %v4514, 16
        %v4534 = vor.u32 %v4532, %v4530
        %v4536 = vshll.u32 %v4515, 16
        %v4538 = vrot.slane %v4536, 1
        %v4539 = vsel %vm603, %v4534, %v4538
        %v4540 = vshrl.u32 %v4515, 16
        %v4542 = vor.u32 %v4540, %v4538
        %v4544 = vshll.u32 %v4516, 16
        %v4546 = vrot.slane %v4544, 1
        %v4547 = vsel %vm603, %v4542, %v4546
        %v4548 = vshrl.u32 %v4516, 16
        %v4550 = vor.u32 %v4548, %v4546
        %v4552 = vshll.u32 %v4517, 16
        %v4554 = vrot.slane %v4552, 1
        %v4555 = vsel %vm603, %v4550, %v4554
        %v4556 = vshrl.u32 %v4517, 16
        %v4558 = vor.u32 %v4556, %v4554
        %v4560 = vshll.u32 %v4518, 16
        %v4562 = vrot.slane %v4560, 1
        %v4563 = vsel %vm603, %v4558, %v4562
        %v4564 = vshrl.u32 %v4518, 16
        %v4566 = vor.u32 %v4564, %v4562
        %v4568 = vshll.u32 %v4519, 16
        %v4570 = vrot.slane %v4568, 1
        %v4571 = vsel %vm603, %v4566, %v4570
        %v4572 = vshrl.u32 %v4519, 16
        %v4574 = vor.u32 %v4572, %v4570
        %v4576 = vsel %vm293, %v4531, 0
        %v4579 = vsel %vm293, %v4539, 0
        %v4582 = vsel %vm293, %v4547, 0
        %v4585 = vsel %vm293, %v4555, 0
        %v4588 = vsel %vm293, %v4563, 0
        %v4591 = vsel %vm293, %v4571, 0
        %v4594 = vsel %vm293, %v4574, 0
        %v4597 = vsel %vm315, %v4484, 0
        %4599 = vmatprep.subr.bf16.mxu0 0
        %4600 = vmatpush1.bf16.msra.mxu0 0
        %4601 = vmatprep.subr.bf16.mxu0 0
        %4602 = vmatpush1.bf16.msra.mxu0 0
        %4603 = vmatprep.subr.bf16.mxu0 0
        %4604 = vmatpush1.bf16.msra.mxu0 0
        %4605 = vmatprep.subr.bf16.mxu0 0
        %4606 = vmatpush1.bf16.msra.mxu0 0
        %4607 = vmatprep.subr.bf16.mxu0 0
        %4608 = vmatpush1.bf16.msra.mxu0 0
        %4609 = vmatprep.subr.bf16.mxu0 0
        %4610 = vmatpush1.bf16.msra.mxu0 0
        %4611 = vmatprep.subr.bf16.mxu0 0
        %4612 = vmatpush1.bf16.msra.mxu0 0
        %4613 = vmatprep.subr.bf16.mxu0 0
        %4614 = vmatpush1.bf16.msra.mxu0 %v4597
        %4615 = vmatprep.subr.bf16.mxu0 0
        %4616 = vmatpush2.bf16.msra.mxu0 0
        %4617 = vmatprep.subr.bf16.mxu0 0
        %4618 = vmatpush2.bf16.msra.mxu0 0
        %4619 = vmatprep.subr.bf16.mxu0 0
        %4620 = vmatpush2.bf16.msra.mxu0 0
        %4621 = vmatprep.subr.bf16.mxu0 0
        %4622 = vmatpush2.bf16.msra.mxu0 0
        %4623 = vmatprep.subr.bf16.mxu0 0
        %4624 = vmatpush2.bf16.msra.mxu0 0
        %4625 = vmatprep.subr.bf16.mxu0 0
        %4626 = vmatpush2.bf16.msra.mxu0 0
        %4627 = vmatprep.subr.bf16.mxu0 0
        %4628 = vmatpush2.bf16.msra.mxu0 0
        %4629 = vmatprep.subr.bf16.mxu0 0
        %4630 = vmatpush2.bf16.msra.mxu0 0
        %4631 = vmatprep.mubr.bf16.mxu0 0
        %4632 = vmatmul.mubr.bf16.gmra.mxu0 %v4576
        %v4633 = vpop.f32.mrf.mxu0
        %v4634 = vadd.f32 0.0, %v4633
        %v4635 = vpop.f32.mrf.mxu0
        %v4636 = vpop.f32.mrf.mxu0
        %v4637 = vadd.f32 0.0, %v4636
        %v4638 = vpop.f32.mrf.mxu0
        %4639 = vmatprep.mubr.bf16.mxu0 0
        %4640 = vmatmul.mubr.bf16.gmra.mxu0 %v4579
        %v4641 = vpop.f32.mrf.mxu0
        %v4642 = vadd.f32 0.0, %v4641
        %v4643 = vpop.f32.mrf.mxu0
        %v4644 = vpop.f32.mrf.mxu0
        %v4645 = vadd.f32 0.0, %v4644
        %v4646 = vpop.f32.mrf.mxu0
        %4647 = vmatprep.mubr.bf16.mxu0 0
        %4648 = vmatmul.mubr.bf16.gmra.mxu0 %v4582
        %v4649 = vpop.f32.mrf.mxu0
        %v4650 = vadd.f32 0.0, %v4649
        %v4651 = vpop.f32.mrf.mxu0
        %v4652 = vpop.f32.mrf.mxu0
        %v4653 = vadd.f32 0.0, %v4652
        %v4654 = vpop.f32.mrf.mxu0
        %4655 = vmatprep.mubr.bf16.mxu0 0
        %4656 = vmatmul.mubr.bf16.gmra.mxu0 %v4585
        %v4657 = vpop.f32.mrf.mxu0
        %v4658 = vadd.f32 0.0, %v4657
        %v4659 = vpop.f32.mrf.mxu0
        %v4660 = vpop.f32.mrf.mxu0
        %v4661 = vadd.f32 0.0, %v4660
        %v4662 = vpop.f32.mrf.mxu0
        %4663 = vmatprep.mubr.bf16.mxu0 0
        %4664 = vmatmul.mubr.bf16.gmra.mxu0 %v4588
        %v4665 = vpop.f32.mrf.mxu0
        %v4666 = vadd.f32 0.0, %v4665
        %v4667 = vpop.f32.mrf.mxu0
        %v4668 = vpop.f32.mrf.mxu0
        %v4669 = vadd.f32 0.0, %v4668
        %v4670 = vpop.f32.mrf.mxu0
        %4671 = vmatprep.mubr.bf16.mxu0 0
        %4672 = vmatmul.mubr.bf16.gmra.mxu0 %v4591
        %v4673 = vpop.f32.mrf.mxu0
        %v4674 = vadd.f32 0.0, %v4673
        %v4675 = vpop.f32.mrf.mxu0
        %v4676 = vpop.f32.mrf.mxu0
        %v4677 = vadd.f32 0.0, %v4676
        %v4678 = vpop.f32.mrf.mxu0
        %4679 = vmatprep.mubr.bf16.mxu0 0
        %4680 = vmatmul.mubr.bf16.gmra.mxu0 %v4594
        %v4681 = vpop.f32.mrf.mxu0
        %v4682 = vadd.f32 0.0, %v4681
        %v4683 = vpop.f32.mrf.mxu0
        %v4684 = vpop.f32.mrf.mxu0
        %v4685 = vpop.f32.mrf.mxu0
        %4686 = vdwg.mxu0
        %v4687 = vadd.f32 %v4456, %v4634
        %v4688 = vadd.f32 %v4457, %v4637
        %v4689 = vadd.f32 %v4458, %v4642
        %v4690 = vadd.f32 %v4459, %v4645
        %v4691 = vadd.f32 %v4460, %v4650
        %v4692 = vadd.f32 %v4461, %v4653
        %v4693 = vadd.f32 %v4462, %v4658
        %v4694 = vadd.f32 %v4463, %v4661
        %v4695 = vadd.f32 %v4464, %v4666
        %v4696 = vadd.f32 %v4465, %v4669
        %v4697 = vadd.f32 %v4466, %v4674
        %v4698 = vadd.f32 %v4467, %v4677
        %v4699 = vadd.f32 %v4468, %v4682
        %v4700 = vld [vmem:[%s784 + $0xc] sm:$0xe]
        %s4701 = scalar_lea.vmem %s224, 46
        %v4702 = vld [vmem:[%s4701] sm:$0x3]
        %v4704 = vunpack.c.l.b16 %v4700
        %v4705 = vpack.c.b16 %v4269, %v4704
        %v4706 = vrot.slane %v4705, 1
        %v4707 = vrot.slane %v4283, 1
        %v4708 = vsel %vm4099, %v4706, %v4707
        %v4709 = vrot.slane %v4284, 1
        %v4710 = vsel %vm4099, %v4707, %v4709
        %v4711 = vrot.slane %v4285, 1
        %v4712 = vsel %vm4099, %v4709, %v4711
        %v4713 = vrot.slane %v4286, 1
        %v4714 = vsel %vm4099, %v4711, %v4713
        %v4715 = vrot.slane %v4287, 1
        %v4716 = vsel %vm4099, %v4713, %v4715
        %v4717 = vrot.slane %v4288, 1
        %v4718 = vsel %vm4099, %v4715, %v4717
        %v4720 = vsel %vm293, %v4708, 0
        %v4723 = vsel %vm293, %v4710, 0
        %v4726 = vsel %vm293, %v4712, 0
        %v4729 = vsel %vm293, %v4714, 0
        %v4732 = vsel %vm293, %v4716, 0
        %v4735 = vsel %vm293, %v4718, 0
        %v4738 = vsel %vm293, %v4717, 0
        %v4741 = vsel %vm315, %v4702, 0
        %4743 = vmatprep.subr.bf16.mxu0 0
        %4744 = vmatpush1.bf16.msra.mxu0 0
        %4745 = vmatprep.subr.bf16.mxu0 0
        %4746 = vmatpush1.bf16.msra.mxu0 0
        %4747 = vmatprep.subr.bf16.mxu0 0
        %4748 = vmatpush1.bf16.msra.mxu0 0
        %4749 = vmatprep.subr.bf16.mxu0 0
        %4750 = vmatpush1.bf16.msra.mxu0 0
        %4751 = vmatprep.subr.bf16.mxu0 0
        %4752 = vmatpush1.bf16.msra.mxu0 0
        %4753 = vmatprep.subr.bf16.mxu0 0
        %4754 = vmatpush1.bf16.msra.mxu0 0
        %4755 = vmatprep.subr.bf16.mxu0 0
        %4756 = vmatpush1.bf16.msra.mxu0 0
        %4757 = vmatprep.subr.bf16.mxu0 0
        %4758 = vmatpush1.bf16.msra.mxu0 %v4741
        %4759 = vmatprep.subr.bf16.mxu0 0
        %4760 = vmatpush2.bf16.msra.mxu0 0
        %4761 = vmatprep.subr.bf16.mxu0 0
        %4762 = vmatpush2.bf16.msra.mxu0 0
        %4763 = vmatprep.subr.bf16.mxu0 0
        %4764 = vmatpush2.bf16.msra.mxu0 0
        %4765 = vmatprep.subr.bf16.mxu0 0
        %4766 = vmatpush2.bf16.msra.mxu0 0
        %4767 = vmatprep.subr.bf16.mxu0 0
        %4768 = vmatpush2.bf16.msra.mxu0 0
        %4769 = vmatprep.subr.bf16.mxu0 0
        %4770 = vmatpush2.bf16.msra.mxu0 0
        %4771 = vmatprep.subr.bf16.mxu0 0
        %4772 = vmatpush2.bf16.msra.mxu0 0
        %4773 = vmatprep.subr.bf16.mxu0 0
        %4774 = vmatpush2.bf16.msra.mxu0 0
        %4775 = vmatprep.mubr.bf16.mxu0 0
        %4776 = vmatmul.mubr.bf16.gmra.mxu0 %v4720
        %v4777 = vpop.f32.mrf.mxu0
        %v4778 = vadd.f32 0.0, %v4777
        %v4779 = vpop.f32.mrf.mxu0
        %v4780 = vpop.f32.mrf.mxu0
        %v4781 = vadd.f32 0.0, %v4780
        %v4782 = vpop.f32.mrf.mxu0
        %4783 = vmatprep.mubr.bf16.mxu0 0
        %4784 = vmatmul.mubr.bf16.gmra.mxu0 %v4723
        %v4785 = vpop.f32.mrf.mxu0
        %v4786 = vadd.f32 0.0, %v4785
        %v4787 = vpop.f32.mrf.mxu0
        %v4788 = vpop.f32.mrf.mxu0
        %v4789 = vadd.f32 0.0, %v4788
        %v4790 = vpop.f32.mrf.mxu0
        %4791 = vmatprep.mubr.bf16.mxu0 0
        %4792 = vmatmul.mubr.bf16.gmra.mxu0 %v4726
        %v4793 = vpop.f32.mrf.mxu0
        %v4794 = vadd.f32 0.0, %v4793
        %v4795 = vpop.f32.mrf.mxu0
        %v4796 = vpop.f32.mrf.mxu0
        %v4797 = vadd.f32 0.0, %v4796
        %v4798 = vpop.f32.mrf.mxu0
        %4799 = vmatprep.mubr.bf16.mxu0 0
        %4800 = vmatmul.mubr.bf16.gmra.mxu0 %v4729
        %v4801 = vpop.f32.mrf.mxu0
        %v4802 = vadd.f32 0.0, %v4801
        %v4803 = vpop.f32.mrf.mxu0
        %v4804 = vpop.f32.mrf.mxu0
        %v4805 = vadd.f32 0.0, %v4804
        %v4806 = vpop.f32.mrf.mxu0
        %4807 = vmatprep.mubr.bf16.mxu0 0
        %4808 = vmatmul.mubr.bf16.gmra.mxu0 %v4732
        %v4809 = vpop.f32.mrf.mxu0
        %v4810 = vadd.f32 0.0, %v4809
        %v4811 = vpop.f32.mrf.mxu0
        %v4812 = vpop.f32.mrf.mxu0
        %v4813 = vadd.f32 0.0, %v4812
        %v4814 = vpop.f32.mrf.mxu0
        %4815 = vmatprep.mubr.bf16.mxu0 0
        %4816 = vmatmul.mubr.bf16.gmra.mxu0 %v4735
        %v4817 = vpop.f32.mrf.mxu0
        %v4818 = vadd.f32 0.0, %v4817
        %v4819 = vpop.f32.mrf.mxu0
        %v4820 = vpop.f32.mrf.mxu0
        %v4821 = vadd.f32 0.0, %v4820
        %v4822 = vpop.f32.mrf.mxu0
        %4823 = vmatprep.mubr.bf16.mxu0 0
        %4824 = vmatmul.mubr.bf16.gmra.mxu0 %v4738
        %v4825 = vpop.f32.mrf.mxu0
        %v4826 = vadd.f32 0.0, %v4825
        %v4827 = vpop.f32.mrf.mxu0
        %v4828 = vpop.f32.mrf.mxu0
        %v4829 = vpop.f32.mrf.mxu0
        %4830 = vdwg.mxu0
        %v4831 = vadd.f32 %v4687, %v4778
        %v4832 = vadd.f32 %v4688, %v4781
        %v4833 = vadd.f32 %v4689, %v4786
        %v4834 = vadd.f32 %v4690, %v4789
        %v4835 = vadd.f32 %v4691, %v4794
        %v4836 = vadd.f32 %v4692, %v4797
        %v4837 = vadd.f32 %v4693, %v4802
        %v4838 = vadd.f32 %v4694, %v4805
        %v4839 = vadd.f32 %v4695, %v4810
        %v4840 = vadd.f32 %v4696, %v4813
        %v4841 = vadd.f32 %v4697, %v4818
        %v4842 = vadd.f32 %v4698, %v4821
        %v4843 = vadd.f32 %v4699, %v4826
        %v4844 = vld [vmem:[%s219 + $0xc] sm:$0x8]
        %v4845 = vld [vmem:[%s219 + $0x40] sm:$0x7]
        %s4846 = scalar_lea.vmem %s224, 48
        %v4847 = vld [vmem:[%s4846] sm:$0x3]
        %v4850 = vunpack.c.l.b16 %v4844
        %v4851 = vunpack.c.l.b16 %v4845
        %v4852 = vpack.c.b16 %v3662, %v4850
        %v4853 = vpack.c.b16 %v4851, %v3673
        %v4854 = vrot.slane %v4852, 3
        %v4855 = vrot.slane %v3676, 3
        %v4856 = vsel %vm1780, %v4854, %v4855
        %v4857 = vrot.slane %v3677, 3
        %v4858 = vsel %vm1780, %v4855, %v4857
        %v4859 = vrot.slane %v3678, 3
        %v4860 = vsel %vm1780, %v4857, %v4859
        %v4861 = vrot.slane %v3679, 3
        %v4862 = vsel %vm1780, %v4859, %v4861
        %v4863 = vrot.slane %v3680, 3
        %v4864 = vsel %vm1780, %v4861, %v4863
        %v4865 = vrot.slane %v4853, 3
        %v4866 = vsel %vm1780, %v4863, %v4865
        %v4868 = vsel %vm293, %v4856, 0
        %v4871 = vsel %vm293, %v4858, 0
        %v4874 = vsel %vm293, %v4860, 0
        %v4877 = vsel %vm293, %v4862, 0
        %v4880 = vsel %vm293, %v4864, 0
        %v4883 = vsel %vm293, %v4866, 0
        %v4886 = vsel %vm293, %v4865, 0
        %v4889 = vsel %vm315, %v4847, 0
        %4891 = vmatprep.subr.bf16.mxu0 0
        %4892 = vmatpush1.bf16.msra.mxu0 0
        %4893 = vmatprep.subr.bf16.mxu0 0
        %4894 = vmatpush1.bf16.msra.mxu0 0
        %4895 = vmatprep.subr.bf16.mxu0 0
        %4896 = vmatpush1.bf16.msra.mxu0 0
        %4897 = vmatprep.subr.bf16.mxu0 0
        %4898 = vmatpush1.bf16.msra.mxu0 0
        %4899 = vmatprep.subr.bf16.mxu0 0
        %4900 = vmatpush1.bf16.msra.mxu0 0
        %4901 = vmatprep.subr.bf16.mxu0 0
        %4902 = vmatpush1.bf16.msra.mxu0 0
        %4903 = vmatprep.subr.bf16.mxu0 0
        %4904 = vmatpush1.bf16.msra.mxu0 0
        %4905 = vmatprep.subr.bf16.mxu0 0
        %4906 = vmatpush1.bf16.msra.mxu0 %v4889
        %4907 = vmatprep.subr.bf16.mxu0 0
        %4908 = vmatpush2.bf16.msra.mxu0 0
        %4909 = vmatprep.subr.bf16.mxu0 0
        %4910 = vmatpush2.bf16.msra.mxu0 0
        %4911 = vmatprep.subr.bf16.mxu0 0
        %4912 = vmatpush2.bf16.msra.mxu0 0
        %4913 = vmatprep.subr.bf16.mxu0 0
        %4914 = vmatpush2.bf16.msra.mxu0 0
        %4915 = vmatprep.subr.bf16.mxu0 0
        %4916 = vmatpush2.bf16.msra.mxu0 0
        %4917 = vmatprep.subr.bf16.mxu0 0
        %4918 = vmatpush2.bf16.msra.mxu0 0
        %4919 = vmatprep.subr.bf16.mxu0 0
        %4920 = vmatpush2.bf16.msra.mxu0 0
        %4921 = vmatprep.subr.bf16.mxu0 0
        %4922 = vmatpush2.bf16.msra.mxu0 0
        %4923 = vmatprep.mubr.bf16.mxu0 0
        %4924 = vmatmul.mubr.bf16.gmra.mxu0 %v4868
        %v4925 = vpop.f32.mrf.mxu0
        %v4926 = vadd.f32 0.0, %v4925
        %v4927 = vpop.f32.mrf.mxu0
        %v4928 = vpop.f32.mrf.mxu0
        %v4929 = vadd.f32 0.0, %v4928
        %v4930 = vpop.f32.mrf.mxu0
        %4931 = vmatprep.mubr.bf16.mxu0 0
        %4932 = vmatmul.mubr.bf16.gmra.mxu0 %v4871
        %v4933 = vpop.f32.mrf.mxu0
        %v4934 = vadd.f32 0.0, %v4933
        %v4935 = vpop.f32.mrf.mxu0
        %v4936 = vpop.f32.mrf.mxu0
        %v4937 = vadd.f32 0.0, %v4936
        %v4938 = vpop.f32.mrf.mxu0
        %4939 = vmatprep.mubr.bf16.mxu0 0
        %4940 = vmatmul.mubr.bf16.gmra.mxu0 %v4874
        %v4941 = vpop.f32.mrf.mxu0
        %v4942 = vadd.f32 0.0, %v4941
        %v4943 = vpop.f32.mrf.mxu0
        %v4944 = vpop.f32.mrf.mxu0
        %v4945 = vadd.f32 0.0, %v4944
        %v4946 = vpop.f32.mrf.mxu0
        %4947 = vmatprep.mubr.bf16.mxu0 0
        %4948 = vmatmul.mubr.bf16.gmra.mxu0 %v4877
        %v4949 = vpop.f32.mrf.mxu0
        %v4950 = vadd.f32 0.0, %v4949
        %v4951 = vpop.f32.mrf.mxu0
        %v4952 = vpop.f32.mrf.mxu0
        %v4953 = vadd.f32 0.0, %v4952
        %v4954 = vpop.f32.mrf.mxu0
        %4955 = vmatprep.mubr.bf16.mxu0 0
        %4956 = vmatmul.mubr.bf16.gmra.mxu0 %v4880
        %v4957 = vpop.f32.mrf.mxu0
        %v4958 = vadd.f32 0.0, %v4957
        %v4959 = vpop.f32.mrf.mxu0
        %v4960 = vpop.f32.mrf.mxu0
        %v4961 = vadd.f32 0.0, %v4960
        %v4962 = vpop.f32.mrf.mxu0
        %4963 = vmatprep.mubr.bf16.mxu0 0
        %4964 = vmatmul.mubr.bf16.gmra.mxu0 %v4883
        %v4965 = vpop.f32.mrf.mxu0
        %v4966 = vadd.f32 0.0, %v4965
        %v4967 = vpop.f32.mrf.mxu0
        %v4968 = vpop.f32.mrf.mxu0
        %v4969 = vadd.f32 0.0, %v4968
        %v4970 = vpop.f32.mrf.mxu0
        %4971 = vmatprep.mubr.bf16.mxu0 0
        %4972 = vmatmul.mubr.bf16.gmra.mxu0 %v4886
        %v4973 = vpop.f32.mrf.mxu0
        %v4974 = vadd.f32 0.0, %v4973
        %v4975 = vpop.f32.mrf.mxu0
        %v4976 = vpop.f32.mrf.mxu0
        %v4977 = vpop.f32.mrf.mxu0
        %4978 = vdwg.mxu0
        %v4979 = vadd.f32 %v4831, %v4926
        %v4980 = vadd.f32 %v4832, %v4929
        %v4981 = vadd.f32 %v4833, %v4934
        %v4982 = vadd.f32 %v4834, %v4937
        %v4983 = vadd.f32 %v4835, %v4942
        %v4984 = vadd.f32 %v4836, %v4945
        %v4985 = vadd.f32 %v4837, %v4950
        %v4986 = vadd.f32 %v4838, %v4953
        %v4987 = vadd.f32 %v4839, %v4958
        %v4988 = vadd.f32 %v4840, %v4961
        %v4989 = vadd.f32 %v4841, %v4966
        %v4990 = vadd.f32 %v4842, %v4969
        %v4991 = vadd.f32 %v4843, %v4974
        %v4992 = vld [vmem:[%s244 + $0xc] sm:$0x8]
        %v4993 = vld [vmem:[%s244 + $0x40] sm:$0x7]
        %s4994 = scalar_lea.vmem %s224, 50
        %v4995 = vld [vmem:[%s4994] sm:$0x3]
        %v4998 = vunpack.c.l.b16 %v4992
        %v4999 = vunpack.c.l.b16 %v4993
        %v5000 = vpack.c.b16 %v3893, %v4998
        %v5001 = vpack.c.b16 %v4999, %v3904
        %v5002 = vrot.slane %v5000, 3
        %v5003 = vrot.slane %v3907, 3
        %v5004 = vsel %vm1780, %v5002, %v5003
        %v5005 = vrot.slane %v3908, 3
        %v5006 = vsel %vm1780, %v5003, %v5005
        %v5007 = vrot.slane %v3909, 3
        %v5008 = vsel %vm1780, %v5005, %v5007
        %v5009 = vrot.slane %v3910, 3
        %v5010 = vsel %vm1780, %v5007, %v5009
        %v5011 = vrot.slane %v3911, 3
        %v5012 = vsel %vm1780, %v5009, %v5011
        %v5013 = vrot.slane %v5001, 3
        %v5014 = vsel %vm1780, %v5011, %v5013
        %v5016 = vsel %vm293, %v5004, 0
        %v5019 = vsel %vm293, %v5006, 0
        %v5022 = vsel %vm293, %v5008, 0
        %v5025 = vsel %vm293, %v5010, 0
        %v5028 = vsel %vm293, %v5012, 0
        %v5031 = vsel %vm293, %v5014, 0
        %v5034 = vsel %vm293, %v5013, 0
        %v5037 = vsel %vm315, %v4995, 0
        %5039 = vmatprep.subr.bf16.mxu0 0
        %5040 = vmatpush1.bf16.msra.mxu0 0
        %5041 = vmatprep.subr.bf16.mxu0 0
        %5042 = vmatpush1.bf16.msra.mxu0 0
        %5043 = vmatprep.subr.bf16.mxu0 0
        %5044 = vmatpush1.bf16.msra.mxu0 0
        %5045 = vmatprep.subr.bf16.mxu0 0
        %5046 = vmatpush1.bf16.msra.mxu0 0
        %5047 = vmatprep.subr.bf16.mxu0 0
        %5048 = vmatpush1.bf16.msra.mxu0 0
        %5049 = vmatprep.subr.bf16.mxu0 0
        %5050 = vmatpush1.bf16.msra.mxu0 0
        %5051 = vmatprep.subr.bf16.mxu0 0
        %5052 = vmatpush1.bf16.msra.mxu0 0
        %5053 = vmatprep.subr.bf16.mxu0 0
        %5054 = vmatpush1.bf16.msra.mxu0 %v5037
        %5055 = vmatprep.subr.bf16.mxu0 0
        %5056 = vmatpush2.bf16.msra.mxu0 0
        %5057 = vmatprep.subr.bf16.mxu0 0
        %5058 = vmatpush2.bf16.msra.mxu0 0
        %5059 = vmatprep.subr.bf16.mxu0 0
        %5060 = vmatpush2.bf16.msra.mxu0 0
        %5061 = vmatprep.subr.bf16.mxu0 0
        %5062 = vmatpush2.bf16.msra.mxu0 0
        %5063 = vmatprep.subr.bf16.mxu0 0
        %5064 = vmatpush2.bf16.msra.mxu0 0
        %5065 = vmatprep.subr.bf16.mxu0 0
        %5066 = vmatpush2.bf16.msra.mxu0 0
        %5067 = vmatprep.subr.bf16.mxu0 0
        %5068 = vmatpush2.bf16.msra.mxu0 0
        %5069 = vmatprep.subr.bf16.mxu0 0
        %5070 = vmatpush2.bf16.msra.mxu0 0
        %5071 = vmatprep.mubr.bf16.mxu0 0
        %5072 = vmatmul.mubr.bf16.gmra.mxu0 %v5016
        %v5073 = vpop.f32.mrf.mxu0
        %v5074 = vadd.f32 0.0, %v5073
        %v5075 = vpop.f32.mrf.mxu0
        %v5076 = vpop.f32.mrf.mxu0
        %v5077 = vadd.f32 0.0, %v5076
        %v5078 = vpop.f32.mrf.mxu0
        %5079 = vmatprep.mubr.bf16.mxu0 0
        %5080 = vmatmul.mubr.bf16.gmra.mxu0 %v5019
        %v5081 = vpop.f32.mrf.mxu0
        %v5082 = vadd.f32 0.0, %v5081
        %v5083 = vpop.f32.mrf.mxu0
        %v5084 = vpop.f32.mrf.mxu0
        %v5085 = vadd.f32 0.0, %v5084
        %v5086 = vpop.f32.mrf.mxu0
        %5087 = vmatprep.mubr.bf16.mxu0 0
        %5088 = vmatmul.mubr.bf16.gmra.mxu0 %v5022
        %v5089 = vpop.f32.mrf.mxu0
        %v5090 = vadd.f32 0.0, %v5089
        %v5091 = vpop.f32.mrf.mxu0
        %v5092 = vpop.f32.mrf.mxu0
        %v5093 = vadd.f32 0.0, %v5092
        %v5094 = vpop.f32.mrf.mxu0
        %5095 = vmatprep.mubr.bf16.mxu0 0
        %5096 = vmatmul.mubr.bf16.gmra.mxu0 %v5025
        %v5097 = vpop.f32.mrf.mxu0
        %v5098 = vadd.f32 0.0, %v5097
        %v5099 = vpop.f32.mrf.mxu0
        %v5100 = vpop.f32.mrf.mxu0
        %v5101 = vadd.f32 0.0, %v5100
        %v5102 = vpop.f32.mrf.mxu0
        %5103 = vmatprep.mubr.bf16.mxu0 0
        %5104 = vmatmul.mubr.bf16.gmra.mxu0 %v5028
        %v5105 = vpop.f32.mrf.mxu0
        %v5106 = vadd.f32 0.0, %v5105
        %v5107 = vpop.f32.mrf.mxu0
        %v5108 = vpop.f32.mrf.mxu0
        %v5109 = vadd.f32 0.0, %v5108
        %v5110 = vpop.f32.mrf.mxu0
        %5111 = vmatprep.mubr.bf16.mxu0 0
        %5112 = vmatmul.mubr.bf16.gmra.mxu0 %v5031
        %v5113 = vpop.f32.mrf.mxu0
        %v5114 = vadd.f32 0.0, %v5113
        %v5115 = vpop.f32.mrf.mxu0
        %v5116 = vpop.f32.mrf.mxu0
        %v5117 = vadd.f32 0.0, %v5116
        %v5118 = vpop.f32.mrf.mxu0
        %5119 = vmatprep.mubr.bf16.mxu0 0
        %5120 = vmatmul.mubr.bf16.gmra.mxu0 %v5034
        %v5121 = vpop.f32.mrf.mxu0
        %v5122 = vadd.f32 0.0, %v5121
        %v5123 = vpop.f32.mrf.mxu0
        %v5124 = vpop.f32.mrf.mxu0
        %v5125 = vpop.f32.mrf.mxu0
        %5126 = vdwg.mxu0
        %v5127 = vadd.f32 %v4979, %v5074
        %v5128 = vadd.f32 %v4980, %v5077
        %v5129 = vadd.f32 %v4981, %v5082
        %v5130 = vadd.f32 %v4982, %v5085
        %v5131 = vadd.f32 %v4983, %v5090
        %v5132 = vadd.f32 %v4984, %v5093
        %v5133 = vadd.f32 %v4985, %v5098
        %v5134 = vadd.f32 %v4986, %v5101
        %v5135 = vadd.f32 %v4987, %v5106
        %v5136 = vadd.f32 %v4988, %v5109
        %v5137 = vadd.f32 %v4989, %v5114
        %v5138 = vadd.f32 %v4990, %v5117
        %v5139 = vadd.f32 %v4991, %v5122
        %v5140 = vld [vmem:[%s219 + $0x40] sm:$0xf]
        %s5141 = scalar_lea.vmem %s224, 52
        %v5142 = vld [vmem:[%s5141] sm:$0x3]
        %v5144 = vunpack.c.l.b16 %v5140
        %v5145 = vpack.c.b16 %v5144, %v3673
        %vm5146 = vsmask.f32 4352
        %v5148 = vshrl.u32 %v4852, 16
        %v5150 = vrot.slane %v5148, 3
        %v5151 = vshll.u32 %v4852, 16
        %v5153 = vrot.slane %v5151, 4
        %v5154 = vor.u32 %v5150, %v5153
        %v5155 = vrot.slane %v3694, 3
        %v5156 = vrot.slane %v3690, 4
        %v5157 = vor.u32 %v5155, %v5156
        %v5158 = vsel %vm5146, %v5154, %v5157
        %v5159 = vrot.slane %v3702, 3
        %v5160 = vrot.slane %v3698, 4
        %v5161 = vor.u32 %v5159, %v5160
        %v5162 = vsel %vm5146, %v5157, %v5161
        %v5163 = vrot.slane %v3710, 3
        %v5164 = vrot.slane %v3706, 4
        %v5165 = vor.u32 %v5163, %v5164
        %v5166 = vsel %vm5146, %v5161, %v5165
        %v5167 = vrot.slane %v3718, 3
        %v5168 = vrot.slane %v3714, 4
        %v5169 = vor.u32 %v5167, %v5168
        %v5170 = vsel %vm5146, %v5165, %v5169
        %v5171 = vrot.slane %v3726, 3
        %v5172 = vrot.slane %v3722, 4
        %v5173 = vor.u32 %v5171, %v5172
        %v5174 = vsel %vm5146, %v5169, %v5173
        %v5176 = vshrl.u32 %v5145, 16
        %v5178 = vrot.slane %v5176, 3
        %v5179 = vshll.u32 %v5145, 16
        %v5181 = vrot.slane %v5179, 4
        %v5182 = vor.u32 %v5178, %v5181
        %v5183 = vsel %vm5146, %v5173, %v5182
        %v5185 = vsel %vm293, %v5158, 0
        %v5188 = vsel %vm293, %v5162, 0
        %v5191 = vsel %vm293, %v5166, 0
        %v5194 = vsel %vm293, %v5170, 0
        %v5197 = vsel %vm293, %v5174, 0
        %v5200 = vsel %vm293, %v5183, 0
        %v5203 = vsel %vm293, %v5182, 0
        %v5206 = vsel %vm315, %v5142, 0
        %5208 = vmatprep.subr.bf16.mxu0 0
        %5209 = vmatpush1.bf16.msra.mxu0 0
        %5210 = vmatprep.subr.bf16.mxu0 0
        %5211 = vmatpush1.bf16.msra.mxu0 0
        %5212 = vmatprep.subr.bf16.mxu0 0
        %5213 = vmatpush1.bf16.msra.mxu0 0
        %5214 = vmatprep.subr.bf16.mxu0 0
        %5215 = vmatpush1.bf16.msra.mxu0 0
        %5216 = vmatprep.subr.bf16.mxu0 0
        %5217 = vmatpush1.bf16.msra.mxu0 0
        %5218 = vmatprep.subr.bf16.mxu0 0
        %5219 = vmatpush1.bf16.msra.mxu0 0
        %5220 = vmatprep.subr.bf16.mxu0 0
        %5221 = vmatpush1.bf16.msra.mxu0 0
        %5222 = vmatprep.subr.bf16.mxu0 0
        %5223 = vmatpush1.bf16.msra.mxu0 %v5206
        %5224 = vmatprep.subr.bf16.mxu0 0
        %5225 = vmatpush2.bf16.msra.mxu0 0
        %5226 = vmatprep.subr.bf16.mxu0 0
        %5227 = vmatpush2.bf16.msra.mxu0 0
        %5228 = vmatprep.subr.bf16.mxu0 0
        %5229 = vmatpush2.bf16.msra.mxu0 0
        %5230 = vmatprep.subr.bf16.mxu0 0
        %5231 = vmatpush2.bf16.msra.mxu0 0
        %5232 = vmatprep.subr.bf16.mxu0 0
        %5233 = vmatpush2.bf16.msra.mxu0 0
        %5234 = vmatprep.subr.bf16.mxu0 0
        %5235 = vmatpush2.bf16.msra.mxu0 0
        %5236 = vmatprep.subr.bf16.mxu0 0
        %5237 = vmatpush2.bf16.msra.mxu0 0
        %5238 = vmatprep.subr.bf16.mxu0 0
        %5239 = vmatpush2.bf16.msra.mxu0 0
        %5240 = vmatprep.mubr.bf16.mxu0 0
        %5241 = vmatmul.mubr.bf16.gmra.mxu0 %v5185
        %v5242 = vpop.f32.mrf.mxu0
        %v5243 = vadd.f32 0.0, %v5242
        %v5244 = vpop.f32.mrf.mxu0
        %v5245 = vpop.f32.mrf.mxu0
        %v5246 = vadd.f32 0.0, %v5245
        %v5247 = vpop.f32.mrf.mxu0
        %5248 = vmatprep.mubr.bf16.mxu0 0
        %5249 = vmatmul.mubr.bf16.gmra.mxu0 %v5188
        %v5250 = vpop.f32.mrf.mxu0
        %v5251 = vadd.f32 0.0, %v5250
        %v5252 = vpop.f32.mrf.mxu0
        %v5253 = vpop.f32.mrf.mxu0
        %v5254 = vadd.f32 0.0, %v5253
        %v5255 = vpop.f32.mrf.mxu0
        %5256 = vmatprep.mubr.bf16.mxu0 0
        %5257 = vmatmul.mubr.bf16.gmra.mxu0 %v5191
        %v5258 = vpop.f32.mrf.mxu0
        %v5259 = vadd.f32 0.0, %v5258
        %v5260 = vpop.f32.mrf.mxu0
        %v5261 = vpop.f32.mrf.mxu0
        %v5262 = vadd.f32 0.0, %v5261
        %v5263 = vpop.f32.mrf.mxu0
        %5264 = vmatprep.mubr.bf16.mxu0 0
        %5265 = vmatmul.mubr.bf16.gmra.mxu0 %v5194
        %v5266 = vpop.f32.mrf.mxu0
        %v5267 = vadd.f32 0.0, %v5266
        %v5268 = vpop.f32.mrf.mxu0
        %v5269 = vpop.f32.mrf.mxu0
        %v5270 = vadd.f32 0.0, %v5269
        %v5271 = vpop.f32.mrf.mxu0
        %5272 = vmatprep.mubr.bf16.mxu0 0
        %5273 = vmatmul.mubr.bf16.gmra.mxu0 %v5197
        %v5274 = vpop.f32.mrf.mxu0
        %v5275 = vadd.f32 0.0, %v5274
        %v5276 = vpop.f32.mrf.mxu0
        %v5277 = vpop.f32.mrf.mxu0
        %v5278 = vadd.f32 0.0, %v5277
        %v5279 = vpop.f32.mrf.mxu0
        %5280 = vmatprep.mubr.bf16.mxu0 0
        %5281 = vmatmul.mubr.bf16.gmra.mxu0 %v5200
        %v5282 = vpop.f32.mrf.mxu0
        %v5283 = vadd.f32 0.0, %v5282
        %v5284 = vpop.f32.mrf.mxu0
        %v5285 = vpop.f32.mrf.mxu0
        %v5286 = vadd.f32 0.0, %v5285
        %v5287 = vpop.f32.mrf.mxu0
        %5288 = vmatprep.mubr.bf16.mxu0 0
        %5289 = vmatmul.mubr.bf16.gmra.mxu0 %v5203
        %v5290 = vpop.f32.mrf.mxu0
        %v5291 = vadd.f32 0.0, %v5290
        %v5292 = vpop.f32.mrf.mxu0
        %v5293 = vpop.f32.mrf.mxu0
        %v5294 = vpop.f32.mrf.mxu0
        %5295 = vdwg.mxu0
        %v5296 = vadd.f32 %v5127, %v5243
        %v5297 = vadd.f32 %v5128, %v5246
        %v5298 = vadd.f32 %v5129, %v5251
        %v5299 = vadd.f32 %v5130, %v5254
        %v5300 = vadd.f32 %v5131, %v5259
        %v5301 = vadd.f32 %v5132, %v5262
        %v5302 = vadd.f32 %v5133, %v5267
        %v5303 = vadd.f32 %v5134, %v5270
        %v5304 = vadd.f32 %v5135, %v5275
        %v5305 = vadd.f32 %v5136, %v5278
        %v5306 = vadd.f32 %v5137, %v5283
        %v5307 = vadd.f32 %v5138, %v5286
        %v5308 = vadd.f32 %v5139, %v5291
        %v5309 = vld [vmem:[%s227] sm:$0x1]
        %v5311 = vlaneseq
        %v5312 = vshrl.u32 %v5311, 7
        %v5313 = vsub.s32 0, %v5312
        %v5314 = vrot.slane %v5309, %v5313
        %v5316 = vadd.f32 %v5296, %v5314
        %v5317 = vadd.f32 %v5297, %v5314
        %v5318 = vadd.f32 %v5298, %v5314
        %v5319 = vadd.f32 %v5299, %v5314
        %v5320 = vadd.f32 %v5300, %v5314
        %v5321 = vadd.f32 %v5301, %v5314
        %v5322 = vadd.f32 %v5302, %v5314
        %v5323 = vadd.f32 %v5303, %v5314
        %v5324 = vadd.f32 %v5304, %v5314
        %v5325 = vadd.f32 %v5305, %v5314
        %v5326 = vadd.f32 %v5306, %v5314
        %v5327 = vadd.f32 %v5307, %v5314
        %v5328 = vadd.f32 %v5308, %v5314
        %5329 = vst [vmem:[%s213] sm:$0xff] %v5316
        %5330 = vst [vmem:[%s213 + $0x8] sm:$0xff] %v5317
        %5331 = vst [vmem:[%s213 + $0x10] sm:$0xff] %v5318
        %5332 = vst [vmem:[%s213 + $0x18] sm:$0xff] %v5319
        %5333 = vst [vmem:[%s213 + $0x20] sm:$0xff] %v5320
        %5334 = vst [vmem:[%s213 + $0x28] sm:$0xff] %v5321
        %5335 = vst [vmem:[%s213 + $0x30] sm:$0xff] %v5322
        %5336 = vst [vmem:[%s213 + $0x38] sm:$0xff] %v5323
        %5337 = vst [vmem:[%s213 + $0x40] sm:$0xff] %v5324
        %5338 = vst [vmem:[%s213 + $0x48] sm:$0xff] %v5325
        %5339 = vst [vmem:[%s213 + $0x50] sm:$0xff] %v5326
        %5340 = vst [vmem:[%s213 + $0x58] sm:$0xff] %v5327
        %5341 = vst [vmem:[%s213 + $0x60] sm:$0xff] %v5328
        %s5342 = sand.u32 %s126, 1
        %s5343 = scalar_lea.sflag [#allocation3], %s5342
        %s5344 = sand.u32 %s126, 1
        %s5345 = smul.addr %s5344, 104
        %s5346 = scalar_lea.vmem [#allocation2], %s5345
        // Predicated region
        $region33: #{tpu_custom_call.1} parent=31 // pred_check
          %p5347 = pneg %p136
        $region34: #{tpu_custom_call.1} parent=31 // pred_check_branch
          %5349 = sbr.rel (%p5347) target = $region36
        $region35: #{tpu_custom_call.1} parent=31 // pred_region
          %s5350 = smul.u32 13, %s24
          %s5352 = ssub.s32 1664, 1664
          %5353 = vsyncadd %s5343, %s5352
          %s5354 = sadd.s32 %s23, %s5350
          %s5355 = smul.addr %s22, 13
          %s5356 = sadd.s32 %s5354, %s5355
          %s5357 = smul.addr %s5356, 128
          %s5358 = scalar_lea.hbm %s3, %s5357
          %s5359 = sshll.u32 %s5346, 4
          %s5360 = int_to_ptr.vmem [resolvable:$true] %s5359
          %5365 = dma.vmem_to_hbm [thread:$0]  %s5360, 1664, %s5358, %s5343, 128, 128, 8
        $region36: #{tpu_custom_call.1} parent=31 // pred_fallthru
          _
      $region32: #{tpu_custom_call.1} parent=5 // pred_fallthru
        _
      %p5366 = scmp.le.s32.totalorder 2, %s12
      // Predicated region
      $region37: #{tpu_custom_call.1} parent=5 // pred_check
        %p5367 = pneg %p5366
      $region38: #{tpu_custom_call.1} parent=5 // pred_check_branch
        %5369 = sbr.rel (%p5367) target = $region40
      $region39: #{tpu_custom_call.1} parent=5 // pred_region
        %s5370 = ssub.s32 %s12, 2
        // Predicated region
        $region41: #{tpu_custom_call.1} parent=39 // pred_check
          %p5371 = pneg %p142
        $region42: #{tpu_custom_call.1} parent=39 // pred_check_branch
          %5373 = sbr.rel (%p5371) target = $region44
        $region43: #{tpu_custom_call.1} parent=39 // pred_region
          %s5374 = sand.u32 %s127, 1
          %s5375 = scalar_lea.sflag [#allocation3], %s5374
          %s5376 = sand.u32 %s127, 1
          %s5377 = smul.addr %s5376, 104
          %s5378 = scalar_lea.vmem [#allocation2], %s5377
          %5379 = dma.done %s5375, 1664
        $region44: #{tpu_custom_call.1} parent=39 // pred_fallthru
          _
      $region40: #{tpu_custom_call.1} parent=5 // pred_fallthru
        _
    $region6: #{tpu_custom_call.1} parent=1 // loop_footer
      %s16 = sadd.s32 1, %s12
    $region7: #{tpu_custom_call.1} parent=1 // loop_footer_branch
      %11 = sbr.rel target = $region3
    $region8: #{tpu_custom_call.1} parent=1 // loop_exit
      _
    %5380 = vsyncpa [#allocation3], 1
    %s5381 = scalar_lea.sflag [#allocation3], 1
    %5382 = vsyncpa %s5381, 1

</llo_original>
